<compile_context>
chip_gen: v6e
topology: v6e:2x2x1
jax: 0.10.0
libtpu: 0.0.40
codegen_flags: <defaults>
</compile_context>

<pallas_src>
import functools

import jax
import jax.numpy as jnp
import numpy as np
from jax import lax
from jax.experimental import pallas as pl
from jax.experimental.pallas import tpu as pltpu


# ----------------------------------------------------------------------------
# Pallas kernel: single invocation; layers outer, time inner.
# ----------------------------------------------------------------------------
def _encoder_rnn_kernel(x_ref,      # (T*B, I)     whole input sequence (flattened)
                        wih0_ref,   # (I, 4H)      layer-0 input weights
                        wihr_ref,   # (L-1, H, 4H) layer>=1 input weights
                        whh_ref,    # (L, H, 4H)   recurrent weights
                        b_ref,      # (L, 1, 4H)   combined biases (b_ih + b_hh)
                        wd_ref,     # (H, O)       dense weights
                        bd_ref,     # (1, O)       dense bias
                        out_ref,    # (B, O)       final output
                        seq_scr,    # VMEM (T*B, H)   current layer's output seq
                        proj_scr,   # VMEM (T*B, 4H)  batched input projection
                        h_scr,      # VMEM (B, H)
                        c_scr):     # VMEM (B, H)
    B, H = h_scr.shape
    T = seq_scr.shape[0] // B
    L = whh_ref.shape[0]

    def run_layer(layer):
        """Sequential recurrence over T; proj_scr already holds inp @ W_ih."""
        h_scr[...] = jnp.zeros_like(h_scr)
        c_scr[...] = jnp.zeros_like(c_scr)
        w_hh = whh_ref[layer]            # (H, 4H), loaded once per layer
        bias = b_ref[layer]              # (1, 4H)

        def step(t, carry):
            row = pl.multiple_of(t * B, B)           # sublane-aligned (B == 8k)
            gates = (proj_scr[pl.ds(row, B), :]
                     + jnp.dot(h_scr[...], w_hh,
                               preferred_element_type=jnp.float32)
                     + bias)
            # PyTorch gate order: input, forget, cell(g), output.
            i_g = jax.nn.sigmoid(gates[:, 0 * H:1 * H])
            f_g = jax.nn.sigmoid(gates[:, 1 * H:2 * H])
            g_g = jnp.tanh(gates[:, 2 * H:3 * H])
            o_g = jax.nn.sigmoid(gates[:, 3 * H:4 * H])
            c_new = f_g * c_scr[...] + i_g * g_g
            h_new = o_g * jnp.tanh(c_new)
            h_scr[...] = h_new
            c_scr[...] = c_new
            seq_scr[pl.ds(row, B), :] = h_new
            return carry

        lax.fori_loop(0, T, step, 0, unroll=True)    # static T, fully unrolled

    # Layer 0: one batched input projection over the whole sequence.
    proj_scr[...] = jnp.dot(x_ref[...], wih0_ref[...],
                            preferred_element_type=jnp.float32)
    run_layer(0)

    # Layers 1..L-1: project the previous layer's full output seq, then recurse.
    for l in range(1, L):                            # static unroll (L small)
        proj_scr[...] = jnp.dot(seq_scr[...], wihr_ref[l - 1],
                                preferred_element_type=jnp.float32)
        run_layer(l)

    # Final dense on h_T of the top layer == Linear(output[:, -1, :]).
    out_ref[...] = (jnp.dot(h_scr[...], wd_ref[...],
                            preferred_element_type=jnp.float32)
                    + bd_ref[...])


# ----------------------------------------------------------------------------
# Wrapper
# ----------------------------------------------------------------------------
@functools.partial(jax.jit, static_argnames=())
def encoder_rnn_forward(x_bti, params):
    """x_bti: (B, T, I) float32, as in the batch_first PyTorch module."""
    B, T, I = x_bti.shape
    L = params["whh"].shape[0]
    H = params["whh"].shape[2] // 4
    O = params["wd"].shape[1]

    # Pad batch up to a full f32 sublane (8 rows); padded rows are independent
    # of the real ones and are sliced off after the call.
    B_pad = max(8, ((B + 7) // 8) * 8)
    x = jnp.transpose(x_bti, (1, 0, 2))              # -> time-major (T, B, I)
    if B_pad != B:
        x = jnp.pad(x, ((0, 0), (0, B_pad - B), (0, 0)))
    x_flat = x.reshape(T * B_pad, I)                 # rows: t-major, b-minor

    out = pl.pallas_call(
        _encoder_rnn_kernel,
        out_shape=jax.ShapeDtypeStruct((B_pad, O), jnp.float32),
        # No grid: everything (a few KB here) is resident in VMEM for the whole
        # kernel; inputs/outputs use default full-array BlockSpecs.
        scratch_shapes=[
            pltpu.VMEM((T * B_pad, H), jnp.float32),       # layer output seq
            pltpu.VMEM((T * B_pad, 4 * H), jnp.float32),   # input projection
            pltpu.VMEM((B_pad, H), jnp.float32),           # hidden state
            pltpu.VMEM((B_pad, H), jnp.float32),           # cell state
        ],
        compiler_params=pltpu.CompilerParams(
            vmem_limit_bytes=64 * 1024 * 1024),
    )(x_flat, params["wih0"], params["wihr"], params["whh"], params["b"],
      params["wd"], params["bd"])
    return out[:B]


# ----------------------------------------------------------------------------
# Deterministic parameter init (PyTorch-style U(-1/sqrt(H), 1/sqrt(H)))
# ----------------------------------------------------------------------------
def init_params(key, input_size, hidden, num_layers, out_dim):
    k = 1.0 / np.sqrt(hidden)
    keys = jax.random.split(key, 4 * num_layers + 2)
    ki = iter(keys)

    def u(kk, shape):
        return jax.random.uniform(kk, shape, jnp.float32, -k, k)

    wih0 = u(next(ki), (input_size, 4 * hidden))
    wihr = jnp.stack([u(next(ki), (hidden, 4 * hidden))
                      for _ in range(num_layers - 1)])
    whh = jnp.stack([u(next(ki), (hidden, 4 * hidden))
                     for _ in range(num_layers)])
    b = jnp.stack([(u(next(ki), (1, 4 * hidden)) + u(next(ki), (1, 4 * hidden)))
                   for _ in range(num_layers)])
    kd = 1.0 / np.sqrt(hidden)
    wd = jax.random.uniform(next(ki), (hidden, out_dim), jnp.float32, -kd, kd)
    bd = jax.random.uniform(next(ki), (1, out_dim), jnp.float32, -kd, kd)
    return {"wih0": wih0, "wihr": wihr, "whh": whh, "b": b, "wd": wd, "bd": bd}


# ----------------------------------------------------------------------------
# Pure-JAX reference (mirrors torch stacked LSTM + Linear, eval mode)
# ----------------------------------------------------------------------------
def ref_forward(x_bti, p):
    B, T, _ = x_bti.shape
    L, _, four_h = p["whh"].shape
    H = four_h // 4
    h = jnp.zeros((L, B, H), jnp.float32)
    c = jnp.zeros((L, B, H), jnp.float32)
    last = None
    for t in range(T):
        inp = x_bti[:, t, :]
        new_h, new_c = [], []
        for l in range(L):
            w_in = p["wih0"] if l == 0 else p["wihr"][l - 1]
            gates = inp @ w_in + h[l] @ p["whh"][l] + p["b"][l]
            i_g = jax.nn.sigmoid(gates[:, :H])
            f_g = jax.nn.sigmoid(gates[:, H:2 * H])
            g_g = jnp.tanh(gates[:, 2 * H:3 * H])
            o_g = jax.nn.sigmoid(gates[:, 3 * H:])
            c_l = f_g * c[l] + i_g * g_g
            h_l = o_g * jnp.tanh(c_l)
            inp = h_l
            new_h.append(h_l)
            new_c.append(c_l)
        h, c = jnp.stack(new_h), jnp.stack(new_c)
        last = inp
    return last @ p["wd"] + p["bd"]


if __name__ == "__main__":
    # Small shapes consistent with the module's forward:
    # batch=2, seq=8, input_size=24, hidden=32, num_layers=3, out_dim=16.
    B, T, I, H, L, O = 2, 8, 24, 32, 3, 16

    key = jax.random.PRNGKey(0)
    kx, kp = jax.random.split(key)
    x = jax.random.normal(kx, (B, T, I), jnp.float32)
    params = init_params(kp, I, H, L, O)

    y = encoder_rnn_forward(x, params)
    y = jax.block_until_ready(y)

    y_ref = ref_forward(x, params)
    np.testing.assert_allclose(np.asarray(y), np.asarray(y_ref),
                               rtol=5e-3, atol=5e-3)
    assert y.shape == (B, O)
    print("KERNEL_OK")
</pallas_src>

<mosaic_0001>
module attributes {stable_mosaic.version = 11 : i64} {
  func.func @_encoder_rnn_kernel(%arg0: memref<64x24xf32, #tpu.memory_space<vmem>>, %arg1: memref<24x128xf32, #tpu.memory_space<vmem>>, %arg2: memref<2x32x128xf32, #tpu.memory_space<vmem>>, %arg3: memref<3x32x128xf32, #tpu.memory_space<vmem>>, %arg4: memref<3x1x128xf32, #tpu.memory_space<vmem>>, %arg5: memref<32x16xf32, #tpu.memory_space<vmem>>, %arg6: memref<1x16xf32, #tpu.memory_space<vmem>>, %arg7: memref<8x16xf32, #tpu.memory_space<vmem>>, %arg8: memref<64x32xf32, #tpu.memory_space<vmem>>, %arg9: memref<64x128xf32, #tpu.memory_space<vmem>>, %arg10: memref<8x32xf32, #tpu.memory_space<vmem>>, %arg11: memref<8x32xf32, #tpu.memory_space<vmem>>) attributes {dimension_semantics = [], scalar_prefetch = 0 : i64, scratch_operands = 4 : i64, tpu.core_type = #tpu.core_type<tc>} {
    %c0 = arith.constant 0 : index
    %c0_0 = arith.constant 0 : index
    %0 = vector.load %arg0[%c0, %c0_0] : memref<64x24xf32, #tpu.memory_space<vmem>>, vector<64x24xf32>
    %c0_1 = arith.constant 0 : index
    %c0_2 = arith.constant 0 : index
    %1 = vector.load %arg1[%c0_1, %c0_2] : memref<24x128xf32, #tpu.memory_space<vmem>>, vector<24x128xf32>
    %cst = arith.constant dense<0.000000e+00> : vector<64x128xf32>
    %2 = tpu.matmul %0, %1, %cst {dimension_numbers = #tpu.dot_dimension_numbers<[1], [0], [0], [1], [0, 0, 1, 1], [], []>} : vector<64x24xf32>, vector<24x128xf32>, vector<64x128xf32> -> vector<64x128xf32>
    %c0_3 = arith.constant 0 : index
    %c0_4 = arith.constant 0 : index
    %3 = vector.load %arg9[%c0_3, %c0_4] : memref<64x128xf32, #tpu.memory_space<vmem>>, vector<64x128xf32>
    tpu.vector_store %arg9[%c0_3, %c0_4], %2 {strides = array<i32>} : memref<64x128xf32, #tpu.memory_space<vmem>>, vector<64x128xf32>,
    %cst_5 = arith.constant 0.000000e+00 : f32
    %4 = vector.broadcast %cst_5 : f32 to vector<8x32xf32>
    %c0_6 = arith.constant 0 : index
    %c0_7 = arith.constant 0 : index
    %5 = vector.load %arg10[%c0_6, %c0_7] : memref<8x32xf32, #tpu.memory_space<vmem>>, vector<8x32xf32>
    tpu.vector_store %arg10[%c0_6, %c0_7], %4 {strides = array<i32>} : memref<8x32xf32, #tpu.memory_space<vmem>>, vector<8x32xf32>,
    %cst_8 = arith.constant 0.000000e+00 : f32
    %6 = vector.broadcast %cst_8 : f32 to vector<8x32xf32>
    %c0_9 = arith.constant 0 : index
    %c0_10 = arith.constant 0 : index
    %7 = vector.load %arg11[%c0_9, %c0_10] : memref<8x32xf32, #tpu.memory_space<vmem>>, vector<8x32xf32>
    tpu.vector_store %arg11[%c0_9, %c0_10], %6 {strides = array<i32>} : memref<8x32xf32, #tpu.memory_space<vmem>>, vector<8x32xf32>,
    %c0_11 = arith.constant 0 : index
    %c0_12 = arith.constant 0 : index
    %c0_13 = arith.constant 0 : index
    %8 = vector.load %arg3[%c0_11, %c0_12, %c0_13] : memref<3x32x128xf32, #tpu.memory_space<vmem>>, vector<1x32x128xf32>
    %9 = vector.shape_cast %8 : vector<1x32x128xf32> to vector<32x128xf32>
    %c0_14 = arith.constant 0 : index
    %c0_15 = arith.constant 0 : index
    %c0_16 = arith.constant 0 : index
    %10 = vector.load %arg4[%c0_14, %c0_15, %c0_16] : memref<3x1x128xf32, #tpu.memory_space<vmem>>, vector<1x1x128xf32>
    %11 = vector.shape_cast %10 : vector<1x1x128xf32> to vector<1x128xf32>
    %c0_i32 = arith.constant 0 : i32
    %c8_i32 = arith.constant 8 : i32
    %12 = arith.muli %c0_i32, %c8_i32 : i32
    %13 = tpu.assume_multiple %12, 8 : i32
    %14 = arith.index_cast %13 : i32 to index
    %c0_17 = arith.constant 0 : index
    %15 = vector.load %arg9[%14, %c0_17] : memref<64x128xf32, #tpu.memory_space<vmem>>, vector<8x128xf32>
    %c0_18 = arith.constant 0 : index
    %c0_19 = arith.constant 0 : index
    %16 = vector.load %arg10[%c0_18, %c0_19] : memref<8x32xf32, #tpu.memory_space<vmem>>, vector<8x32xf32>
    %cst_20 = arith.constant dense<0.000000e+00> : vector<8x128xf32>
    %17 = tpu.matmul %16, %9, %cst_20 {dimension_numbers = #tpu.dot_dimension_numbers<[1], [0], [0], [1], [0, 0, 1, 1], [], []>} : vector<8x32xf32>, vector<32x128xf32>, vector<8x128xf32> -> vector<8x128xf32>
    %18 = arith.addf %15, %17 : vector<8x128xf32>
    %19 = vector.broadcast %11 : vector<1x128xf32> to vector<8x128xf32>
    %20 = arith.addf %18, %19 : vector<8x128xf32>
    %21 = vector.extract_strided_slice %20 {offsets = [0, 0], sizes = [8, 32], strides = [1, 1]} : vector<8x128xf32> to vector<8x32xf32>
    %22 = arith.negf %21 : vector<8x32xf32>
    %23 = math.exp %22 : vector<8x32xf32>
    %cst_21 = arith.constant 1.000000e+00 : f32
    %24 = vector.broadcast %cst_21 : f32 to vector<8x32xf32>
    %25 = arith.addf %24, %23 : vector<8x32xf32>
    %26 = arith.divf %24, %25 : vector<8x32xf32>
    %27 = vector.extract_strided_slice %20 {offsets = [0, 32], sizes = [8, 32], strides = [1, 1]} : vector<8x128xf32> to vector<8x32xf32>
    %28 = arith.negf %27 : vector<8x32xf32>
    %29 = math.exp %28 : vector<8x32xf32>
    %cst_22 = arith.constant 1.000000e+00 : f32
    %30 = vector.broadcast %cst_22 : f32 to vector<8x32xf32>
    %31 = arith.addf %30, %29 : vector<8x32xf32>
    %32 = arith.divf %30, %31 : vector<8x32xf32>
    %33 = vector.extract_strided_slice %20 {offsets = [0, 64], sizes = [8, 32], strides = [1, 1]} : vector<8x128xf32> to vector<8x32xf32>
    %34 = math.tanh %33 : vector<8x32xf32>
    %35 = vector.extract_strided_slice %20 {offsets = [0, 96], sizes = [8, 32], strides = [1, 1]} : vector<8x128xf32> to vector<8x32xf32>
    %36 = arith.negf %35 : vector<8x32xf32>
    %37 = math.exp %36 : vector<8x32xf32>
    %cst_23 = arith.constant 1.000000e+00 : f32
    %38 = vector.broadcast %cst_23 : f32 to vector<8x32xf32>
    %39 = arith.addf %38, %37 : vector<8x32xf32>
    %40 = arith.divf %38, %39 : vector<8x32xf32>
    %c0_24 = arith.constant 0 : index
    %c0_25 = arith.constant 0 : index
    %41 = vector.load %arg11[%c0_24, %c0_25] : memref<8x32xf32, #tpu.memory_space<vmem>>, vector<8x32xf32>
    %42 = arith.mulf %32, %41 : vector<8x32xf32>
    %43 = arith.mulf %26, %34 : vector<8x32xf32>
    %44 = arith.addf %42, %43 : vector<8x32xf32>
    %45 = math.tanh %44 : vector<8x32xf32>
    %46 = arith.mulf %40, %45 : vector<8x32xf32>
    %c0_26 = arith.constant 0 : index
    %c0_27 = arith.constant 0 : index
    %47 = vector.load %arg10[%c0_26, %c0_27] : memref<8x32xf32, #tpu.memory_space<vmem>>, vector<8x32xf32>
    tpu.vector_store %arg10[%c0_26, %c0_27], %46 {strides = array<i32>} : memref<8x32xf32, #tpu.memory_space<vmem>>, vector<8x32xf32>,
    %c0_28 = arith.constant 0 : index
    %c0_29 = arith.constant 0 : index
    %48 = vector.load %arg11[%c0_28, %c0_29] : memref<8x32xf32, #tpu.memory_space<vmem>>, vector<8x32xf32>
    tpu.vector_store %arg11[%c0_28, %c0_29], %44 {strides = array<i32>} : memref<8x32xf32, #tpu.memory_space<vmem>>, vector<8x32xf32>,
    %49 = arith.index_cast %13 : i32 to index
    %c0_30 = arith.constant 0 : index
    %50 = vector.load %arg8[%49, %c0_30] : memref<64x32xf32, #tpu.memory_space<vmem>>, vector<8x32xf32>
    tpu.vector_store %arg8[%49, %c0_30], %46 {strides = array<i32>} : memref<64x32xf32, #tpu.memory_space<vmem>>, vector<8x32xf32>,
    %c1_i32 = arith.constant 1 : i32
    %c8_i32_31 = arith.constant 8 : i32
    %51 = arith.muli %c1_i32, %c8_i32_31 : i32
    %52 = tpu.assume_multiple %51, 8 : i32
    %53 = arith.index_cast %52 : i32 to index
    %c0_32 = arith.constant 0 : index
    %54 = vector.load %arg9[%53, %c0_32] : memref<64x128xf32, #tpu.memory_space<vmem>>, vector<8x128xf32>
    %c0_33 = arith.constant 0 : index
    %c0_34 = arith.constant 0 : index
    %55 = vector.load %arg10[%c0_33, %c0_34] : memref<8x32xf32, #tpu.memory_space<vmem>>, vector<8x32xf32>
    %cst_35 = arith.constant dense<0.000000e+00> : vector<8x128xf32>
    %56 = tpu.matmul %55, %9, %cst_35 {dimension_numbers = #tpu.dot_dimension_numbers<[1], [0], [0], [1], [0, 0, 1, 1], [], []>} : vector<8x32xf32>, vector<32x128xf32>, vector<8x128xf32> -> vector<8x128xf32>
    %57 = arith.addf %54, %56 : vector<8x128xf32>
    %58 = vector.broadcast %11 : vector<1x128xf32> to vector<8x128xf32>
    %59 = arith.addf %57, %58 : vector<8x128xf32>
    %60 = vector.extract_strided_slice %59 {offsets = [0, 0], sizes = [8, 32], strides = [1, 1]} : vector<8x128xf32> to vector<8x32xf32>
    %61 = arith.negf %60 : vector<8x32xf32>
    %62 = math.exp %61 : vector<8x32xf32>
    %cst_36 = arith.constant 1.000000e+00 : f32
    %63 = vector.broadcast %cst_36 : f32 to vector<8x32xf32>
    %64 = arith.addf %63, %62 : vector<8x32xf32>
    %65 = arith.divf %63, %64 : vector<8x32xf32>
    %66 = vector.extract_strided_slice %59 {offsets = [0, 32], sizes = [8, 32], strides = [1, 1]} : vector<8x128xf32> to vector<8x32xf32>
    %67 = arith.negf %66 : vector<8x32xf32>
    %68 = math.exp %67 : vector<8x32xf32>
    %cst_37 = arith.constant 1.000000e+00 : f32
    %69 = vector.broadcast %cst_37 : f32 to vector<8x32xf32>
    %70 = arith.addf %69, %68 : vector<8x32xf32>
    %71 = arith.divf %69, %70 : vector<8x32xf32>
    %72 = vector.extract_strided_slice %59 {offsets = [0, 64], sizes = [8, 32], strides = [1, 1]} : vector<8x128xf32> to vector<8x32xf32>
    %73 = math.tanh %72 : vector<8x32xf32>
    %74 = vector.extract_strided_slice %59 {offsets = [0, 96], sizes = [8, 32], strides = [1, 1]} : vector<8x128xf32> to vector<8x32xf32>
    %75 = arith.negf %74 : vector<8x32xf32>
    %76 = math.exp %75 : vector<8x32xf32>
    %cst_38 = arith.constant 1.000000e+00 : f32
    %77 = vector.broadcast %cst_38 : f32 to vector<8x32xf32>
    %78 = arith.addf %77, %76 : vector<8x32xf32>
    %79 = arith.divf %77, %78 : vector<8x32xf32>
    %c0_39 = arith.constant 0 : index
    %c0_40 = arith.constant 0 : index
    %80 = vector.load %arg11[%c0_39, %c0_40] : memref<8x32xf32, #tpu.memory_space<vmem>>, vector<8x32xf32>
    %81 = arith.mulf %71, %80 : vector<8x32xf32>
    %82 = arith.mulf %65, %73 : vector<8x32xf32>
    %83 = arith.addf %81, %82 : vector<8x32xf32>
    %84 = math.tanh %83 : vector<8x32xf32>
    %85 = arith.mulf %79, %84 : vector<8x32xf32>
    %c0_41 = arith.constant 0 : index
    %c0_42 = arith.constant 0 : index
    %86 = vector.load %arg10[%c0_41, %c0_42] : memref<8x32xf32, #tpu.memory_space<vmem>>, vector<8x32xf32>
    tpu.vector_store %arg10[%c0_41, %c0_42], %85 {strides = array<i32>} : memref<8x32xf32, #tpu.memory_space<vmem>>, vector<8x32xf32>,
    %c0_43 = arith.constant 0 : index
    %c0_44 = arith.constant 0 : index
    %87 = vector.load %arg11[%c0_43, %c0_44] : memref<8x32xf32, #tpu.memory_space<vmem>>, vector<8x32xf32>
    tpu.vector_store %arg11[%c0_43, %c0_44], %83 {strides = array<i32>} : memref<8x32xf32, #tpu.memory_space<vmem>>, vector<8x32xf32>,
    %88 = arith.index_cast %52 : i32 to index
    %c0_45 = arith.constant 0 : index
    %89 = vector.load %arg8[%88, %c0_45] : memref<64x32xf32, #tpu.memory_space<vmem>>, vector<8x32xf32>
    tpu.vector_store %arg8[%88, %c0_45], %85 {strides = array<i32>} : memref<64x32xf32, #tpu.memory_space<vmem>>, vector<8x32xf32>,
    %c2_i32 = arith.constant 2 : i32
    %c8_i32_46 = arith.constant 8 : i32
    %90 = arith.muli %c2_i32, %c8_i32_46 : i32
    %91 = tpu.assume_multiple %90, 8 : i32
    %92 = arith.index_cast %91 : i32 to index
    %c0_47 = arith.constant 0 : index
    %93 = vector.load %arg9[%92, %c0_47] : memref<64x128xf32, #tpu.memory_space<vmem>>, vector<8x128xf32>
    %c0_48 = arith.constant 0 : index
    %c0_49 = arith.constant 0 : index
    %94 = vector.load %arg10[%c0_48, %c0_49] : memref<8x32xf32, #tpu.memory_space<vmem>>, vector<8x32xf32>
    %cst_50 = arith.constant dense<0.000000e+00> : vector<8x128xf32>
    %95 = tpu.matmul %94, %9, %cst_50 {dimension_numbers = #tpu.dot_dimension_numbers<[1], [0], [0], [1], [0, 0, 1, 1], [], []>} : vector<8x32xf32>, vector<32x128xf32>, vector<8x128xf32> -> vector<8x128xf32>
    %96 = arith.addf %93, %95 : vector<8x128xf32>
    %97 = vector.broadcast %11 : vector<1x128xf32> to vector<8x128xf32>
    %98 = arith.addf %96, %97 : vector<8x128xf32>
    %99 = vector.extract_strided_slice %98 {offsets = [0, 0], sizes = [8, 32], strides = [1, 1]} : vector<8x128xf32> to vector<8x32xf32>
    %100 = arith.negf %99 : vector<8x32xf32>
    %101 = math.exp %100 : vector<8x32xf32>
    %cst_51 = arith.constant 1.000000e+00 : f32
    %102 = vector.broadcast %cst_51 : f32 to vector<8x32xf32>
    %103 = arith.addf %102, %101 : vector<8x32xf32>
    %104 = arith.divf %102, %103 : vector<8x32xf32>
    %105 = vector.extract_strided_slice %98 {offsets = [0, 32], sizes = [8, 32], strides = [1, 1]} : vector<8x128xf32> to vector<8x32xf32>
    %106 = arith.negf %105 : vector<8x32xf32>
    %107 = math.exp %106 : vector<8x32xf32>
    %cst_52 = arith.constant 1.000000e+00 : f32
    %108 = vector.broadcast %cst_52 : f32 to vector<8x32xf32>
    %109 = arith.addf %108, %107 : vector<8x32xf32>
    %110 = arith.divf %108, %109 : vector<8x32xf32>
    %111 = vector.extract_strided_slice %98 {offsets = [0, 64], sizes = [8, 32], strides = [1, 1]} : vector<8x128xf32> to vector<8x32xf32>
    %112 = math.tanh %111 : vector<8x32xf32>
    %113 = vector.extract_strided_slice %98 {offsets = [0, 96], sizes = [8, 32], strides = [1, 1]} : vector<8x128xf32> to vector<8x32xf32>
    %114 = arith.negf %113 : vector<8x32xf32>
    %115 = math.exp %114 : vector<8x32xf32>
    %cst_53 = arith.constant 1.000000e+00 : f32
    %116 = vector.broadcast %cst_53 : f32 to vector<8x32xf32>
    %117 = arith.addf %116, %115 : vector<8x32xf32>
    %118 = arith.divf %116, %117 : vector<8x32xf32>
    %c0_54 = arith.constant 0 : index
    %c0_55 = arith.constant 0 : index
    %119 = vector.load %arg11[%c0_54, %c0_55] : memref<8x32xf32, #tpu.memory_space<vmem>>, vector<8x32xf32>
    %120 = arith.mulf %110, %119 : vector<8x32xf32>
    %121 = arith.mulf %104, %112 : vector<8x32xf32>
    %122 = arith.addf %120, %121 : vector<8x32xf32>
    %123 = math.tanh %122 : vector<8x32xf32>
    %124 = arith.mulf %118, %123 : vector<8x32xf32>
    %c0_56 = arith.constant 0 : index
    %c0_57 = arith.constant 0 : index
    %125 = vector.load %arg10[%c0_56, %c0_57] : memref<8x32xf32, #tpu.memory_space<vmem>>, vector<8x32xf32>
    tpu.vector_store %arg10[%c0_56, %c0_57], %124 {strides = array<i32>} : memref<8x32xf32, #tpu.memory_space<vmem>>, vector<8x32xf32>,
    %c0_58 = arith.constant 0 : index
    %c0_59 = arith.constant 0 : index
    %126 = vector.load %arg11[%c0_58, %c0_59] : memref<8x32xf32, #tpu.memory_space<vmem>>, vector<8x32xf32>
    tpu.vector_store %arg11[%c0_58, %c0_59], %122 {strides = array<i32>} : memref<8x32xf32, #tpu.memory_space<vmem>>, vector<8x32xf32>,
    %127 = arith.index_cast %91 : i32 to index
    %c0_60 = arith.constant 0 : index
    %128 = vector.load %arg8[%127, %c0_60] : memref<64x32xf32, #tpu.memory_space<vmem>>, vector<8x32xf32>
    tpu.vector_store %arg8[%127, %c0_60], %124 {strides = array<i32>} : memref<64x32xf32, #tpu.memory_space<vmem>>, vector<8x32xf32>,
    %c3_i32 = arith.constant 3 : i32
    %c8_i32_61 = arith.constant 8 : i32
    %129 = arith.muli %c3_i32, %c8_i32_61 : i32
    %130 = tpu.assume_multiple %129, 8 : i32
    %131 = arith.index_cast %130 : i32 to index
    %c0_62 = arith.constant 0 : index
    %132 = vector.load %arg9[%131, %c0_62] : memref<64x128xf32, #tpu.memory_space<vmem>>, vector<8x128xf32>
    %c0_63 = arith.constant 0 : index
    %c0_64 = arith.constant 0 : index
    %133 = vector.load %arg10[%c0_63, %c0_64] : memref<8x32xf32, #tpu.memory_space<vmem>>, vector<8x32xf32>
    %cst_65 = arith.constant dense<0.000000e+00> : vector<8x128xf32>
    %134 = tpu.matmul %133, %9, %cst_65 {dimension_numbers = #tpu.dot_dimension_numbers<[1], [0], [0], [1], [0, 0, 1, 1], [], []>} : vector<8x32xf32>, vector<32x128xf32>, vector<8x128xf32> -> vector<8x128xf32>
    %135 = arith.addf %132, %134 : vector<8x128xf32>
    %136 = vector.broadcast %11 : vector<1x128xf32> to vector<8x128xf32>
    %137 = arith.addf %135, %136 : vector<8x128xf32>
    %138 = vector.extract_strided_slice %137 {offsets = [0, 0], sizes = [8, 32], strides = [1, 1]} : vector<8x128xf32> to vector<8x32xf32>
    %139 = arith.negf %138 : vector<8x32xf32>
    %140 = math.exp %139 : vector<8x32xf32>
    %cst_66 = arith.constant 1.000000e+00 : f32
    %141 = vector.broadcast %cst_66 : f32 to vector<8x32xf32>
    %142 = arith.addf %141, %140 : vector<8x32xf32>
    %143 = arith.divf %141, %142 : vector<8x32xf32>
    %144 = vector.extract_strided_slice %137 {offsets = [0, 32], sizes = [8, 32], strides = [1, 1]} : vector<8x128xf32> to vector<8x32xf32>
    %145 = arith.negf %144 : vector<8x32xf32>
    %146 = math.exp %145 : vector<8x32xf32>
    %cst_67 = arith.constant 1.000000e+00 : f32
    %147 = vector.broadcast %cst_67 : f32 to vector<8x32xf32>
    %148 = arith.addf %147, %146 : vector<8x32xf32>
    %149 = arith.divf %147, %148 : vector<8x32xf32>
    %150 = vector.extract_strided_slice %137 {offsets = [0, 64], sizes = [8, 32], strides = [1, 1]} : vector<8x128xf32> to vector<8x32xf32>
    %151 = math.tanh %150 : vector<8x32xf32>
    %152 = vector.extract_strided_slice %137 {offsets = [0, 96], sizes = [8, 32], strides = [1, 1]} : vector<8x128xf32> to vector<8x32xf32>
    %153 = arith.negf %152 : vector<8x32xf32>
    %154 = math.exp %153 : vector<8x32xf32>
    %cst_68 = arith.constant 1.000000e+00 : f32
    %155 = vector.broadcast %cst_68 : f32 to vector<8x32xf32>
    %156 = arith.addf %155, %154 : vector<8x32xf32>
    %157 = arith.divf %155, %156 : vector<8x32xf32>
    %c0_69 = arith.constant 0 : index
    %c0_70 = arith.constant 0 : index
    %158 = vector.load %arg11[%c0_69, %c0_70] : memref<8x32xf32, #tpu.memory_space<vmem>>, vector<8x32xf32>
    %159 = arith.mulf %149, %158 : vector<8x32xf32>
    %160 = arith.mulf %143, %151 : vector<8x32xf32>
    %161 = arith.addf %159, %160 : vector<8x32xf32>
    %162 = math.tanh %161 : vector<8x32xf32>
    %163 = arith.mulf %157, %162 : vector<8x32xf32>
    %c0_71 = arith.constant 0 : index
    %c0_72 = arith.constant 0 : index
    %164 = vector.load %arg10[%c0_71, %c0_72] : memref<8x32xf32, #tpu.memory_space<vmem>>, vector<8x32xf32>
    tpu.vector_store %arg10[%c0_71, %c0_72], %163 {strides = array<i32>} : memref<8x32xf32, #tpu.memory_space<vmem>>, vector<8x32xf32>,
    %c0_73 = arith.constant 0 : index
    %c0_74 = arith.constant 0 : index
    %165 = vector.load %arg11[%c0_73, %c0_74] : memref<8x32xf32, #tpu.memory_space<vmem>>, vector<8x32xf32>
    tpu.vector_store %arg11[%c0_73, %c0_74], %161 {strides = array<i32>} : memref<8x32xf32, #tpu.memory_space<vmem>>, vector<8x32xf32>,
    %166 = arith.index_cast %130 : i32 to index
    %c0_75 = arith.constant 0 : index
    %167 = vector.load %arg8[%166, %c0_75] : memref<64x32xf32, #tpu.memory_space<vmem>>, vector<8x32xf32>
    tpu.vector_store %arg8[%166, %c0_75], %163 {strides = array<i32>} : memref<64x32xf32, #tpu.memory_space<vmem>>, vector<8x32xf32>,
    %c4_i32 = arith.constant 4 : i32
    %c8_i32_76 = arith.constant 8 : i32
    %168 = arith.muli %c4_i32, %c8_i32_76 : i32
    %169 = tpu.assume_multiple %168, 8 : i32
    %170 = arith.index_cast %169 : i32 to index
    %c0_77 = arith.constant 0 : index
    %171 = vector.load %arg9[%170, %c0_77] : memref<64x128xf32, #tpu.memory_space<vmem>>, vector<8x128xf32>
    %c0_78 = arith.constant 0 : index
    %c0_79 = arith.constant 0 : index
    %172 = vector.load %arg10[%c0_78, %c0_79] : memref<8x32xf32, #tpu.memory_space<vmem>>, vector<8x32xf32>
    %cst_80 = arith.constant dense<0.000000e+00> : vector<8x128xf32>
    %173 = tpu.matmul %172, %9, %cst_80 {dimension_numbers = #tpu.dot_dimension_numbers<[1], [0], [0], [1], [0, 0, 1, 1], [], []>} : vector<8x32xf32>, vector<32x128xf32>, vector<8x128xf32> -> vector<8x128xf32>
    %174 = arith.addf %171, %173 : vector<8x128xf32>
    %175 = vector.broadcast %11 : vector<1x128xf32> to vector<8x128xf32>
    %176 = arith.addf %174, %175 : vector<8x128xf32>
    %177 = vector.extract_strided_slice %176 {offsets = [0, 0], sizes = [8, 32], strides = [1, 1]} : vector<8x128xf32> to vector<8x32xf32>
    %178 = arith.negf %177 : vector<8x32xf32>
    %179 = math.exp %178 : vector<8x32xf32>
    %cst_81 = arith.constant 1.000000e+00 : f32
    %180 = vector.broadcast %cst_81 : f32 to vector<8x32xf32>
    %181 = arith.addf %180, %179 : vector<8x32xf32>
    %182 = arith.divf %180, %181 : vector<8x32xf32>
    %183 = vector.extract_strided_slice %176 {offsets = [0, 32], sizes = [8, 32], strides = [1, 1]} : vector<8x128xf32> to vector<8x32xf32>
    %184 = arith.negf %183 : vector<8x32xf32>
    %185 = math.exp %184 : vector<8x32xf32>
    %cst_82 = arith.constant 1.000000e+00 : f32
    %186 = vector.broadcast %cst_82 : f32 to vector<8x32xf32>
    %187 = arith.addf %186, %185 : vector<8x32xf32>
    %188 = arith.divf %186, %187 : vector<8x32xf32>
    %189 = vector.extract_strided_slice %176 {offsets = [0, 64], sizes = [8, 32], strides = [1, 1]} : vector<8x128xf32> to vector<8x32xf32>
    %190 = math.tanh %189 : vector<8x32xf32>
    %191 = vector.extract_strided_slice %176 {offsets = [0, 96], sizes = [8, 32], strides = [1, 1]} : vector<8x128xf32> to vector<8x32xf32>
    %192 = arith.negf %191 : vector<8x32xf32>
    %193 = math.exp %192 : vector<8x32xf32>
    %cst_83 = arith.constant 1.000000e+00 : f32
    %194 = vector.broadcast %cst_83 : f32 to vector<8x32xf32>
    %195 = arith.addf %194, %193 : vector<8x32xf32>
    %196 = arith.divf %194, %195 : vector<8x32xf32>
    %c0_84 = arith.constant 0 : index
    %c0_85 = arith.constant 0 : index
    %197 = vector.load %arg11[%c0_84, %c0_85] : memref<8x32xf32, #tpu.memory_space<vmem>>, vector<8x32xf32>
    %198 = arith.mulf %188, %197 : vector<8x32xf32>
    %199 = arith.mulf %182, %190 : vector<8x32xf32>
    %200 = arith.addf %198, %199 : vector<8x32xf32>
    %201 = math.tanh %200 : vector<8x32xf32>
    %202 = arith.mulf %196, %201 : vector<8x32xf32>
    %c0_86 = arith.constant 0 : index
    %c0_87 = arith.constant 0 : index
    %203 = vector.load %arg10[%c0_86, %c0_87] : memref<8x32xf32, #tpu.memory_space<vmem>>, vector<8x32xf32>
    tpu.vector_store %arg10[%c0_86, %c0_87], %202 {strides = array<i32>} : memref<8x32xf32, #tpu.memory_space<vmem>>, vector<8x32xf32>,
    %c0_88 = arith.constant 0 : index
    %c0_89 = arith.constant 0 : index
    %204 = vector.load %arg11[%c0_88, %c0_89] : memref<8x32xf32, #tpu.memory_space<vmem>>, vector<8x32xf32>
    tpu.vector_store %arg11[%c0_88, %c0_89], %200 {strides = array<i32>} : memref<8x32xf32, #tpu.memory_space<vmem>>, vector<8x32xf32>,
    %205 = arith.index_cast %169 : i32 to index
    %c0_90 = arith.constant 0 : index
    %206 = vector.load %arg8[%205, %c0_90] : memref<64x32xf32, #tpu.memory_space<vmem>>, vector<8x32xf32>
    tpu.vector_store %arg8[%205, %c0_90], %202 {strides = array<i32>} : memref<64x32xf32, #tpu.memory_space<vmem>>, vector<8x32xf32>,
    %c5_i32 = arith.constant 5 : i32
    %c8_i32_91 = arith.constant 8 : i32
    %207 = arith.muli %c5_i32, %c8_i32_91 : i32
    %208 = tpu.assume_multiple %207, 8 : i32
    %209 = arith.index_cast %208 : i32 to index
    %c0_92 = arith.constant 0 : index
    %210 = vector.load %arg9[%209, %c0_92] : memref<64x128xf32, #tpu.memory_space<vmem>>, vector<8x128xf32>
    %c0_93 = arith.constant 0 : index
    %c0_94 = arith.constant 0 : index
    %211 = vector.load %arg10[%c0_93, %c0_94] : memref<8x32xf32, #tpu.memory_space<vmem>>, vector<8x32xf32>
    %cst_95 = arith.constant dense<0.000000e+00> : vector<8x128xf32>
    %212 = tpu.matmul %211, %9, %cst_95 {dimension_numbers = #tpu.dot_dimension_numbers<[1], [0], [0], [1], [0, 0, 1, 1], [], []>} : vector<8x32xf32>, vector<32x128xf32>, vector<8x128xf32> -> vector<8x128xf32>
    %213 = arith.addf %210, %212 : vector<8x128xf32>
    %214 = vector.broadcast %11 : vector<1x128xf32> to vector<8x128xf32>
    %215 = arith.addf %213, %214 : vector<8x128xf32>
    %216 = vector.extract_strided_slice %215 {offsets = [0, 0], sizes = [8, 32], strides = [1, 1]} : vector<8x128xf32> to vector<8x32xf32>
    %217 = arith.negf %216 : vector<8x32xf32>
    %218 = math.exp %217 : vector<8x32xf32>
    %cst_96 = arith.constant 1.000000e+00 : f32
    %219 = vector.broadcast %cst_96 : f32 to vector<8x32xf32>
    %220 = arith.addf %219, %218 : vector<8x32xf32>
    %221 = arith.divf %219, %220 : vector<8x32xf32>
    %222 = vector.extract_strided_slice %215 {offsets = [0, 32], sizes = [8, 32], strides = [1, 1]} : vector<8x128xf32> to vector<8x32xf32>
    %223 = arith.negf %222 : vector<8x32xf32>
    %224 = math.exp %223 : vector<8x32xf32>
    %cst_97 = arith.constant 1.000000e+00 : f32
    %225 = vector.broadcast %cst_97 : f32 to vector<8x32xf32>
    %226 = arith.addf %225, %224 : vector<8x32xf32>
    %227 = arith.divf %225, %226 : vector<8x32xf32>
    %228 = vector.extract_strided_slice %215 {offsets = [0, 64], sizes = [8, 32], strides = [1, 1]} : vector<8x128xf32> to vector<8x32xf32>
    %229 = math.tanh %228 : vector<8x32xf32>
    %230 = vector.extract_strided_slice %215 {offsets = [0, 96], sizes = [8, 32], strides = [1, 1]} : vector<8x128xf32> to vector<8x32xf32>
    %231 = arith.negf %230 : vector<8x32xf32>
    %232 = math.exp %231 : vector<8x32xf32>
    %cst_98 = arith.constant 1.000000e+00 : f32
    %233 = vector.broadcast %cst_98 : f32 to vector<8x32xf32>
    %234 = arith.addf %233, %232 : vector<8x32xf32>
    %235 = arith.divf %233, %234 : vector<8x32xf32>
    %c0_99 = arith.constant 0 : index
    %c0_100 = arith.constant 0 : index
    %236 = vector.load %arg11[%c0_99, %c0_100] : memref<8x32xf32, #tpu.memory_space<vmem>>, vector<8x32xf32>
    %237 = arith.mulf %227, %236 : vector<8x32xf32>
    %238 = arith.mulf %221, %229 : vector<8x32xf32>
    %239 = arith.addf %237, %238 : vector<8x32xf32>
    %240 = math.tanh %239 : vector<8x32xf32>
    %241 = arith.mulf %235, %240 : vector<8x32xf32>
    %c0_101 = arith.constant 0 : index
    %c0_102 = arith.constant 0 : index
    %242 = vector.load %arg10[%c0_101, %c0_102] : memref<8x32xf32, #tpu.memory_space<vmem>>, vector<8x32xf32>
    tpu.vector_store %arg10[%c0_101, %c0_102], %241 {strides = array<i32>} : memref<8x32xf32, #tpu.memory_space<vmem>>, vector<8x32xf32>,
    %c0_103 = arith.constant 0 : index
    %c0_104 = arith.constant 0 : index
    %243 = vector.load %arg11[%c0_103, %c0_104] : memref<8x32xf32, #tpu.memory_space<vmem>>, vector<8x32xf32>
    tpu.vector_store %arg11[%c0_103, %c0_104], %239 {strides = array<i32>} : memref<8x32xf32, #tpu.memory_space<vmem>>, vector<8x32xf32>,
    %244 = arith.index_cast %208 : i32 to index
    %c0_105 = arith.constant 0 : index
    %245 = vector.load %arg8[%244, %c0_105] : memref<64x32xf32, #tpu.memory_space<vmem>>, vector<8x32xf32>
    tpu.vector_store %arg8[%244, %c0_105], %241 {strides = array<i32>} : memref<64x32xf32, #tpu.memory_space<vmem>>, vector<8x32xf32>,
    %c6_i32 = arith.constant 6 : i32
    %c8_i32_106 = arith.constant 8 : i32
    %246 = arith.muli %c6_i32, %c8_i32_106 : i32
    %247 = tpu.assume_multiple %246, 8 : i32
    %248 = arith.index_cast %247 : i32 to index
    %c0_107 = arith.constant 0 : index
    %249 = vector.load %arg9[%248, %c0_107] : memref<64x128xf32, #tpu.memory_space<vmem>>, vector<8x128xf32>
    %c0_108 = arith.constant 0 : index
    %c0_109 = arith.constant 0 : index
    %250 = vector.load %arg10[%c0_108, %c0_109] : memref<8x32xf32, #tpu.memory_space<vmem>>, vector<8x32xf32>
    %cst_110 = arith.constant dense<0.000000e+00> : vector<8x128xf32>
    %251 = tpu.matmul %250, %9, %cst_110 {dimension_numbers = #tpu.dot_dimension_numbers<[1], [0], [0], [1], [0, 0, 1, 1], [], []>} : vector<8x32xf32>, vector<32x128xf32>, vector<8x128xf32> -> vector<8x128xf32>
    %252 = arith.addf %249, %251 : vector<8x128xf32>
    %253 = vector.broadcast %11 : vector<1x128xf32> to vector<8x128xf32>
    %254 = arith.addf %252, %253 : vector<8x128xf32>
    %255 = vector.extract_strided_slice %254 {offsets = [0, 0], sizes = [8, 32], strides = [1, 1]} : vector<8x128xf32> to vector<8x32xf32>
    %256 = arith.negf %255 : vector<8x32xf32>
    %257 = math.exp %256 : vector<8x32xf32>
    %cst_111 = arith.constant 1.000000e+00 : f32
    %258 = vector.broadcast %cst_111 : f32 to vector<8x32xf32>
    %259 = arith.addf %258, %257 : vector<8x32xf32>
    %260 = arith.divf %258, %259 : vector<8x32xf32>
    %261 = vector.extract_strided_slice %254 {offsets = [0, 32], sizes = [8, 32], strides = [1, 1]} : vector<8x128xf32> to vector<8x32xf32>
    %262 = arith.negf %261 : vector<8x32xf32>
    %263 = math.exp %262 : vector<8x32xf32>
    %cst_112 = arith.constant 1.000000e+00 : f32
    %264 = vector.broadcast %cst_112 : f32 to vector<8x32xf32>
    %265 = arith.addf %264, %263 : vector<8x32xf32>
    %266 = arith.divf %264, %265 : vector<8x32xf32>
    %267 = vector.extract_strided_slice %254 {offsets = [0, 64], sizes = [8, 32], strides = [1, 1]} : vector<8x128xf32> to vector<8x32xf32>
    %268 = math.tanh %267 : vector<8x32xf32>
    %269 = vector.extract_strided_slice %254 {offsets = [0, 96], sizes = [8, 32], strides = [1, 1]} : vector<8x128xf32> to vector<8x32xf32>
    %270 = arith.negf %269 : vector<8x32xf32>
    %271 = math.exp %270 : vector<8x32xf32>
    %cst_113 = arith.constant 1.000000e+00 : f32
    %272 = vector.broadcast %cst_113 : f32 to vector<8x32xf32>
    %273 = arith.addf %272, %271 : vector<8x32xf32>
    %274 = arith.divf %272, %273 : vector<8x32xf32>
    %c0_114 = arith.constant 0 : index
    %c0_115 = arith.constant 0 : index
    %275 = vector.load %arg11[%c0_114, %c0_115] : memref<8x32xf32, #tpu.memory_space<vmem>>, vector<8x32xf32>
    %276 = arith.mulf %266, %275 : vector<8x32xf32>
    %277 = arith.mulf %260, %268 : vector<8x32xf32>
    %278 = arith.addf %276, %277 : vector<8x32xf32>
    %279 = math.tanh %278 : vector<8x32xf32>
    %280 = arith.mulf %274, %279 : vector<8x32xf32>
    %c0_116 = arith.constant 0 : index
    %c0_117 = arith.constant 0 : index
    %281 = vector.load %arg10[%c0_116, %c0_117] : memref<8x32xf32, #tpu.memory_space<vmem>>, vector<8x32xf32>
    tpu.vector_store %arg10[%c0_116, %c0_117], %280 {strides = array<i32>} : memref<8x32xf32, #tpu.memory_space<vmem>>, vector<8x32xf32>,
    %c0_118 = arith.constant 0 : index
    %c0_119 = arith.constant 0 : index
    %282 = vector.load %arg11[%c0_118, %c0_119] : memref<8x32xf32, #tpu.memory_space<vmem>>, vector<8x32xf32>
    tpu.vector_store %arg11[%c0_118, %c0_119], %278 {strides = array<i32>} : memref<8x32xf32, #tpu.memory_space<vmem>>, vector<8x32xf32>,
    %283 = arith.index_cast %247 : i32 to index
    %c0_120 = arith.constant 0 : index
    %284 = vector.load %arg8[%283, %c0_120] : memref<64x32xf32, #tpu.memory_space<vmem>>, vector<8x32xf32>
    tpu.vector_store %arg8[%283, %c0_120], %280 {strides = array<i32>} : memref<64x32xf32, #tpu.memory_space<vmem>>, vector<8x32xf32>,
    %c7_i32 = arith.constant 7 : i32
    %c8_i32_121 = arith.constant 8 : i32
    %285 = arith.muli %c7_i32, %c8_i32_121 : i32
    %286 = tpu.assume_multiple %285, 8 : i32
    %287 = arith.index_cast %286 : i32 to index
    %c0_122 = arith.constant 0 : index
    %288 = vector.load %arg9[%287, %c0_122] : memref<64x128xf32, #tpu.memory_space<vmem>>, vector<8x128xf32>
    %c0_123 = arith.constant 0 : index
    %c0_124 = arith.constant 0 : index
    %289 = vector.load %arg10[%c0_123, %c0_124] : memref<8x32xf32, #tpu.memory_space<vmem>>, vector<8x32xf32>
    %cst_125 = arith.constant dense<0.000000e+00> : vector<8x128xf32>
    %290 = tpu.matmul %289, %9, %cst_125 {dimension_numbers = #tpu.dot_dimension_numbers<[1], [0], [0], [1], [0, 0, 1, 1], [], []>} : vector<8x32xf32>, vector<32x128xf32>, vector<8x128xf32> -> vector<8x128xf32>
    %291 = arith.addf %288, %290 : vector<8x128xf32>
    %292 = vector.broadcast %11 : vector<1x128xf32> to vector<8x128xf32>
    %293 = arith.addf %291, %292 : vector<8x128xf32>
    %294 = vector.extract_strided_slice %293 {offsets = [0, 0], sizes = [8, 32], strides = [1, 1]} : vector<8x128xf32> to vector<8x32xf32>
    %295 = arith.negf %294 : vector<8x32xf32>
    %296 = math.exp %295 : vector<8x32xf32>
    %cst_126 = arith.constant 1.000000e+00 : f32
    %297 = vector.broadcast %cst_126 : f32 to vector<8x32xf32>
    %298 = arith.addf %297, %296 : vector<8x32xf32>
    %299 = arith.divf %297, %298 : vector<8x32xf32>
    %300 = vector.extract_strided_slice %293 {offsets = [0, 32], sizes = [8, 32], strides = [1, 1]} : vector<8x128xf32> to vector<8x32xf32>
    %301 = arith.negf %300 : vector<8x32xf32>
    %302 = math.exp %301 : vector<8x32xf32>
    %cst_127 = arith.constant 1.000000e+00 : f32
    %303 = vector.broadcast %cst_127 : f32 to vector<8x32xf32>
    %304 = arith.addf %303, %302 : vector<8x32xf32>
    %305 = arith.divf %303, %304 : vector<8x32xf32>
    %306 = vector.extract_strided_slice %293 {offsets = [0, 64], sizes = [8, 32], strides = [1, 1]} : vector<8x128xf32> to vector<8x32xf32>
    %307 = math.tanh %306 : vector<8x32xf32>
    %308 = vector.extract_strided_slice %293 {offsets = [0, 96], sizes = [8, 32], strides = [1, 1]} : vector<8x128xf32> to vector<8x32xf32>
    %309 = arith.negf %308 : vector<8x32xf32>
    %310 = math.exp %309 : vector<8x32xf32>
    %cst_128 = arith.constant 1.000000e+00 : f32
    %311 = vector.broadcast %cst_128 : f32 to vector<8x32xf32>
    %312 = arith.addf %311, %310 : vector<8x32xf32>
    %313 = arith.divf %311, %312 : vector<8x32xf32>
    %c0_129 = arith.constant 0 : index
    %c0_130 = arith.constant 0 : index
    %314 = vector.load %arg11[%c0_129, %c0_130] : memref<8x32xf32, #tpu.memory_space<vmem>>, vector<8x32xf32>
    %315 = arith.mulf %305, %314 : vector<8x32xf32>
    %316 = arith.mulf %299, %307 : vector<8x32xf32>
    %317 = arith.addf %315, %316 : vector<8x32xf32>
    %318 = math.tanh %317 : vector<8x32xf32>
    %319 = arith.mulf %313, %318 : vector<8x32xf32>
    %c0_131 = arith.constant 0 : index
    %c0_132 = arith.constant 0 : index
    %320 = vector.load %arg10[%c0_131, %c0_132] : memref<8x32xf32, #tpu.memory_space<vmem>>, vector<8x32xf32>
    tpu.vector_store %arg10[%c0_131, %c0_132], %319 {strides = array<i32>} : memref<8x32xf32, #tpu.memory_space<vmem>>, vector<8x32xf32>,
    %c0_133 = arith.constant 0 : index
    %c0_134 = arith.constant 0 : index
    %321 = vector.load %arg11[%c0_133, %c0_134] : memref<8x32xf32, #tpu.memory_space<vmem>>, vector<8x32xf32>
    tpu.vector_store %arg11[%c0_133, %c0_134], %317 {strides = array<i32>} : memref<8x32xf32, #tpu.memory_space<vmem>>, vector<8x32xf32>,
    %322 = arith.index_cast %286 : i32 to index
    %c0_135 = arith.constant 0 : index
    %323 = vector.load %arg8[%322, %c0_135] : memref<64x32xf32, #tpu.memory_space<vmem>>, vector<8x32xf32>
    tpu.vector_store %arg8[%322, %c0_135], %319 {strides = array<i32>} : memref<64x32xf32, #tpu.memory_space<vmem>>, vector<8x32xf32>,
    %c8_i32_136 = arith.constant 8 : i32
    %c0_137 = arith.constant 0 : index
    %c0_138 = arith.constant 0 : index
    %324 = vector.load %arg8[%c0_137, %c0_138] : memref<64x32xf32, #tpu.memory_space<vmem>>, vector<64x32xf32>
    %c0_139 = arith.constant 0 : index
    %c0_140 = arith.constant 0 : index
    %c0_141 = arith.constant 0 : index
    %325 = vector.load %arg2[%c0_139, %c0_140, %c0_141] : memref<2x32x128xf32, #tpu.memory_space<vmem>>, vector<1x32x128xf32>
    %326 = vector.shape_cast %325 : vector<1x32x128xf32> to vector<32x128xf32>
    %cst_142 = arith.constant dense<0.000000e+00> : vector<64x128xf32>
    %327 = tpu.matmul %324, %326, %cst_142 {dimension_numbers = #tpu.dot_dimension_numbers<[1], [0], [0], [1], [0, 0, 1, 1], [], []>} : vector<64x32xf32>, vector<32x128xf32>, vector<64x128xf32> -> vector<64x128xf32>
    %c0_143 = arith.constant 0 : index
    %c0_144 = arith.constant 0 : index
    %328 = vector.load %arg9[%c0_143, %c0_144] : memref<64x128xf32, #tpu.memory_space<vmem>>, vector<64x128xf32>
    tpu.vector_store %arg9[%c0_143, %c0_144], %327 {strides = array<i32>} : memref<64x128xf32, #tpu.memory_space<vmem>>, vector<64x128xf32>,
    %cst_145 = arith.constant 0.000000e+00 : f32
    %329 = vector.broadcast %cst_145 : f32 to vector<8x32xf32>
    %c0_146 = arith.constant 0 : index
    %c0_147 = arith.constant 0 : index
    %330 = vector.load %arg10[%c0_146, %c0_147] : memref<8x32xf32, #tpu.memory_space<vmem>>, vector<8x32xf32>
    tpu.vector_store %arg10[%c0_146, %c0_147], %329 {strides = array<i32>} : memref<8x32xf32, #tpu.memory_space<vmem>>, vector<8x32xf32>,
    %cst_148 = arith.constant 0.000000e+00 : f32
    %331 = vector.broadcast %cst_148 : f32 to vector<8x32xf32>
    %c0_149 = arith.constant 0 : index
    %c0_150 = arith.constant 0 : index
    %332 = vector.load %arg11[%c0_149, %c0_150] : memref<8x32xf32, #tpu.memory_space<vmem>>, vector<8x32xf32>
    tpu.vector_store %arg11[%c0_149, %c0_150], %331 {strides = array<i32>} : memref<8x32xf32, #tpu.memory_space<vmem>>, vector<8x32xf32>,
    %c1 = arith.constant 1 : index
    %c0_151 = arith.constant 0 : index
    %c0_152 = arith.constant 0 : index
    %333 = vector.load %arg3[%c1, %c0_151, %c0_152] : memref<3x32x128xf32, #tpu.memory_space<vmem>>, vector<1x32x128xf32>
    %334 = vector.shape_cast %333 : vector<1x32x128xf32> to vector<32x128xf32>
    %c1_153 = arith.constant 1 : index
    %c0_154 = arith.constant 0 : index
    %c0_155 = arith.constant 0 : index
    %335 = vector.load %arg4[%c1_153, %c0_154, %c0_155] : memref<3x1x128xf32, #tpu.memory_space<vmem>>, vector<1x1x128xf32>
    %336 = vector.shape_cast %335 : vector<1x1x128xf32> to vector<1x128xf32>
    %c0_i32_156 = arith.constant 0 : i32
    %c8_i32_157 = arith.constant 8 : i32
    %337 = arith.muli %c0_i32_156, %c8_i32_157 : i32
    %338 = tpu.assume_multiple %337, 8 : i32
    %339 = arith.index_cast %338 : i32 to index
    %c0_158 = arith.constant 0 : index
    %340 = vector.load %arg9[%339, %c0_158] : memref<64x128xf32, #tpu.memory_space<vmem>>, vector<8x128xf32>
    %c0_159 = arith.constant 0 : index
    %c0_160 = arith.constant 0 : index
    %341 = vector.load %arg10[%c0_159, %c0_160] : memref<8x32xf32, #tpu.memory_space<vmem>>, vector<8x32xf32>
    %cst_161 = arith.constant dense<0.000000e+00> : vector<8x128xf32>
    %342 = tpu.matmul %341, %334, %cst_161 {dimension_numbers = #tpu.dot_dimension_numbers<[1], [0], [0], [1], [0, 0, 1, 1], [], []>} : vector<8x32xf32>, vector<32x128xf32>, vector<8x128xf32> -> vector<8x128xf32>
    %343 = arith.addf %340, %342 : vector<8x128xf32>
    %344 = vector.broadcast %336 : vector<1x128xf32> to vector<8x128xf32>
    %345 = arith.addf %343, %344 : vector<8x128xf32>
    %346 = vector.extract_strided_slice %345 {offsets = [0, 0], sizes = [8, 32], strides = [1, 1]} : vector<8x128xf32> to vector<8x32xf32>
    %347 = arith.negf %346 : vector<8x32xf32>
    %348 = math.exp %347 : vector<8x32xf32>
    %cst_162 = arith.constant 1.000000e+00 : f32
    %349 = vector.broadcast %cst_162 : f32 to vector<8x32xf32>
    %350 = arith.addf %349, %348 : vector<8x32xf32>
    %351 = arith.divf %349, %350 : vector<8x32xf32>
    %352 = vector.extract_strided_slice %345 {offsets = [0, 32], sizes = [8, 32], strides = [1, 1]} : vector<8x128xf32> to vector<8x32xf32>
    %353 = arith.negf %352 : vector<8x32xf32>
    %354 = math.exp %353 : vector<8x32xf32>
    %cst_163 = arith.constant 1.000000e+00 : f32
    %355 = vector.broadcast %cst_163 : f32 to vector<8x32xf32>
    %356 = arith.addf %355, %354 : vector<8x32xf32>
    %357 = arith.divf %355, %356 : vector<8x32xf32>
    %358 = vector.extract_strided_slice %345 {offsets = [0, 64], sizes = [8, 32], strides = [1, 1]} : vector<8x128xf32> to vector<8x32xf32>
    %359 = math.tanh %358 : vector<8x32xf32>
    %360 = vector.extract_strided_slice %345 {offsets = [0, 96], sizes = [8, 32], strides = [1, 1]} : vector<8x128xf32> to vector<8x32xf32>
    %361 = arith.negf %360 : vector<8x32xf32>
    %362 = math.exp %361 : vector<8x32xf32>
    %cst_164 = arith.constant 1.000000e+00 : f32
    %363 = vector.broadcast %cst_164 : f32 to vector<8x32xf32>
    %364 = arith.addf %363, %362 : vector<8x32xf32>
    %365 = arith.divf %363, %364 : vector<8x32xf32>
    %c0_165 = arith.constant 0 : index
    %c0_166 = arith.constant 0 : index
    %366 = vector.load %arg11[%c0_165, %c0_166] : memref<8x32xf32, #tpu.memory_space<vmem>>, vector<8x32xf32>
    %367 = arith.mulf %357, %366 : vector<8x32xf32>
    %368 = arith.mulf %351, %359 : vector<8x32xf32>
    %369 = arith.addf %367, %368 : vector<8x32xf32>
    %370 = math.tanh %369 : vector<8x32xf32>
    %371 = arith.mulf %365, %370 : vector<8x32xf32>
    %c0_167 = arith.constant 0 : index
    %c0_168 = arith.constant 0 : index
    %372 = vector.load %arg10[%c0_167, %c0_168] : memref<8x32xf32, #tpu.memory_space<vmem>>, vector<8x32xf32>
    tpu.vector_store %arg10[%c0_167, %c0_168], %371 {strides = array<i32>} : memref<8x32xf32, #tpu.memory_space<vmem>>, vector<8x32xf32>,
    %c0_169 = arith.constant 0 : index
    %c0_170 = arith.constant 0 : index
    %373 = vector.load %arg11[%c0_169, %c0_170] : memref<8x32xf32, #tpu.memory_space<vmem>>, vector<8x32xf32>
    tpu.vector_store %arg11[%c0_169, %c0_170], %369 {strides = array<i32>} : memref<8x32xf32, #tpu.memory_space<vmem>>, vector<8x32xf32>,
    %374 = arith.index_cast %338 : i32 to index
    %c0_171 = arith.constant 0 : index
    %375 = vector.load %arg8[%374, %c0_171] : memref<64x32xf32, #tpu.memory_space<vmem>>, vector<8x32xf32>
    tpu.vector_store %arg8[%374, %c0_171], %371 {strides = array<i32>} : memref<64x32xf32, #tpu.memory_space<vmem>>, vector<8x32xf32>,
    %c1_i32_172 = arith.constant 1 : i32
    %c8_i32_173 = arith.constant 8 : i32
    %376 = arith.muli %c1_i32_172, %c8_i32_173 : i32
    %377 = tpu.assume_multiple %376, 8 : i32
    %378 = arith.index_cast %377 : i32 to index
    %c0_174 = arith.constant 0 : index
    %379 = vector.load %arg9[%378, %c0_174] : memref<64x128xf32, #tpu.memory_space<vmem>>, vector<8x128xf32>
    %c0_175 = arith.constant 0 : index
    %c0_176 = arith.constant 0 : index
    %380 = vector.load %arg10[%c0_175, %c0_176] : memref<8x32xf32, #tpu.memory_space<vmem>>, vector<8x32xf32>
    %cst_177 = arith.constant dense<0.000000e+00> : vector<8x128xf32>
    %381 = tpu.matmul %380, %334, %cst_177 {dimension_numbers = #tpu.dot_dimension_numbers<[1], [0], [0], [1], [0, 0, 1, 1], [], []>} : vector<8x32xf32>, vector<32x128xf32>, vector<8x128xf32> -> vector<8x128xf32>
    %382 = arith.addf %379, %381 : vector<8x128xf32>
    %383 = vector.broadcast %336 : vector<1x128xf32> to vector<8x128xf32>
    %384 = arith.addf %382, %383 : vector<8x128xf32>
    %385 = vector.extract_strided_slice %384 {offsets = [0, 0], sizes = [8, 32], strides = [1, 1]} : vector<8x128xf32> to vector<8x32xf32>
    %386 = arith.negf %385 : vector<8x32xf32>
    %387 = math.exp %386 : vector<8x32xf32>
    %cst_178 = arith.constant 1.000000e+00 : f32
    %388 = vector.broadcast %cst_178 : f32 to vector<8x32xf32>
    %389 = arith.addf %388, %387 : vector<8x32xf32>
    %390 = arith.divf %388, %389 : vector<8x32xf32>
    %391 = vector.extract_strided_slice %384 {offsets = [0, 32], sizes = [8, 32], strides = [1, 1]} : vector<8x128xf32> to vector<8x32xf32>
    %392 = arith.negf %391 : vector<8x32xf32>
    %393 = math.exp %392 : vector<8x32xf32>
    %cst_179 = arith.constant 1.000000e+00 : f32
    %394 = vector.broadcast %cst_179 : f32 to vector<8x32xf32>
    %395 = arith.addf %394, %393 : vector<8x32xf32>
    %396 = arith.divf %394, %395 : vector<8x32xf32>
    %397 = vector.extract_strided_slice %384 {offsets = [0, 64], sizes = [8, 32], strides = [1, 1]} : vector<8x128xf32> to vector<8x32xf32>
    %398 = math.tanh %397 : vector<8x32xf32>
    %399 = vector.extract_strided_slice %384 {offsets = [0, 96], sizes = [8, 32], strides = [1, 1]} : vector<8x128xf32> to vector<8x32xf32>
    %400 = arith.negf %399 : vector<8x32xf32>
    %401 = math.exp %400 : vector<8x32xf32>
    %cst_180 = arith.constant 1.000000e+00 : f32
    %402 = vector.broadcast %cst_180 : f32 to vector<8x32xf32>
    %403 = arith.addf %402, %401 : vector<8x32xf32>
    %404 = arith.divf %402, %403 : vector<8x32xf32>
    %c0_181 = arith.constant 0 : index
    %c0_182 = arith.constant 0 : index
    %405 = vector.load %arg11[%c0_181, %c0_182] : memref<8x32xf32, #tpu.memory_space<vmem>>, vector<8x32xf32>
    %406 = arith.mulf %396, %405 : vector<8x32xf32>
    %407 = arith.mulf %390, %398 : vector<8x32xf32>
    %408 = arith.addf %406, %407 : vector<8x32xf32>
    %409 = math.tanh %408 : vector<8x32xf32>
    %410 = arith.mulf %404, %409 : vector<8x32xf32>
    %c0_183 = arith.constant 0 : index
    %c0_184 = arith.constant 0 : index
    %411 = vector.load %arg10[%c0_183, %c0_184] : memref<8x32xf32, #tpu.memory_space<vmem>>, vector<8x32xf32>
    tpu.vector_store %arg10[%c0_183, %c0_184], %410 {strides = array<i32>} : memref<8x32xf32, #tpu.memory_space<vmem>>, vector<8x32xf32>,
    %c0_185 = arith.constant 0 : index
    %c0_186 = arith.constant 0 : index
    %412 = vector.load %arg11[%c0_185, %c0_186] : memref<8x32xf32, #tpu.memory_space<vmem>>, vector<8x32xf32>
    tpu.vector_store %arg11[%c0_185, %c0_186], %408 {strides = array<i32>} : memref<8x32xf32, #tpu.memory_space<vmem>>, vector<8x32xf32>,
    %413 = arith.index_cast %377 : i32 to index
    %c0_187 = arith.constant 0 : index
    %414 = vector.load %arg8[%413, %c0_187] : memref<64x32xf32, #tpu.memory_space<vmem>>, vector<8x32xf32>
    tpu.vector_store %arg8[%413, %c0_187], %410 {strides = array<i32>} : memref<64x32xf32, #tpu.memory_space<vmem>>, vector<8x32xf32>,
    %c2_i32_188 = arith.constant 2 : i32
    %c8_i32_189 = arith.constant 8 : i32
    %415 = arith.muli %c2_i32_188, %c8_i32_189 : i32
    %416 = tpu.assume_multiple %415, 8 : i32
    %417 = arith.index_cast %416 : i32 to index
    %c0_190 = arith.constant 0 : index
    %418 = vector.load %arg9[%417, %c0_190] : memref<64x128xf32, #tpu.memory_space<vmem>>, vector<8x128xf32>
    %c0_191 = arith.constant 0 : index
    %c0_192 = arith.constant 0 : index
    %419 = vector.load %arg10[%c0_191, %c0_192] : memref<8x32xf32, #tpu.memory_space<vmem>>, vector<8x32xf32>
    %cst_193 = arith.constant dense<0.000000e+00> : vector<8x128xf32>
    %420 = tpu.matmul %419, %334, %cst_193 {dimension_numbers = #tpu.dot_dimension_numbers<[1], [0], [0], [1], [0, 0, 1, 1], [], []>} : vector<8x32xf32>, vector<32x128xf32>, vector<8x128xf32> -> vector<8x128xf32>
    %421 = arith.addf %418, %420 : vector<8x128xf32>
    %422 = vector.broadcast %336 : vector<1x128xf32> to vector<8x128xf32>
    %423 = arith.addf %421, %422 : vector<8x128xf32>
    %424 = vector.extract_strided_slice %423 {offsets = [0, 0], sizes = [8, 32], strides = [1, 1]} : vector<8x128xf32> to vector<8x32xf32>
    %425 = arith.negf %424 : vector<8x32xf32>
    %426 = math.exp %425 : vector<8x32xf32>
    %cst_194 = arith.constant 1.000000e+00 : f32
    %427 = vector.broadcast %cst_194 : f32 to vector<8x32xf32>
    %428 = arith.addf %427, %426 : vector<8x32xf32>
    %429 = arith.divf %427, %428 : vector<8x32xf32>
    %430 = vector.extract_strided_slice %423 {offsets = [0, 32], sizes = [8, 32], strides = [1, 1]} : vector<8x128xf32> to vector<8x32xf32>
    %431 = arith.negf %430 : vector<8x32xf32>
    %432 = math.exp %431 : vector<8x32xf32>
    %cst_195 = arith.constant 1.000000e+00 : f32
    %433 = vector.broadcast %cst_195 : f32 to vector<8x32xf32>
    %434 = arith.addf %433, %432 : vector<8x32xf32>
    %435 = arith.divf %433, %434 : vector<8x32xf32>
    %436 = vector.extract_strided_slice %423 {offsets = [0, 64], sizes = [8, 32], strides = [1, 1]} : vector<8x128xf32> to vector<8x32xf32>
    %437 = math.tanh %436 : vector<8x32xf32>
    %438 = vector.extract_strided_slice %423 {offsets = [0, 96], sizes = [8, 32], strides = [1, 1]} : vector<8x128xf32> to vector<8x32xf32>
    %439 = arith.negf %438 : vector<8x32xf32>
    %440 = math.exp %439 : vector<8x32xf32>
    %cst_196 = arith.constant 1.000000e+00 : f32
    %441 = vector.broadcast %cst_196 : f32 to vector<8x32xf32>
    %442 = arith.addf %441, %440 : vector<8x32xf32>
    %443 = arith.divf %441, %442 : vector<8x32xf32>
    %c0_197 = arith.constant 0 : index
    %c0_198 = arith.constant 0 : index
    %444 = vector.load %arg11[%c0_197, %c0_198] : memref<8x32xf32, #tpu.memory_space<vmem>>, vector<8x32xf32>
    %445 = arith.mulf %435, %444 : vector<8x32xf32>
    %446 = arith.mulf %429, %437 : vector<8x32xf32>
    %447 = arith.addf %445, %446 : vector<8x32xf32>
    %448 = math.tanh %447 : vector<8x32xf32>
    %449 = arith.mulf %443, %448 : vector<8x32xf32>
    %c0_199 = arith.constant 0 : index
    %c0_200 = arith.constant 0 : index
    %450 = vector.load %arg10[%c0_199, %c0_200] : memref<8x32xf32, #tpu.memory_space<vmem>>, vector<8x32xf32>
    tpu.vector_store %arg10[%c0_199, %c0_200], %449 {strides = array<i32>} : memref<8x32xf32, #tpu.memory_space<vmem>>, vector<8x32xf32>,
    %c0_201 = arith.constant 0 : index
    %c0_202 = arith.constant 0 : index
    %451 = vector.load %arg11[%c0_201, %c0_202] : memref<8x32xf32, #tpu.memory_space<vmem>>, vector<8x32xf32>
    tpu.vector_store %arg11[%c0_201, %c0_202], %447 {strides = array<i32>} : memref<8x32xf32, #tpu.memory_space<vmem>>, vector<8x32xf32>,
    %452 = arith.index_cast %416 : i32 to index
    %c0_203 = arith.constant 0 : index
    %453 = vector.load %arg8[%452, %c0_203] : memref<64x32xf32, #tpu.memory_space<vmem>>, vector<8x32xf32>
    tpu.vector_store %arg8[%452, %c0_203], %449 {strides = array<i32>} : memref<64x32xf32, #tpu.memory_space<vmem>>, vector<8x32xf32>,
    %c3_i32_204 = arith.constant 3 : i32
    %c8_i32_205 = arith.constant 8 : i32
    %454 = arith.muli %c3_i32_204, %c8_i32_205 : i32
    %455 = tpu.assume_multiple %454, 8 : i32
    %456 = arith.index_cast %455 : i32 to index
    %c0_206 = arith.constant 0 : index
    %457 = vector.load %arg9[%456, %c0_206] : memref<64x128xf32, #tpu.memory_space<vmem>>, vector<8x128xf32>
    %c0_207 = arith.constant 0 : index
    %c0_208 = arith.constant 0 : index
    %458 = vector.load %arg10[%c0_207, %c0_208] : memref<8x32xf32, #tpu.memory_space<vmem>>, vector<8x32xf32>
    %cst_209 = arith.constant dense<0.000000e+00> : vector<8x128xf32>
    %459 = tpu.matmul %458, %334, %cst_209 {dimension_numbers = #tpu.dot_dimension_numbers<[1], [0], [0], [1], [0, 0, 1, 1], [], []>} : vector<8x32xf32>, vector<32x128xf32>, vector<8x128xf32> -> vector<8x128xf32>
    %460 = arith.addf %457, %459 : vector<8x128xf32>
    %461 = vector.broadcast %336 : vector<1x128xf32> to vector<8x128xf32>
    %462 = arith.addf %460, %461 : vector<8x128xf32>
    %463 = vector.extract_strided_slice %462 {offsets = [0, 0], sizes = [8, 32], strides = [1, 1]} : vector<8x128xf32> to vector<8x32xf32>
    %464 = arith.negf %463 : vector<8x32xf32>
    %465 = math.exp %464 : vector<8x32xf32>
    %cst_210 = arith.constant 1.000000e+00 : f32
    %466 = vector.broadcast %cst_210 : f32 to vector<8x32xf32>
    %467 = arith.addf %466, %465 : vector<8x32xf32>
    %468 = arith.divf %466, %467 : vector<8x32xf32>
    %469 = vector.extract_strided_slice %462 {offsets = [0, 32], sizes = [8, 32], strides = [1, 1]} : vector<8x128xf32> to vector<8x32xf32>
    %470 = arith.negf %469 : vector<8x32xf32>
    %471 = math.exp %470 : vector<8x32xf32>
    %cst_211 = arith.constant 1.000000e+00 : f32
    %472 = vector.broadcast %cst_211 : f32 to vector<8x32xf32>
    %473 = arith.addf %472, %471 : vector<8x32xf32>
    %474 = arith.divf %472, %473 : vector<8x32xf32>
    %475 = vector.extract_strided_slice %462 {offsets = [0, 64], sizes = [8, 32], strides = [1, 1]} : vector<8x128xf32> to vector<8x32xf32>
    %476 = math.tanh %475 : vector<8x32xf32>
    %477 = vector.extract_strided_slice %462 {offsets = [0, 96], sizes = [8, 32], strides = [1, 1]} : vector<8x128xf32> to vector<8x32xf32>
    %478 = arith.negf %477 : vector<8x32xf32>
    %479 = math.exp %478 : vector<8x32xf32>
    %cst_212 = arith.constant 1.000000e+00 : f32
    %480 = vector.broadcast %cst_212 : f32 to vector<8x32xf32>
    %481 = arith.addf %480, %479 : vector<8x32xf32>
    %482 = arith.divf %480, %481 : vector<8x32xf32>
    %c0_213 = arith.constant 0 : index
    %c0_214 = arith.constant 0 : index
    %483 = vector.load %arg11[%c0_213, %c0_214] : memref<8x32xf32, #tpu.memory_space<vmem>>, vector<8x32xf32>
    %484 = arith.mulf %474, %483 : vector<8x32xf32>
    %485 = arith.mulf %468, %476 : vector<8x32xf32>
    %486 = arith.addf %484, %485 : vector<8x32xf32>
    %487 = math.tanh %486 : vector<8x32xf32>
    %488 = arith.mulf %482, %487 : vector<8x32xf32>
    %c0_215 = arith.constant 0 : index
    %c0_216 = arith.constant 0 : index
    %489 = vector.load %arg10[%c0_215, %c0_216] : memref<8x32xf32, #tpu.memory_space<vmem>>, vector<8x32xf32>
    tpu.vector_store %arg10[%c0_215, %c0_216], %488 {strides = array<i32>} : memref<8x32xf32, #tpu.memory_space<vmem>>, vector<8x32xf32>,
    %c0_217 = arith.constant 0 : index
    %c0_218 = arith.constant 0 : index
    %490 = vector.load %arg11[%c0_217, %c0_218] : memref<8x32xf32, #tpu.memory_space<vmem>>, vector<8x32xf32>
    tpu.vector_store %arg11[%c0_217, %c0_218], %486 {strides = array<i32>} : memref<8x32xf32, #tpu.memory_space<vmem>>, vector<8x32xf32>,
    %491 = arith.index_cast %455 : i32 to index
    %c0_219 = arith.constant 0 : index
    %492 = vector.load %arg8[%491, %c0_219] : memref<64x32xf32, #tpu.memory_space<vmem>>, vector<8x32xf32>
    tpu.vector_store %arg8[%491, %c0_219], %488 {strides = array<i32>} : memref<64x32xf32, #tpu.memory_space<vmem>>, vector<8x32xf32>,
    %c4_i32_220 = arith.constant 4 : i32
    %c8_i32_221 = arith.constant 8 : i32
    %493 = arith.muli %c4_i32_220, %c8_i32_221 : i32
    %494 = tpu.assume_multiple %493, 8 : i32
    %495 = arith.index_cast %494 : i32 to index
    %c0_222 = arith.constant 0 : index
    %496 = vector.load %arg9[%495, %c0_222] : memref<64x128xf32, #tpu.memory_space<vmem>>, vector<8x128xf32>
    %c0_223 = arith.constant 0 : index
    %c0_224 = arith.constant 0 : index
    %497 = vector.load %arg10[%c0_223, %c0_224] : memref<8x32xf32, #tpu.memory_space<vmem>>, vector<8x32xf32>
    %cst_225 = arith.constant dense<0.000000e+00> : vector<8x128xf32>
    %498 = tpu.matmul %497, %334, %cst_225 {dimension_numbers = #tpu.dot_dimension_numbers<[1], [0], [0], [1], [0, 0, 1, 1], [], []>} : vector<8x32xf32>, vector<32x128xf32>, vector<8x128xf32> -> vector<8x128xf32>
    %499 = arith.addf %496, %498 : vector<8x128xf32>
    %500 = vector.broadcast %336 : vector<1x128xf32> to vector<8x128xf32>
    %501 = arith.addf %499, %500 : vector<8x128xf32>
    %502 = vector.extract_strided_slice %501 {offsets = [0, 0], sizes = [8, 32], strides = [1, 1]} : vector<8x128xf32> to vector<8x32xf32>
    %503 = arith.negf %502 : vector<8x32xf32>
    %504 = math.exp %503 : vector<8x32xf32>
    %cst_226 = arith.constant 1.000000e+00 : f32
    %505 = vector.broadcast %cst_226 : f32 to vector<8x32xf32>
    %506 = arith.addf %505, %504 : vector<8x32xf32>
    %507 = arith.divf %505, %506 : vector<8x32xf32>
    %508 = vector.extract_strided_slice %501 {offsets = [0, 32], sizes = [8, 32], strides = [1, 1]} : vector<8x128xf32> to vector<8x32xf32>
    %509 = arith.negf %508 : vector<8x32xf32>
    %510 = math.exp %509 : vector<8x32xf32>
    %cst_227 = arith.constant 1.000000e+00 : f32
    %511 = vector.broadcast %cst_227 : f32 to vector<8x32xf32>
    %512 = arith.addf %511, %510 : vector<8x32xf32>
    %513 = arith.divf %511, %512 : vector<8x32xf32>
    %514 = vector.extract_strided_slice %501 {offsets = [0, 64], sizes = [8, 32], strides = [1, 1]} : vector<8x128xf32> to vector<8x32xf32>
    %515 = math.tanh %514 : vector<8x32xf32>
    %516 = vector.extract_strided_slice %501 {offsets = [0, 96], sizes = [8, 32], strides = [1, 1]} : vector<8x128xf32> to vector<8x32xf32>
    %517 = arith.negf %516 : vector<8x32xf32>
    %518 = math.exp %517 : vector<8x32xf32>
    %cst_228 = arith.constant 1.000000e+00 : f32
    %519 = vector.broadcast %cst_228 : f32 to vector<8x32xf32>
    %520 = arith.addf %519, %518 : vector<8x32xf32>
    %521 = arith.divf %519, %520 : vector<8x32xf32>
    %c0_229 = arith.constant 0 : index
    %c0_230 = arith.constant 0 : index
    %522 = vector.load %arg11[%c0_229, %c0_230] : memref<8x32xf32, #tpu.memory_space<vmem>>, vector<8x32xf32>
    %523 = arith.mulf %513, %522 : vector<8x32xf32>
    %524 = arith.mulf %507, %515 : vector<8x32xf32>
    %525 = arith.addf %523, %524 : vector<8x32xf32>
    %526 = math.tanh %525 : vector<8x32xf32>
    %527 = arith.mulf %521, %526 : vector<8x32xf32>
    %c0_231 = arith.constant 0 : index
    %c0_232 = arith.constant 0 : index
    %528 = vector.load %arg10[%c0_231, %c0_232] : memref<8x32xf32, #tpu.memory_space<vmem>>, vector<8x32xf32>
    tpu.vector_store %arg10[%c0_231, %c0_232], %527 {strides = array<i32>} : memref<8x32xf32, #tpu.memory_space<vmem>>, vector<8x32xf32>,
    %c0_233 = arith.constant 0 : index
    %c0_234 = arith.constant 0 : index
    %529 = vector.load %arg11[%c0_233, %c0_234] : memref<8x32xf32, #tpu.memory_space<vmem>>, vector<8x32xf32>
    tpu.vector_store %arg11[%c0_233, %c0_234], %525 {strides = array<i32>} : memref<8x32xf32, #tpu.memory_space<vmem>>, vector<8x32xf32>,
    %530 = arith.index_cast %494 : i32 to index
    %c0_235 = arith.constant 0 : index
    %531 = vector.load %arg8[%530, %c0_235] : memref<64x32xf32, #tpu.memory_space<vmem>>, vector<8x32xf32>
    tpu.vector_store %arg8[%530, %c0_235], %527 {strides = array<i32>} : memref<64x32xf32, #tpu.memory_space<vmem>>, vector<8x32xf32>,
    %c5_i32_236 = arith.constant 5 : i32
    %c8_i32_237 = arith.constant 8 : i32
    %532 = arith.muli %c5_i32_236, %c8_i32_237 : i32
    %533 = tpu.assume_multiple %532, 8 : i32
    %534 = arith.index_cast %533 : i32 to index
    %c0_238 = arith.constant 0 : index
    %535 = vector.load %arg9[%534, %c0_238] : memref<64x128xf32, #tpu.memory_space<vmem>>, vector<8x128xf32>
    %c0_239 = arith.constant 0 : index
    %c0_240 = arith.constant 0 : index
    %536 = vector.load %arg10[%c0_239, %c0_240] : memref<8x32xf32, #tpu.memory_space<vmem>>, vector<8x32xf32>
    %cst_241 = arith.constant dense<0.000000e+00> : vector<8x128xf32>
    %537 = tpu.matmul %536, %334, %cst_241 {dimension_numbers = #tpu.dot_dimension_numbers<[1], [0], [0], [1], [0, 0, 1, 1], [], []>} : vector<8x32xf32>, vector<32x128xf32>, vector<8x128xf32> -> vector<8x128xf32>
    %538 = arith.addf %535, %537 : vector<8x128xf32>
    %539 = vector.broadcast %336 : vector<1x128xf32> to vector<8x128xf32>
    %540 = arith.addf %538, %539 : vector<8x128xf32>
    %541 = vector.extract_strided_slice %540 {offsets = [0, 0], sizes = [8, 32], strides = [1, 1]} : vector<8x128xf32> to vector<8x32xf32>
    %542 = arith.negf %541 : vector<8x32xf32>
    %543 = math.exp %542 : vector<8x32xf32>
    %cst_242 = arith.constant 1.000000e+00 : f32
    %544 = vector.broadcast %cst_242 : f32 to vector<8x32xf32>
    %545 = arith.addf %544, %543 : vector<8x32xf32>
    %546 = arith.divf %544, %545 : vector<8x32xf32>
    %547 = vector.extract_strided_slice %540 {offsets = [0, 32], sizes = [8, 32], strides = [1, 1]} : vector<8x128xf32> to vector<8x32xf32>
    %548 = arith.negf %547 : vector<8x32xf32>
    %549 = math.exp %548 : vector<8x32xf32>
    %cst_243 = arith.constant 1.000000e+00 : f32
    %550 = vector.broadcast %cst_243 : f32 to vector<8x32xf32>
    %551 = arith.addf %550, %549 : vector<8x32xf32>
    %552 = arith.divf %550, %551 : vector<8x32xf32>
    %553 = vector.extract_strided_slice %540 {offsets = [0, 64], sizes = [8, 32], strides = [1, 1]} : vector<8x128xf32> to vector<8x32xf32>
    %554 = math.tanh %553 : vector<8x32xf32>
    %555 = vector.extract_strided_slice %540 {offsets = [0, 96], sizes = [8, 32], strides = [1, 1]} : vector<8x128xf32> to vector<8x32xf32>
    %556 = arith.negf %555 : vector<8x32xf32>
    %557 = math.exp %556 : vector<8x32xf32>
    %cst_244 = arith.constant 1.000000e+00 : f32
    %558 = vector.broadcast %cst_244 : f32 to vector<8x32xf32>
    %559 = arith.addf %558, %557 : vector<8x32xf32>
    %560 = arith.divf %558, %559 : vector<8x32xf32>
    %c0_245 = arith.constant 0 : index
    %c0_246 = arith.constant 0 : index
    %561 = vector.load %arg11[%c0_245, %c0_246] : memref<8x32xf32, #tpu.memory_space<vmem>>, vector<8x32xf32>
    %562 = arith.mulf %552, %561 : vector<8x32xf32>
    %563 = arith.mulf %546, %554 : vector<8x32xf32>
    %564 = arith.addf %562, %563 : vector<8x32xf32>
    %565 = math.tanh %564 : vector<8x32xf32>
    %566 = arith.mulf %560, %565 : vector<8x32xf32>
    %c0_247 = arith.constant 0 : index
    %c0_248 = arith.constant 0 : index
    %567 = vector.load %arg10[%c0_247, %c0_248] : memref<8x32xf32, #tpu.memory_space<vmem>>, vector<8x32xf32>
    tpu.vector_store %arg10[%c0_247, %c0_248], %566 {strides = array<i32>} : memref<8x32xf32, #tpu.memory_space<vmem>>, vector<8x32xf32>,
    %c0_249 = arith.constant 0 : index
    %c0_250 = arith.constant 0 : index
    %568 = vector.load %arg11[%c0_249, %c0_250] : memref<8x32xf32, #tpu.memory_space<vmem>>, vector<8x32xf32>
    tpu.vector_store %arg11[%c0_249, %c0_250], %564 {strides = array<i32>} : memref<8x32xf32, #tpu.memory_space<vmem>>, vector<8x32xf32>,
    %569 = arith.index_cast %533 : i32 to index
    %c0_251 = arith.constant 0 : index
    %570 = vector.load %arg8[%569, %c0_251] : memref<64x32xf32, #tpu.memory_space<vmem>>, vector<8x32xf32>
    tpu.vector_store %arg8[%569, %c0_251], %566 {strides = array<i32>} : memref<64x32xf32, #tpu.memory_space<vmem>>, vector<8x32xf32>,
    %c6_i32_252 = arith.constant 6 : i32
    %c8_i32_253 = arith.constant 8 : i32
    %571 = arith.muli %c6_i32_252, %c8_i32_253 : i32
    %572 = tpu.assume_multiple %571, 8 : i32
    %573 = arith.index_cast %572 : i32 to index
    %c0_254 = arith.constant 0 : index
    %574 = vector.load %arg9[%573, %c0_254] : memref<64x128xf32, #tpu.memory_space<vmem>>, vector<8x128xf32>
    %c0_255 = arith.constant 0 : index
    %c0_256 = arith.constant 0 : index
    %575 = vector.load %arg10[%c0_255, %c0_256] : memref<8x32xf32, #tpu.memory_space<vmem>>, vector<8x32xf32>
    %cst_257 = arith.constant dense<0.000000e+00> : vector<8x128xf32>
    %576 = tpu.matmul %575, %334, %cst_257 {dimension_numbers = #tpu.dot_dimension_numbers<[1], [0], [0], [1], [0, 0, 1, 1], [], []>} : vector<8x32xf32>, vector<32x128xf32>, vector<8x128xf32> -> vector<8x128xf32>
    %577 = arith.addf %574, %576 : vector<8x128xf32>
    %578 = vector.broadcast %336 : vector<1x128xf32> to vector<8x128xf32>
    %579 = arith.addf %577, %578 : vector<8x128xf32>
    %580 = vector.extract_strided_slice %579 {offsets = [0, 0], sizes = [8, 32], strides = [1, 1]} : vector<8x128xf32> to vector<8x32xf32>
    %581 = arith.negf %580 : vector<8x32xf32>
    %582 = math.exp %581 : vector<8x32xf32>
    %cst_258 = arith.constant 1.000000e+00 : f32
    %583 = vector.broadcast %cst_258 : f32 to vector<8x32xf32>
    %584 = arith.addf %583, %582 : vector<8x32xf32>
    %585 = arith.divf %583, %584 : vector<8x32xf32>
    %586 = vector.extract_strided_slice %579 {offsets = [0, 32], sizes = [8, 32], strides = [1, 1]} : vector<8x128xf32> to vector<8x32xf32>
    %587 = arith.negf %586 : vector<8x32xf32>
    %588 = math.exp %587 : vector<8x32xf32>
    %cst_259 = arith.constant 1.000000e+00 : f32
    %589 = vector.broadcast %cst_259 : f32 to vector<8x32xf32>
    %590 = arith.addf %589, %588 : vector<8x32xf32>
    %591 = arith.divf %589, %590 : vector<8x32xf32>
    %592 = vector.extract_strided_slice %579 {offsets = [0, 64], sizes = [8, 32], strides = [1, 1]} : vector<8x128xf32> to vector<8x32xf32>
    %593 = math.tanh %592 : vector<8x32xf32>
    %594 = vector.extract_strided_slice %579 {offsets = [0, 96], sizes = [8, 32], strides = [1, 1]} : vector<8x128xf32> to vector<8x32xf32>
    %595 = arith.negf %594 : vector<8x32xf32>
    %596 = math.exp %595 : vector<8x32xf32>
    %cst_260 = arith.constant 1.000000e+00 : f32
    %597 = vector.broadcast %cst_260 : f32 to vector<8x32xf32>
    %598 = arith.addf %597, %596 : vector<8x32xf32>
    %599 = arith.divf %597, %598 : vector<8x32xf32>
    %c0_261 = arith.constant 0 : index
    %c0_262 = arith.constant 0 : index
    %600 = vector.load %arg11[%c0_261, %c0_262] : memref<8x32xf32, #tpu.memory_space<vmem>>, vector<8x32xf32>
    %601 = arith.mulf %591, %600 : vector<8x32xf32>
    %602 = arith.mulf %585, %593 : vector<8x32xf32>
    %603 = arith.addf %601, %602 : vector<8x32xf32>
    %604 = math.tanh %603 : vector<8x32xf32>
    %605 = arith.mulf %599, %604 : vector<8x32xf32>
    %c0_263 = arith.constant 0 : index
    %c0_264 = arith.constant 0 : index
    %606 = vector.load %arg10[%c0_263, %c0_264] : memref<8x32xf32, #tpu.memory_space<vmem>>, vector<8x32xf32>
    tpu.vector_store %arg10[%c0_263, %c0_264], %605 {strides = array<i32>} : memref<8x32xf32, #tpu.memory_space<vmem>>, vector<8x32xf32>,
    %c0_265 = arith.constant 0 : index
    %c0_266 = arith.constant 0 : index
    %607 = vector.load %arg11[%c0_265, %c0_266] : memref<8x32xf32, #tpu.memory_space<vmem>>, vector<8x32xf32>
    tpu.vector_store %arg11[%c0_265, %c0_266], %603 {strides = array<i32>} : memref<8x32xf32, #tpu.memory_space<vmem>>, vector<8x32xf32>,
    %608 = arith.index_cast %572 : i32 to index
    %c0_267 = arith.constant 0 : index
    %609 = vector.load %arg8[%608, %c0_267] : memref<64x32xf32, #tpu.memory_space<vmem>>, vector<8x32xf32>
    tpu.vector_store %arg8[%608, %c0_267], %605 {strides = array<i32>} : memref<64x32xf32, #tpu.memory_space<vmem>>, vector<8x32xf32>,
    %c7_i32_268 = arith.constant 7 : i32
    %c8_i32_269 = arith.constant 8 : i32
    %610 = arith.muli %c7_i32_268, %c8_i32_269 : i32
    %611 = tpu.assume_multiple %610, 8 : i32
    %612 = arith.index_cast %611 : i32 to index
    %c0_270 = arith.constant 0 : index
    %613 = vector.load %arg9[%612, %c0_270] : memref<64x128xf32, #tpu.memory_space<vmem>>, vector<8x128xf32>
    %c0_271 = arith.constant 0 : index
    %c0_272 = arith.constant 0 : index
    %614 = vector.load %arg10[%c0_271, %c0_272] : memref<8x32xf32, #tpu.memory_space<vmem>>, vector<8x32xf32>
    %cst_273 = arith.constant dense<0.000000e+00> : vector<8x128xf32>
    %615 = tpu.matmul %614, %334, %cst_273 {dimension_numbers = #tpu.dot_dimension_numbers<[1], [0], [0], [1], [0, 0, 1, 1], [], []>} : vector<8x32xf32>, vector<32x128xf32>, vector<8x128xf32> -> vector<8x128xf32>
    %616 = arith.addf %613, %615 : vector<8x128xf32>
    %617 = vector.broadcast %336 : vector<1x128xf32> to vector<8x128xf32>
    %618 = arith.addf %616, %617 : vector<8x128xf32>
    %619 = vector.extract_strided_slice %618 {offsets = [0, 0], sizes = [8, 32], strides = [1, 1]} : vector<8x128xf32> to vector<8x32xf32>
    %620 = arith.negf %619 : vector<8x32xf32>
    %621 = math.exp %620 : vector<8x32xf32>
    %cst_274 = arith.constant 1.000000e+00 : f32
    %622 = vector.broadcast %cst_274 : f32 to vector<8x32xf32>
    %623 = arith.addf %622, %621 : vector<8x32xf32>
    %624 = arith.divf %622, %623 : vector<8x32xf32>
    %625 = vector.extract_strided_slice %618 {offsets = [0, 32], sizes = [8, 32], strides = [1, 1]} : vector<8x128xf32> to vector<8x32xf32>
    %626 = arith.negf %625 : vector<8x32xf32>
    %627 = math.exp %626 : vector<8x32xf32>
    %cst_275 = arith.constant 1.000000e+00 : f32
    %628 = vector.broadcast %cst_275 : f32 to vector<8x32xf32>
    %629 = arith.addf %628, %627 : vector<8x32xf32>
    %630 = arith.divf %628, %629 : vector<8x32xf32>
    %631 = vector.extract_strided_slice %618 {offsets = [0, 64], sizes = [8, 32], strides = [1, 1]} : vector<8x128xf32> to vector<8x32xf32>
    %632 = math.tanh %631 : vector<8x32xf32>
    %633 = vector.extract_strided_slice %618 {offsets = [0, 96], sizes = [8, 32], strides = [1, 1]} : vector<8x128xf32> to vector<8x32xf32>
    %634 = arith.negf %633 : vector<8x32xf32>
    %635 = math.exp %634 : vector<8x32xf32>
    %cst_276 = arith.constant 1.000000e+00 : f32
    %636 = vector.broadcast %cst_276 : f32 to vector<8x32xf32>
    %637 = arith.addf %636, %635 : vector<8x32xf32>
    %638 = arith.divf %636, %637 : vector<8x32xf32>
    %c0_277 = arith.constant 0 : index
    %c0_278 = arith.constant 0 : index
    %639 = vector.load %arg11[%c0_277, %c0_278] : memref<8x32xf32, #tpu.memory_space<vmem>>, vector<8x32xf32>
    %640 = arith.mulf %630, %639 : vector<8x32xf32>
    %641 = arith.mulf %624, %632 : vector<8x32xf32>
    %642 = arith.addf %640, %641 : vector<8x32xf32>
    %643 = math.tanh %642 : vector<8x32xf32>
    %644 = arith.mulf %638, %643 : vector<8x32xf32>
    %c0_279 = arith.constant 0 : index
    %c0_280 = arith.constant 0 : index
    %645 = vector.load %arg10[%c0_279, %c0_280] : memref<8x32xf32, #tpu.memory_space<vmem>>, vector<8x32xf32>
    tpu.vector_store %arg10[%c0_279, %c0_280], %644 {strides = array<i32>} : memref<8x32xf32, #tpu.memory_space<vmem>>, vector<8x32xf32>,
    %c0_281 = arith.constant 0 : index
    %c0_282 = arith.constant 0 : index
    %646 = vector.load %arg11[%c0_281, %c0_282] : memref<8x32xf32, #tpu.memory_space<vmem>>, vector<8x32xf32>
    tpu.vector_store %arg11[%c0_281, %c0_282], %642 {strides = array<i32>} : memref<8x32xf32, #tpu.memory_space<vmem>>, vector<8x32xf32>,
    %647 = arith.index_cast %611 : i32 to index
    %c0_283 = arith.constant 0 : index
    %648 = vector.load %arg8[%647, %c0_283] : memref<64x32xf32, #tpu.memory_space<vmem>>, vector<8x32xf32>
    tpu.vector_store %arg8[%647, %c0_283], %644 {strides = array<i32>} : memref<64x32xf32, #tpu.memory_space<vmem>>, vector<8x32xf32>,
    %c8_i32_284 = arith.constant 8 : i32
    %c0_285 = arith.constant 0 : index
    %c0_286 = arith.constant 0 : index
    %649 = vector.load %arg8[%c0_285, %c0_286] : memref<64x32xf32, #tpu.memory_space<vmem>>, vector<64x32xf32>
    %c1_287 = arith.constant 1 : index
    %c0_288 = arith.constant 0 : index
    %c0_289 = arith.constant 0 : index
    %650 = vector.load %arg2[%c1_287, %c0_288, %c0_289] : memref<2x32x128xf32, #tpu.memory_space<vmem>>, vector<1x32x128xf32>
    %651 = vector.shape_cast %650 : vector<1x32x128xf32> to vector<32x128xf32>
    %cst_290 = arith.constant dense<0.000000e+00> : vector<64x128xf32>
    %652 = tpu.matmul %649, %651, %cst_290 {dimension_numbers = #tpu.dot_dimension_numbers<[1], [0], [0], [1], [0, 0, 1, 1], [], []>} : vector<64x32xf32>, vector<32x128xf32>, vector<64x128xf32> -> vector<64x128xf32>
    %c0_291 = arith.constant 0 : index
    %c0_292 = arith.constant 0 : index
    %653 = vector.load %arg9[%c0_291, %c0_292] : memref<64x128xf32, #tpu.memory_space<vmem>>, vector<64x128xf32>
    tpu.vector_store %arg9[%c0_291, %c0_292], %652 {strides = array<i32>} : memref<64x128xf32, #tpu.memory_space<vmem>>, vector<64x128xf32>,
    %cst_293 = arith.constant 0.000000e+00 : f32
    %654 = vector.broadcast %cst_293 : f32 to vector<8x32xf32>
    %c0_294 = arith.constant 0 : index
    %c0_295 = arith.constant 0 : index
    %655 = vector.load %arg10[%c0_294, %c0_295] : memref<8x32xf32, #tpu.memory_space<vmem>>, vector<8x32xf32>
    tpu.vector_store %arg10[%c0_294, %c0_295], %654 {strides = array<i32>} : memref<8x32xf32, #tpu.memory_space<vmem>>, vector<8x32xf32>,
    %cst_296 = arith.constant 0.000000e+00 : f32
    %656 = vector.broadcast %cst_296 : f32 to vector<8x32xf32>
    %c0_297 = arith.constant 0 : index
    %c0_298 = arith.constant 0 : index
    %657 = vector.load %arg11[%c0_297, %c0_298] : memref<8x32xf32, #tpu.memory_space<vmem>>, vector<8x32xf32>
    tpu.vector_store %arg11[%c0_297, %c0_298], %656 {strides = array<i32>} : memref<8x32xf32, #tpu.memory_space<vmem>>, vector<8x32xf32>,
    %c2 = arith.constant 2 : index
    %c0_299 = arith.constant 0 : index
    %c0_300 = arith.constant 0 : index
    %658 = vector.load %arg3[%c2, %c0_299, %c0_300] : memref<3x32x128xf32, #tpu.memory_space<vmem>>, vector<1x32x128xf32>
    %659 = vector.shape_cast %658 : vector<1x32x128xf32> to vector<32x128xf32>
    %c2_301 = arith.constant 2 : index
    %c0_302 = arith.constant 0 : index
    %c0_303 = arith.constant 0 : index
    %660 = vector.load %arg4[%c2_301, %c0_302, %c0_303] : memref<3x1x128xf32, #tpu.memory_space<vmem>>, vector<1x1x128xf32>
    %661 = vector.shape_cast %660 : vector<1x1x128xf32> to vector<1x128xf32>
    %c0_i32_304 = arith.constant 0 : i32
    %c8_i32_305 = arith.constant 8 : i32
    %662 = arith.muli %c0_i32_304, %c8_i32_305 : i32
    %663 = tpu.assume_multiple %662, 8 : i32
    %664 = arith.index_cast %663 : i32 to index
    %c0_306 = arith.constant 0 : index
    %665 = vector.load %arg9[%664, %c0_306] : memref<64x128xf32, #tpu.memory_space<vmem>>, vector<8x128xf32>
    %c0_307 = arith.constant 0 : index
    %c0_308 = arith.constant 0 : index
    %666 = vector.load %arg10[%c0_307, %c0_308] : memref<8x32xf32, #tpu.memory_space<vmem>>, vector<8x32xf32>
    %cst_309 = arith.constant dense<0.000000e+00> : vector<8x128xf32>
    %667 = tpu.matmul %666, %659, %cst_309 {dimension_numbers = #tpu.dot_dimension_numbers<[1], [0], [0], [1], [0, 0, 1, 1], [], []>} : vector<8x32xf32>, vector<32x128xf32>, vector<8x128xf32> -> vector<8x128xf32>
    %668 = arith.addf %665, %667 : vector<8x128xf32>
    %669 = vector.broadcast %661 : vector<1x128xf32> to vector<8x128xf32>
    %670 = arith.addf %668, %669 : vector<8x128xf32>
    %671 = vector.extract_strided_slice %670 {offsets = [0, 0], sizes = [8, 32], strides = [1, 1]} : vector<8x128xf32> to vector<8x32xf32>
    %672 = arith.negf %671 : vector<8x32xf32>
    %673 = math.exp %672 : vector<8x32xf32>
    %cst_310 = arith.constant 1.000000e+00 : f32
    %674 = vector.broadcast %cst_310 : f32 to vector<8x32xf32>
    %675 = arith.addf %674, %673 : vector<8x32xf32>
    %676 = arith.divf %674, %675 : vector<8x32xf32>
    %677 = vector.extract_strided_slice %670 {offsets = [0, 32], sizes = [8, 32], strides = [1, 1]} : vector<8x128xf32> to vector<8x32xf32>
    %678 = arith.negf %677 : vector<8x32xf32>
    %679 = math.exp %678 : vector<8x32xf32>
    %cst_311 = arith.constant 1.000000e+00 : f32
    %680 = vector.broadcast %cst_311 : f32 to vector<8x32xf32>
    %681 = arith.addf %680, %679 : vector<8x32xf32>
    %682 = arith.divf %680, %681 : vector<8x32xf32>
    %683 = vector.extract_strided_slice %670 {offsets = [0, 64], sizes = [8, 32], strides = [1, 1]} : vector<8x128xf32> to vector<8x32xf32>
    %684 = math.tanh %683 : vector<8x32xf32>
    %685 = vector.extract_strided_slice %670 {offsets = [0, 96], sizes = [8, 32], strides = [1, 1]} : vector<8x128xf32> to vector<8x32xf32>
    %686 = arith.negf %685 : vector<8x32xf32>
    %687 = math.exp %686 : vector<8x32xf32>
    %cst_312 = arith.constant 1.000000e+00 : f32
    %688 = vector.broadcast %cst_312 : f32 to vector<8x32xf32>
    %689 = arith.addf %688, %687 : vector<8x32xf32>
    %690 = arith.divf %688, %689 : vector<8x32xf32>
    %c0_313 = arith.constant 0 : index
    %c0_314 = arith.constant 0 : index
    %691 = vector.load %arg11[%c0_313, %c0_314] : memref<8x32xf32, #tpu.memory_space<vmem>>, vector<8x32xf32>
    %692 = arith.mulf %682, %691 : vector<8x32xf32>
    %693 = arith.mulf %676, %684 : vector<8x32xf32>
    %694 = arith.addf %692, %693 : vector<8x32xf32>
    %695 = math.tanh %694 : vector<8x32xf32>
    %696 = arith.mulf %690, %695 : vector<8x32xf32>
    %c0_315 = arith.constant 0 : index
    %c0_316 = arith.constant 0 : index
    %697 = vector.load %arg10[%c0_315, %c0_316] : memref<8x32xf32, #tpu.memory_space<vmem>>, vector<8x32xf32>
    tpu.vector_store %arg10[%c0_315, %c0_316], %696 {strides = array<i32>} : memref<8x32xf32, #tpu.memory_space<vmem>>, vector<8x32xf32>,
    %c0_317 = arith.constant 0 : index
    %c0_318 = arith.constant 0 : index
    %698 = vector.load %arg11[%c0_317, %c0_318] : memref<8x32xf32, #tpu.memory_space<vmem>>, vector<8x32xf32>
    tpu.vector_store %arg11[%c0_317, %c0_318], %694 {strides = array<i32>} : memref<8x32xf32, #tpu.memory_space<vmem>>, vector<8x32xf32>,
    %699 = arith.index_cast %663 : i32 to index
    %c0_319 = arith.constant 0 : index
    %700 = vector.load %arg8[%699, %c0_319] : memref<64x32xf32, #tpu.memory_space<vmem>>, vector<8x32xf32>
    tpu.vector_store %arg8[%699, %c0_319], %696 {strides = array<i32>} : memref<64x32xf32, #tpu.memory_space<vmem>>, vector<8x32xf32>,
    %c1_i32_320 = arith.constant 1 : i32
    %c8_i32_321 = arith.constant 8 : i32
    %701 = arith.muli %c1_i32_320, %c8_i32_321 : i32
    %702 = tpu.assume_multiple %701, 8 : i32
    %703 = arith.index_cast %702 : i32 to index
    %c0_322 = arith.constant 0 : index
    %704 = vector.load %arg9[%703, %c0_322] : memref<64x128xf32, #tpu.memory_space<vmem>>, vector<8x128xf32>
    %c0_323 = arith.constant 0 : index
    %c0_324 = arith.constant 0 : index
    %705 = vector.load %arg10[%c0_323, %c0_324] : memref<8x32xf32, #tpu.memory_space<vmem>>, vector<8x32xf32>
    %cst_325 = arith.constant dense<0.000000e+00> : vector<8x128xf32>
    %706 = tpu.matmul %705, %659, %cst_325 {dimension_numbers = #tpu.dot_dimension_numbers<[1], [0], [0], [1], [0, 0, 1, 1], [], []>} : vector<8x32xf32>, vector<32x128xf32>, vector<8x128xf32> -> vector<8x128xf32>
    %707 = arith.addf %704, %706 : vector<8x128xf32>
    %708 = vector.broadcast %661 : vector<1x128xf32> to vector<8x128xf32>
    %709 = arith.addf %707, %708 : vector<8x128xf32>
    %710 = vector.extract_strided_slice %709 {offsets = [0, 0], sizes = [8, 32], strides = [1, 1]} : vector<8x128xf32> to vector<8x32xf32>
    %711 = arith.negf %710 : vector<8x32xf32>
    %712 = math.exp %711 : vector<8x32xf32>
    %cst_326 = arith.constant 1.000000e+00 : f32
    %713 = vector.broadcast %cst_326 : f32 to vector<8x32xf32>
    %714 = arith.addf %713, %712 : vector<8x32xf32>
    %715 = arith.divf %713, %714 : vector<8x32xf32>
    %716 = vector.extract_strided_slice %709 {offsets = [0, 32], sizes = [8, 32], strides = [1, 1]} : vector<8x128xf32> to vector<8x32xf32>
    %717 = arith.negf %716 : vector<8x32xf32>
    %718 = math.exp %717 : vector<8x32xf32>
    %cst_327 = arith.constant 1.000000e+00 : f32
    %719 = vector.broadcast %cst_327 : f32 to vector<8x32xf32>
    %720 = arith.addf %719, %718 : vector<8x32xf32>
    %721 = arith.divf %719, %720 : vector<8x32xf32>
    %722 = vector.extract_strided_slice %709 {offsets = [0, 64], sizes = [8, 32], strides = [1, 1]} : vector<8x128xf32> to vector<8x32xf32>
    %723 = math.tanh %722 : vector<8x32xf32>
    %724 = vector.extract_strided_slice %709 {offsets = [0, 96], sizes = [8, 32], strides = [1, 1]} : vector<8x128xf32> to vector<8x32xf32>
    %725 = arith.negf %724 : vector<8x32xf32>
    %726 = math.exp %725 : vector<8x32xf32>
    %cst_328 = arith.constant 1.000000e+00 : f32
    %727 = vector.broadcast %cst_328 : f32 to vector<8x32xf32>
    %728 = arith.addf %727, %726 : vector<8x32xf32>
    %729 = arith.divf %727, %728 : vector<8x32xf32>
    %c0_329 = arith.constant 0 : index
    %c0_330 = arith.constant 0 : index
    %730 = vector.load %arg11[%c0_329, %c0_330] : memref<8x32xf32, #tpu.memory_space<vmem>>, vector<8x32xf32>
    %731 = arith.mulf %721, %730 : vector<8x32xf32>
    %732 = arith.mulf %715, %723 : vector<8x32xf32>
    %733 = arith.addf %731, %732 : vector<8x32xf32>
    %734 = math.tanh %733 : vector<8x32xf32>
    %735 = arith.mulf %729, %734 : vector<8x32xf32>
    %c0_331 = arith.constant 0 : index
    %c0_332 = arith.constant 0 : index
    %736 = vector.load %arg10[%c0_331, %c0_332] : memref<8x32xf32, #tpu.memory_space<vmem>>, vector<8x32xf32>
    tpu.vector_store %arg10[%c0_331, %c0_332], %735 {strides = array<i32>} : memref<8x32xf32, #tpu.memory_space<vmem>>, vector<8x32xf32>,
    %c0_333 = arith.constant 0 : index
    %c0_334 = arith.constant 0 : index
    %737 = vector.load %arg11[%c0_333, %c0_334] : memref<8x32xf32, #tpu.memory_space<vmem>>, vector<8x32xf32>
    tpu.vector_store %arg11[%c0_333, %c0_334], %733 {strides = array<i32>} : memref<8x32xf32, #tpu.memory_space<vmem>>, vector<8x32xf32>,
    %738 = arith.index_cast %702 : i32 to index
    %c0_335 = arith.constant 0 : index
    %739 = vector.load %arg8[%738, %c0_335] : memref<64x32xf32, #tpu.memory_space<vmem>>, vector<8x32xf32>
    tpu.vector_store %arg8[%738, %c0_335], %735 {strides = array<i32>} : memref<64x32xf32, #tpu.memory_space<vmem>>, vector<8x32xf32>,
    %c2_i32_336 = arith.constant 2 : i32
    %c8_i32_337 = arith.constant 8 : i32
    %740 = arith.muli %c2_i32_336, %c8_i32_337 : i32
    %741 = tpu.assume_multiple %740, 8 : i32
    %742 = arith.index_cast %741 : i32 to index
    %c0_338 = arith.constant 0 : index
    %743 = vector.load %arg9[%742, %c0_338] : memref<64x128xf32, #tpu.memory_space<vmem>>, vector<8x128xf32>
    %c0_339 = arith.constant 0 : index
    %c0_340 = arith.constant 0 : index
    %744 = vector.load %arg10[%c0_339, %c0_340] : memref<8x32xf32, #tpu.memory_space<vmem>>, vector<8x32xf32>
    %cst_341 = arith.constant dense<0.000000e+00> : vector<8x128xf32>
    %745 = tpu.matmul %744, %659, %cst_341 {dimension_numbers = #tpu.dot_dimension_numbers<[1], [0], [0], [1], [0, 0, 1, 1], [], []>} : vector<8x32xf32>, vector<32x128xf32>, vector<8x128xf32> -> vector<8x128xf32>
    %746 = arith.addf %743, %745 : vector<8x128xf32>
    %747 = vector.broadcast %661 : vector<1x128xf32> to vector<8x128xf32>
    %748 = arith.addf %746, %747 : vector<8x128xf32>
    %749 = vector.extract_strided_slice %748 {offsets = [0, 0], sizes = [8, 32], strides = [1, 1]} : vector<8x128xf32> to vector<8x32xf32>
    %750 = arith.negf %749 : vector<8x32xf32>
    %751 = math.exp %750 : vector<8x32xf32>
    %cst_342 = arith.constant 1.000000e+00 : f32
    %752 = vector.broadcast %cst_342 : f32 to vector<8x32xf32>
    %753 = arith.addf %752, %751 : vector<8x32xf32>
    %754 = arith.divf %752, %753 : vector<8x32xf32>
    %755 = vector.extract_strided_slice %748 {offsets = [0, 32], sizes = [8, 32], strides = [1, 1]} : vector<8x128xf32> to vector<8x32xf32>
    %756 = arith.negf %755 : vector<8x32xf32>
    %757 = math.exp %756 : vector<8x32xf32>
    %cst_343 = arith.constant 1.000000e+00 : f32
    %758 = vector.broadcast %cst_343 : f32 to vector<8x32xf32>
    %759 = arith.addf %758, %757 : vector<8x32xf32>
    %760 = arith.divf %758, %759 : vector<8x32xf32>
    %761 = vector.extract_strided_slice %748 {offsets = [0, 64], sizes = [8, 32], strides = [1, 1]} : vector<8x128xf32> to vector<8x32xf32>
    %762 = math.tanh %761 : vector<8x32xf32>
    %763 = vector.extract_strided_slice %748 {offsets = [0, 96], sizes = [8, 32], strides = [1, 1]} : vector<8x128xf32> to vector<8x32xf32>
    %764 = arith.negf %763 : vector<8x32xf32>
    %765 = math.exp %764 : vector<8x32xf32>
    %cst_344 = arith.constant 1.000000e+00 : f32
    %766 = vector.broadcast %cst_344 : f32 to vector<8x32xf32>
    %767 = arith.addf %766, %765 : vector<8x32xf32>
    %768 = arith.divf %766, %767 : vector<8x32xf32>
    %c0_345 = arith.constant 0 : index
    %c0_346 = arith.constant 0 : index
    %769 = vector.load %arg11[%c0_345, %c0_346] : memref<8x32xf32, #tpu.memory_space<vmem>>, vector<8x32xf32>
    %770 = arith.mulf %760, %769 : vector<8x32xf32>
    %771 = arith.mulf %754, %762 : vector<8x32xf32>
    %772 = arith.addf %770, %771 : vector<8x32xf32>
    %773 = math.tanh %772 : vector<8x32xf32>
    %774 = arith.mulf %768, %773 : vector<8x32xf32>
    %c0_347 = arith.constant 0 : index
    %c0_348 = arith.constant 0 : index
    %775 = vector.load %arg10[%c0_347, %c0_348] : memref<8x32xf32, #tpu.memory_space<vmem>>, vector<8x32xf32>
    tpu.vector_store %arg10[%c0_347, %c0_348], %774 {strides = array<i32>} : memref<8x32xf32, #tpu.memory_space<vmem>>, vector<8x32xf32>,
    %c0_349 = arith.constant 0 : index
    %c0_350 = arith.constant 0 : index
    %776 = vector.load %arg11[%c0_349, %c0_350] : memref<8x32xf32, #tpu.memory_space<vmem>>, vector<8x32xf32>
    tpu.vector_store %arg11[%c0_349, %c0_350], %772 {strides = array<i32>} : memref<8x32xf32, #tpu.memory_space<vmem>>, vector<8x32xf32>,
    %777 = arith.index_cast %741 : i32 to index
    %c0_351 = arith.constant 0 : index
    %778 = vector.load %arg8[%777, %c0_351] : memref<64x32xf32, #tpu.memory_space<vmem>>, vector<8x32xf32>
    tpu.vector_store %arg8[%777, %c0_351], %774 {strides = array<i32>} : memref<64x32xf32, #tpu.memory_space<vmem>>, vector<8x32xf32>,
    %c3_i32_352 = arith.constant 3 : i32
    %c8_i32_353 = arith.constant 8 : i32
    %779 = arith.muli %c3_i32_352, %c8_i32_353 : i32
    %780 = tpu.assume_multiple %779, 8 : i32
    %781 = arith.index_cast %780 : i32 to index
    %c0_354 = arith.constant 0 : index
    %782 = vector.load %arg9[%781, %c0_354] : memref<64x128xf32, #tpu.memory_space<vmem>>, vector<8x128xf32>
    %c0_355 = arith.constant 0 : index
    %c0_356 = arith.constant 0 : index
    %783 = vector.load %arg10[%c0_355, %c0_356] : memref<8x32xf32, #tpu.memory_space<vmem>>, vector<8x32xf32>
    %cst_357 = arith.constant dense<0.000000e+00> : vector<8x128xf32>
    %784 = tpu.matmul %783, %659, %cst_357 {dimension_numbers = #tpu.dot_dimension_numbers<[1], [0], [0], [1], [0, 0, 1, 1], [], []>} : vector<8x32xf32>, vector<32x128xf32>, vector<8x128xf32> -> vector<8x128xf32>
    %785 = arith.addf %782, %784 : vector<8x128xf32>
    %786 = vector.broadcast %661 : vector<1x128xf32> to vector<8x128xf32>
    %787 = arith.addf %785, %786 : vector<8x128xf32>
    %788 = vector.extract_strided_slice %787 {offsets = [0, 0], sizes = [8, 32], strides = [1, 1]} : vector<8x128xf32> to vector<8x32xf32>
    %789 = arith.negf %788 : vector<8x32xf32>
    %790 = math.exp %789 : vector<8x32xf32>
    %cst_358 = arith.constant 1.000000e+00 : f32
    %791 = vector.broadcast %cst_358 : f32 to vector<8x32xf32>
    %792 = arith.addf %791, %790 : vector<8x32xf32>
    %793 = arith.divf %791, %792 : vector<8x32xf32>
    %794 = vector.extract_strided_slice %787 {offsets = [0, 32], sizes = [8, 32], strides = [1, 1]} : vector<8x128xf32> to vector<8x32xf32>
    %795 = arith.negf %794 : vector<8x32xf32>
    %796 = math.exp %795 : vector<8x32xf32>
    %cst_359 = arith.constant 1.000000e+00 : f32
    %797 = vector.broadcast %cst_359 : f32 to vector<8x32xf32>
    %798 = arith.addf %797, %796 : vector<8x32xf32>
    %799 = arith.divf %797, %798 : vector<8x32xf32>
    %800 = vector.extract_strided_slice %787 {offsets = [0, 64], sizes = [8, 32], strides = [1, 1]} : vector<8x128xf32> to vector<8x32xf32>
    %801 = math.tanh %800 : vector<8x32xf32>
    %802 = vector.extract_strided_slice %787 {offsets = [0, 96], sizes = [8, 32], strides = [1, 1]} : vector<8x128xf32> to vector<8x32xf32>
    %803 = arith.negf %802 : vector<8x32xf32>
    %804 = math.exp %803 : vector<8x32xf32>
    %cst_360 = arith.constant 1.000000e+00 : f32
    %805 = vector.broadcast %cst_360 : f32 to vector<8x32xf32>
    %806 = arith.addf %805, %804 : vector<8x32xf32>
    %807 = arith.divf %805, %806 : vector<8x32xf32>
    %c0_361 = arith.constant 0 : index
    %c0_362 = arith.constant 0 : index
    %808 = vector.load %arg11[%c0_361, %c0_362] : memref<8x32xf32, #tpu.memory_space<vmem>>, vector<8x32xf32>
    %809 = arith.mulf %799, %808 : vector<8x32xf32>
    %810 = arith.mulf %793, %801 : vector<8x32xf32>
    %811 = arith.addf %809, %810 : vector<8x32xf32>
    %812 = math.tanh %811 : vector<8x32xf32>
    %813 = arith.mulf %807, %812 : vector<8x32xf32>
    %c0_363 = arith.constant 0 : index
    %c0_364 = arith.constant 0 : index
    %814 = vector.load %arg10[%c0_363, %c0_364] : memref<8x32xf32, #tpu.memory_space<vmem>>, vector<8x32xf32>
    tpu.vector_store %arg10[%c0_363, %c0_364], %813 {strides = array<i32>} : memref<8x32xf32, #tpu.memory_space<vmem>>, vector<8x32xf32>,
    %c0_365 = arith.constant 0 : index
    %c0_366 = arith.constant 0 : index
    %815 = vector.load %arg11[%c0_365, %c0_366] : memref<8x32xf32, #tpu.memory_space<vmem>>, vector<8x32xf32>
    tpu.vector_store %arg11[%c0_365, %c0_366], %811 {strides = array<i32>} : memref<8x32xf32, #tpu.memory_space<vmem>>, vector<8x32xf32>,
    %816 = arith.index_cast %780 : i32 to index
    %c0_367 = arith.constant 0 : index
    %817 = vector.load %arg8[%816, %c0_367] : memref<64x32xf32, #tpu.memory_space<vmem>>, vector<8x32xf32>
    tpu.vector_store %arg8[%816, %c0_367], %813 {strides = array<i32>} : memref<64x32xf32, #tpu.memory_space<vmem>>, vector<8x32xf32>,
    %c4_i32_368 = arith.constant 4 : i32
    %c8_i32_369 = arith.constant 8 : i32
    %818 = arith.muli %c4_i32_368, %c8_i32_369 : i32
    %819 = tpu.assume_multiple %818, 8 : i32
    %820 = arith.index_cast %819 : i32 to index
    %c0_370 = arith.constant 0 : index
    %821 = vector.load %arg9[%820, %c0_370] : memref<64x128xf32, #tpu.memory_space<vmem>>, vector<8x128xf32>
    %c0_371 = arith.constant 0 : index
    %c0_372 = arith.constant 0 : index
    %822 = vector.load %arg10[%c0_371, %c0_372] : memref<8x32xf32, #tpu.memory_space<vmem>>, vector<8x32xf32>
    %cst_373 = arith.constant dense<0.000000e+00> : vector<8x128xf32>
    %823 = tpu.matmul %822, %659, %cst_373 {dimension_numbers = #tpu.dot_dimension_numbers<[1], [0], [0], [1], [0, 0, 1, 1], [], []>} : vector<8x32xf32>, vector<32x128xf32>, vector<8x128xf32> -> vector<8x128xf32>
    %824 = arith.addf %821, %823 : vector<8x128xf32>
    %825 = vector.broadcast %661 : vector<1x128xf32> to vector<8x128xf32>
    %826 = arith.addf %824, %825 : vector<8x128xf32>
    %827 = vector.extract_strided_slice %826 {offsets = [0, 0], sizes = [8, 32], strides = [1, 1]} : vector<8x128xf32> to vector<8x32xf32>
    %828 = arith.negf %827 : vector<8x32xf32>
    %829 = math.exp %828 : vector<8x32xf32>
    %cst_374 = arith.constant 1.000000e+00 : f32
    %830 = vector.broadcast %cst_374 : f32 to vector<8x32xf32>
    %831 = arith.addf %830, %829 : vector<8x32xf32>
    %832 = arith.divf %830, %831 : vector<8x32xf32>
    %833 = vector.extract_strided_slice %826 {offsets = [0, 32], sizes = [8, 32], strides = [1, 1]} : vector<8x128xf32> to vector<8x32xf32>
    %834 = arith.negf %833 : vector<8x32xf32>
    %835 = math.exp %834 : vector<8x32xf32>
    %cst_375 = arith.constant 1.000000e+00 : f32
    %836 = vector.broadcast %cst_375 : f32 to vector<8x32xf32>
    %837 = arith.addf %836, %835 : vector<8x32xf32>
    %838 = arith.divf %836, %837 : vector<8x32xf32>
    %839 = vector.extract_strided_slice %826 {offsets = [0, 64], sizes = [8, 32], strides = [1, 1]} : vector<8x128xf32> to vector<8x32xf32>
    %840 = math.tanh %839 : vector<8x32xf32>
    %841 = vector.extract_strided_slice %826 {offsets = [0, 96], sizes = [8, 32], strides = [1, 1]} : vector<8x128xf32> to vector<8x32xf32>
    %842 = arith.negf %841 : vector<8x32xf32>
    %843 = math.exp %842 : vector<8x32xf32>
    %cst_376 = arith.constant 1.000000e+00 : f32
    %844 = vector.broadcast %cst_376 : f32 to vector<8x32xf32>
    %845 = arith.addf %844, %843 : vector<8x32xf32>
    %846 = arith.divf %844, %845 : vector<8x32xf32>
    %c0_377 = arith.constant 0 : index
    %c0_378 = arith.constant 0 : index
    %847 = vector.load %arg11[%c0_377, %c0_378] : memref<8x32xf32, #tpu.memory_space<vmem>>, vector<8x32xf32>
    %848 = arith.mulf %838, %847 : vector<8x32xf32>
    %849 = arith.mulf %832, %840 : vector<8x32xf32>
    %850 = arith.addf %848, %849 : vector<8x32xf32>
    %851 = math.tanh %850 : vector<8x32xf32>
    %852 = arith.mulf %846, %851 : vector<8x32xf32>
    %c0_379 = arith.constant 0 : index
    %c0_380 = arith.constant 0 : index
    %853 = vector.load %arg10[%c0_379, %c0_380] : memref<8x32xf32, #tpu.memory_space<vmem>>, vector<8x32xf32>
    tpu.vector_store %arg10[%c0_379, %c0_380], %852 {strides = array<i32>} : memref<8x32xf32, #tpu.memory_space<vmem>>, vector<8x32xf32>,
    %c0_381 = arith.constant 0 : index
    %c0_382 = arith.constant 0 : index
    %854 = vector.load %arg11[%c0_381, %c0_382] : memref<8x32xf32, #tpu.memory_space<vmem>>, vector<8x32xf32>
    tpu.vector_store %arg11[%c0_381, %c0_382], %850 {strides = array<i32>} : memref<8x32xf32, #tpu.memory_space<vmem>>, vector<8x32xf32>,
    %855 = arith.index_cast %819 : i32 to index
    %c0_383 = arith.constant 0 : index
    %856 = vector.load %arg8[%855, %c0_383] : memref<64x32xf32, #tpu.memory_space<vmem>>, vector<8x32xf32>
    tpu.vector_store %arg8[%855, %c0_383], %852 {strides = array<i32>} : memref<64x32xf32, #tpu.memory_space<vmem>>, vector<8x32xf32>,
    %c5_i32_384 = arith.constant 5 : i32
    %c8_i32_385 = arith.constant 8 : i32
    %857 = arith.muli %c5_i32_384, %c8_i32_385 : i32
    %858 = tpu.assume_multiple %857, 8 : i32
    %859 = arith.index_cast %858 : i32 to index
    %c0_386 = arith.constant 0 : index
    %860 = vector.load %arg9[%859, %c0_386] : memref<64x128xf32, #tpu.memory_space<vmem>>, vector<8x128xf32>
    %c0_387 = arith.constant 0 : index
    %c0_388 = arith.constant 0 : index
    %861 = vector.load %arg10[%c0_387, %c0_388] : memref<8x32xf32, #tpu.memory_space<vmem>>, vector<8x32xf32>
    %cst_389 = arith.constant dense<0.000000e+00> : vector<8x128xf32>
    %862 = tpu.matmul %861, %659, %cst_389 {dimension_numbers = #tpu.dot_dimension_numbers<[1], [0], [0], [1], [0, 0, 1, 1], [], []>} : vector<8x32xf32>, vector<32x128xf32>, vector<8x128xf32> -> vector<8x128xf32>
    %863 = arith.addf %860, %862 : vector<8x128xf32>
    %864 = vector.broadcast %661 : vector<1x128xf32> to vector<8x128xf32>
    %865 = arith.addf %863, %864 : vector<8x128xf32>
    %866 = vector.extract_strided_slice %865 {offsets = [0, 0], sizes = [8, 32], strides = [1, 1]} : vector<8x128xf32> to vector<8x32xf32>
    %867 = arith.negf %866 : vector<8x32xf32>
    %868 = math.exp %867 : vector<8x32xf32>
    %cst_390 = arith.constant 1.000000e+00 : f32
    %869 = vector.broadcast %cst_390 : f32 to vector<8x32xf32>
    %870 = arith.addf %869, %868 : vector<8x32xf32>
    %871 = arith.divf %869, %870 : vector<8x32xf32>
    %872 = vector.extract_strided_slice %865 {offsets = [0, 32], sizes = [8, 32], strides = [1, 1]} : vector<8x128xf32> to vector<8x32xf32>
    %873 = arith.negf %872 : vector<8x32xf32>
    %874 = math.exp %873 : vector<8x32xf32>
    %cst_391 = arith.constant 1.000000e+00 : f32
    %875 = vector.broadcast %cst_391 : f32 to vector<8x32xf32>
    %876 = arith.addf %875, %874 : vector<8x32xf32>
    %877 = arith.divf %875, %876 : vector<8x32xf32>
    %878 = vector.extract_strided_slice %865 {offsets = [0, 64], sizes = [8, 32], strides = [1, 1]} : vector<8x128xf32> to vector<8x32xf32>
    %879 = math.tanh %878 : vector<8x32xf32>
    %880 = vector.extract_strided_slice %865 {offsets = [0, 96], sizes = [8, 32], strides = [1, 1]} : vector<8x128xf32> to vector<8x32xf32>
    %881 = arith.negf %880 : vector<8x32xf32>
    %882 = math.exp %881 : vector<8x32xf32>
    %cst_392 = arith.constant 1.000000e+00 : f32
    %883 = vector.broadcast %cst_392 : f32 to vector<8x32xf32>
    %884 = arith.addf %883, %882 : vector<8x32xf32>
    %885 = arith.divf %883, %884 : vector<8x32xf32>
    %c0_393 = arith.constant 0 : index
    %c0_394 = arith.constant 0 : index
    %886 = vector.load %arg11[%c0_393, %c0_394] : memref<8x32xf32, #tpu.memory_space<vmem>>, vector<8x32xf32>
    %887 = arith.mulf %877, %886 : vector<8x32xf32>
    %888 = arith.mulf %871, %879 : vector<8x32xf32>
    %889 = arith.addf %887, %888 : vector<8x32xf32>
    %890 = math.tanh %889 : vector<8x32xf32>
    %891 = arith.mulf %885, %890 : vector<8x32xf32>
    %c0_395 = arith.constant 0 : index
    %c0_396 = arith.constant 0 : index
    %892 = vector.load %arg10[%c0_395, %c0_396] : memref<8x32xf32, #tpu.memory_space<vmem>>, vector<8x32xf32>
    tpu.vector_store %arg10[%c0_395, %c0_396], %891 {strides = array<i32>} : memref<8x32xf32, #tpu.memory_space<vmem>>, vector<8x32xf32>,
    %c0_397 = arith.constant 0 : index
    %c0_398 = arith.constant 0 : index
    %893 = vector.load %arg11[%c0_397, %c0_398] : memref<8x32xf32, #tpu.memory_space<vmem>>, vector<8x32xf32>
    tpu.vector_store %arg11[%c0_397, %c0_398], %889 {strides = array<i32>} : memref<8x32xf32, #tpu.memory_space<vmem>>, vector<8x32xf32>,
    %894 = arith.index_cast %858 : i32 to index
    %c0_399 = arith.constant 0 : index
    %895 = vector.load %arg8[%894, %c0_399] : memref<64x32xf32, #tpu.memory_space<vmem>>, vector<8x32xf32>
    tpu.vector_store %arg8[%894, %c0_399], %891 {strides = array<i32>} : memref<64x32xf32, #tpu.memory_space<vmem>>, vector<8x32xf32>,
    %c6_i32_400 = arith.constant 6 : i32
    %c8_i32_401 = arith.constant 8 : i32
    %896 = arith.muli %c6_i32_400, %c8_i32_401 : i32
    %897 = tpu.assume_multiple %896, 8 : i32
    %898 = arith.index_cast %897 : i32 to index
    %c0_402 = arith.constant 0 : index
    %899 = vector.load %arg9[%898, %c0_402] : memref<64x128xf32, #tpu.memory_space<vmem>>, vector<8x128xf32>
    %c0_403 = arith.constant 0 : index
    %c0_404 = arith.constant 0 : index
    %900 = vector.load %arg10[%c0_403, %c0_404] : memref<8x32xf32, #tpu.memory_space<vmem>>, vector<8x32xf32>
    %cst_405 = arith.constant dense<0.000000e+00> : vector<8x128xf32>
    %901 = tpu.matmul %900, %659, %cst_405 {dimension_numbers = #tpu.dot_dimension_numbers<[1], [0], [0], [1], [0, 0, 1, 1], [], []>} : vector<8x32xf32>, vector<32x128xf32>, vector<8x128xf32> -> vector<8x128xf32>
    %902 = arith.addf %899, %901 : vector<8x128xf32>
    %903 = vector.broadcast %661 : vector<1x128xf32> to vector<8x128xf32>
    %904 = arith.addf %902, %903 : vector<8x128xf32>
    %905 = vector.extract_strided_slice %904 {offsets = [0, 0], sizes = [8, 32], strides = [1, 1]} : vector<8x128xf32> to vector<8x32xf32>
    %906 = arith.negf %905 : vector<8x32xf32>
    %907 = math.exp %906 : vector<8x32xf32>
    %cst_406 = arith.constant 1.000000e+00 : f32
    %908 = vector.broadcast %cst_406 : f32 to vector<8x32xf32>
    %909 = arith.addf %908, %907 : vector<8x32xf32>
    %910 = arith.divf %908, %909 : vector<8x32xf32>
    %911 = vector.extract_strided_slice %904 {offsets = [0, 32], sizes = [8, 32], strides = [1, 1]} : vector<8x128xf32> to vector<8x32xf32>
    %912 = arith.negf %911 : vector<8x32xf32>
    %913 = math.exp %912 : vector<8x32xf32>
    %cst_407 = arith.constant 1.000000e+00 : f32
    %914 = vector.broadcast %cst_407 : f32 to vector<8x32xf32>
    %915 = arith.addf %914, %913 : vector<8x32xf32>
    %916 = arith.divf %914, %915 : vector<8x32xf32>
    %917 = vector.extract_strided_slice %904 {offsets = [0, 64], sizes = [8, 32], strides = [1, 1]} : vector<8x128xf32> to vector<8x32xf32>
    %918 = math.tanh %917 : vector<8x32xf32>
    %919 = vector.extract_strided_slice %904 {offsets = [0, 96], sizes = [8, 32], strides = [1, 1]} : vector<8x128xf32> to vector<8x32xf32>
    %920 = arith.negf %919 : vector<8x32xf32>
    %921 = math.exp %920 : vector<8x32xf32>
    %cst_408 = arith.constant 1.000000e+00 : f32
    %922 = vector.broadcast %cst_408 : f32 to vector<8x32xf32>
    %923 = arith.addf %922, %921 : vector<8x32xf32>
    %924 = arith.divf %922, %923 : vector<8x32xf32>
    %c0_409 = arith.constant 0 : index
    %c0_410 = arith.constant 0 : index
    %925 = vector.load %arg11[%c0_409, %c0_410] : memref<8x32xf32, #tpu.memory_space<vmem>>, vector<8x32xf32>
    %926 = arith.mulf %916, %925 : vector<8x32xf32>
    %927 = arith.mulf %910, %918 : vector<8x32xf32>
    %928 = arith.addf %926, %927 : vector<8x32xf32>
    %929 = math.tanh %928 : vector<8x32xf32>
    %930 = arith.mulf %924, %929 : vector<8x32xf32>
    %c0_411 = arith.constant 0 : index
    %c0_412 = arith.constant 0 : index
    %931 = vector.load %arg10[%c0_411, %c0_412] : memref<8x32xf32, #tpu.memory_space<vmem>>, vector<8x32xf32>
    tpu.vector_store %arg10[%c0_411, %c0_412], %930 {strides = array<i32>} : memref<8x32xf32, #tpu.memory_space<vmem>>, vector<8x32xf32>,
    %c0_413 = arith.constant 0 : index
    %c0_414 = arith.constant 0 : index
    %932 = vector.load %arg11[%c0_413, %c0_414] : memref<8x32xf32, #tpu.memory_space<vmem>>, vector<8x32xf32>
    tpu.vector_store %arg11[%c0_413, %c0_414], %928 {strides = array<i32>} : memref<8x32xf32, #tpu.memory_space<vmem>>, vector<8x32xf32>,
    %933 = arith.index_cast %897 : i32 to index
    %c0_415 = arith.constant 0 : index
    %934 = vector.load %arg8[%933, %c0_415] : memref<64x32xf32, #tpu.memory_space<vmem>>, vector<8x32xf32>
    tpu.vector_store %arg8[%933, %c0_415], %930 {strides = array<i32>} : memref<64x32xf32, #tpu.memory_space<vmem>>, vector<8x32xf32>,
    %c7_i32_416 = arith.constant 7 : i32
    %c8_i32_417 = arith.constant 8 : i32
    %935 = arith.muli %c7_i32_416, %c8_i32_417 : i32
    %936 = tpu.assume_multiple %935, 8 : i32
    %937 = arith.index_cast %936 : i32 to index
    %c0_418 = arith.constant 0 : index
    %938 = vector.load %arg9[%937, %c0_418] : memref<64x128xf32, #tpu.memory_space<vmem>>, vector<8x128xf32>
    %c0_419 = arith.constant 0 : index
    %c0_420 = arith.constant 0 : index
    %939 = vector.load %arg10[%c0_419, %c0_420] : memref<8x32xf32, #tpu.memory_space<vmem>>, vector<8x32xf32>
    %cst_421 = arith.constant dense<0.000000e+00> : vector<8x128xf32>
    %940 = tpu.matmul %939, %659, %cst_421 {dimension_numbers = #tpu.dot_dimension_numbers<[1], [0], [0], [1], [0, 0, 1, 1], [], []>} : vector<8x32xf32>, vector<32x128xf32>, vector<8x128xf32> -> vector<8x128xf32>
    %941 = arith.addf %938, %940 : vector<8x128xf32>
    %942 = vector.broadcast %661 : vector<1x128xf32> to vector<8x128xf32>
    %943 = arith.addf %941, %942 : vector<8x128xf32>
    %944 = vector.extract_strided_slice %943 {offsets = [0, 0], sizes = [8, 32], strides = [1, 1]} : vector<8x128xf32> to vector<8x32xf32>
    %945 = arith.negf %944 : vector<8x32xf32>
    %946 = math.exp %945 : vector<8x32xf32>
    %cst_422 = arith.constant 1.000000e+00 : f32
    %947 = vector.broadcast %cst_422 : f32 to vector<8x32xf32>
    %948 = arith.addf %947, %946 : vector<8x32xf32>
    %949 = arith.divf %947, %948 : vector<8x32xf32>
    %950 = vector.extract_strided_slice %943 {offsets = [0, 32], sizes = [8, 32], strides = [1, 1]} : vector<8x128xf32> to vector<8x32xf32>
    %951 = arith.negf %950 : vector<8x32xf32>
    %952 = math.exp %951 : vector<8x32xf32>
    %cst_423 = arith.constant 1.000000e+00 : f32
    %953 = vector.broadcast %cst_423 : f32 to vector<8x32xf32>
    %954 = arith.addf %953, %952 : vector<8x32xf32>
    %955 = arith.divf %953, %954 : vector<8x32xf32>
    %956 = vector.extract_strided_slice %943 {offsets = [0, 64], sizes = [8, 32], strides = [1, 1]} : vector<8x128xf32> to vector<8x32xf32>
    %957 = math.tanh %956 : vector<8x32xf32>
    %958 = vector.extract_strided_slice %943 {offsets = [0, 96], sizes = [8, 32], strides = [1, 1]} : vector<8x128xf32> to vector<8x32xf32>
    %959 = arith.negf %958 : vector<8x32xf32>
    %960 = math.exp %959 : vector<8x32xf32>
    %cst_424 = arith.constant 1.000000e+00 : f32
    %961 = vector.broadcast %cst_424 : f32 to vector<8x32xf32>
    %962 = arith.addf %961, %960 : vector<8x32xf32>
    %963 = arith.divf %961, %962 : vector<8x32xf32>
    %c0_425 = arith.constant 0 : index
    %c0_426 = arith.constant 0 : index
    %964 = vector.load %arg11[%c0_425, %c0_426] : memref<8x32xf32, #tpu.memory_space<vmem>>, vector<8x32xf32>
    %965 = arith.mulf %955, %964 : vector<8x32xf32>
    %966 = arith.mulf %949, %957 : vector<8x32xf32>
    %967 = arith.addf %965, %966 : vector<8x32xf32>
    %968 = math.tanh %967 : vector<8x32xf32>
    %969 = arith.mulf %963, %968 : vector<8x32xf32>
    %c0_427 = arith.constant 0 : index
    %c0_428 = arith.constant 0 : index
    %970 = vector.load %arg10[%c0_427, %c0_428] : memref<8x32xf32, #tpu.memory_space<vmem>>, vector<8x32xf32>
    tpu.vector_store %arg10[%c0_427, %c0_428], %969 {strides = array<i32>} : memref<8x32xf32, #tpu.memory_space<vmem>>, vector<8x32xf32>,
    %c0_429 = arith.constant 0 : index
    %c0_430 = arith.constant 0 : index
    %971 = vector.load %arg11[%c0_429, %c0_430] : memref<8x32xf32, #tpu.memory_space<vmem>>, vector<8x32xf32>
    tpu.vector_store %arg11[%c0_429, %c0_430], %967 {strides = array<i32>} : memref<8x32xf32, #tpu.memory_space<vmem>>, vector<8x32xf32>,
    %972 = arith.index_cast %936 : i32 to index
    %c0_431 = arith.constant 0 : index
    %973 = vector.load %arg8[%972, %c0_431] : memref<64x32xf32, #tpu.memory_space<vmem>>, vector<8x32xf32>
    tpu.vector_store %arg8[%972, %c0_431], %969 {strides = array<i32>} : memref<64x32xf32, #tpu.memory_space<vmem>>, vector<8x32xf32>,
    %c8_i32_432 = arith.constant 8 : i32
    %c0_433 = arith.constant 0 : index
    %c0_434 = arith.constant 0 : index
    %974 = vector.load %arg10[%c0_433, %c0_434] : memref<8x32xf32, #tpu.memory_space<vmem>>, vector<8x32xf32>
    %c0_435 = arith.constant 0 : index
    %c0_436 = arith.constant 0 : index
    %975 = vector.load %arg5[%c0_435, %c0_436] : memref<32x16xf32, #tpu.memory_space<vmem>>, vector<32x16xf32>
    %cst_437 = arith.constant dense<0.000000e+00> : vector<8x16xf32>
    %976 = tpu.matmul %974, %975, %cst_437 {dimension_numbers = #tpu.dot_dimension_numbers<[1], [0], [0], [1], [0, 0, 1, 1], [], []>} : vector<8x32xf32>, vector<32x16xf32>, vector<8x16xf32> -> vector<8x16xf32>
    %c0_438 = arith.constant 0 : index
    %c0_439 = arith.constant 0 : index
    %977 = vector.load %arg6[%c0_438, %c0_439] : memref<1x16xf32, #tpu.memory_space<vmem>>, vector<1x16xf32>
    %978 = vector.broadcast %977 : vector<1x16xf32> to vector<8x16xf32>
    %979 = arith.addf %976, %978 : vector<8x16xf32>
    %c0_440 = arith.constant 0 : index
    %c0_441 = arith.constant 0 : index
    %980 = vector.load %arg7[%c0_440, %c0_441] : memref<8x16xf32, #tpu.memory_space<vmem>>, vector<8x16xf32>
    tpu.vector_store %arg7[%c0_440, %c0_441], %979 {strides = array<i32>} : memref<8x16xf32, #tpu.memory_space<vmem>>, vector<8x16xf32>,
    return
  }
}

</mosaic_0001>

<llo_original>
// kernel: encoder_rnn_forward.1
$region0: #{encoder_rnn_forward.1}
  #allocation0 [shape = 'u32[]', space=smem, size = 0x4, offset = 0x4, fixed_abs, tag = 'smem constant byte address 0x4 - core index']
  #allocation1 [shape = 'u32[144,128]{1,0:T(1,128)}', space=vmem, size = 0x12000, scoped, tag = 'internal scratch']
  #allocation2 [shape = 'f32[64,32]{1,0:T(8,128)}', space=vmem, size = 0x8000, scoped, tag = 'scratch operand']
  #allocation3 [shape = 'f32[64,128]{1,0:T(8,128)}', space=vmem, size = 0x8000, scoped, tag = 'scratch operand']
  #allocation4 [shape = 'f32[8,32]{1,0:T(8,128)}', space=vmem, size = 0x1000, scoped, tag = 'scratch operand']
  #allocation5 [shape = 'f32[8,32]{1,0:T(8,128)}', space=vmem, size = 0x1000, scoped, tag = 'scratch operand']
  %s0 = inlined_call_operand.vmem [shape: f32[64,24], index: 0, kind: input, shape index: {}]
  %s1 = inlined_call_operand.hbm [shape: f32[24,128], index: 1, kind: input, shape index: {}]
  %s2 = inlined_call_operand.vmem [shape: f32[2,32,128], index: 2, kind: input, shape index: {}]
  %s3 = inlined_call_operand.vmem [shape: f32[3,32,128], index: 3, kind: input, shape index: {}]
  %s4 = inlined_call_operand.vmem [shape: f32[3,1,128], index: 4, kind: input, shape index: {}]
  %s5 = inlined_call_operand.vmem [shape: f32[32,16], index: 5, kind: input, shape index: {}]
  %s6 = inlined_call_operand.vmem [shape: f32[1,16], index: 6, kind: input, shape index: {}]
  %s7 = inlined_call_operand.vmem [shape: f32[8,16], index: 7, kind: output, shape index: {}]
  %s8 = sld [smem:[#allocation0]]
  $region42: #{encoder_rnn_forward.1} parent=0
    _
  %s10 = ssub.s32 1, %s8
  %s11 = scalar_select 0, %s10, %s8
  $region1: #{encoder_rnn_forward.1} parent=0
    #allocation6 [shape = 'u8[12288]{0}', space=vmem, size = 0x3000, scoped, tag = 'input window, operand 1, single buffered']
    #allocation7 [shape = 's32[1]{0}', space=sflag, size = 0x4, scoped, tag = 'scoped memory for encoder_rnn_forward.1']
    %12 = vsyncpa [#allocation7], 0
    // Predicated region
    $region2: #{encoder_rnn_forward.1} parent=1 // pred_check
      _
    $region3: #{encoder_rnn_forward.1} parent=1 // pred_check_branch
      %14 = sbr.rel (0) target = $region5
    $region4: #{encoder_rnn_forward.1} parent=1 // pred_region
      _
    $region5: #{encoder_rnn_forward.1} parent=1 // pred_fallthru
      _
    // Predicated region
    $region6: #{encoder_rnn_forward.1} parent=1 // pred_check
      _
    $region7: #{encoder_rnn_forward.1} parent=1 // pred_check_branch
      %16 = sbr.rel (0) target = $region9
    $region8: #{encoder_rnn_forward.1} parent=1 // pred_region
      %s18 = ssub.s32 384, 384
      %19 = vsyncadd [#allocation7], %s18
      %s20 = sshll.u32 [#allocation6], 4
      %s21 = int_to_ptr.vmem [resolvable:$true] %s20
      %26 = dma.hbm_to_vmem [thread:$0]  %s1, 384, %s21, [#allocation7], 128, 128, 8
    $region9: #{encoder_rnn_forward.1} parent=1 // pred_fallthru
      _
    // Predicated region
    $region10: #{encoder_rnn_forward.1} parent=1 // pred_check
      _
    $region11: #{encoder_rnn_forward.1} parent=1 // pred_check_branch
      %28 = sbr.rel (0) target = $region13
    $region12: #{encoder_rnn_forward.1} parent=1 // pred_region
      _
    $region13: #{encoder_rnn_forward.1} parent=1 // pred_fallthru
      _
    // Predicated region
    $region14: #{encoder_rnn_forward.1} parent=1 // pred_check
      _
    $region15: #{encoder_rnn_forward.1} parent=1 // pred_check_branch
      %30 = sbr.rel (0) target = $region17
    $region16: #{encoder_rnn_forward.1} parent=1 // pred_region
      _
    $region17: #{encoder_rnn_forward.1} parent=1 // pred_fallthru
      _
    // Predicated region
    $region18: #{encoder_rnn_forward.1} parent=1 // pred_check
      _
    $region19: #{encoder_rnn_forward.1} parent=1 // pred_check_branch
      %32 = sbr.rel (0) target = $region21
    $region20: #{encoder_rnn_forward.1} parent=1 // pred_region
      _
    $region21: #{encoder_rnn_forward.1} parent=1 // pred_fallthru
      _
    // Predicated region
    $region22: #{encoder_rnn_forward.1} parent=1 // pred_check
      _
    $region23: #{encoder_rnn_forward.1} parent=1 // pred_check_branch
      %34 = sbr.rel (0) target = $region25
    $region24: #{encoder_rnn_forward.1} parent=1 // pred_region
      _
    $region25: #{encoder_rnn_forward.1} parent=1 // pred_fallthru
      _
    // Predicated region
    $region26: #{encoder_rnn_forward.1} parent=1 // pred_check
      _
    $region27: #{encoder_rnn_forward.1} parent=1 // pred_check_branch
      %36 = sbr.rel (0) target = $region29
    $region28: #{encoder_rnn_forward.1} parent=1 // pred_region
      _
    $region29: #{encoder_rnn_forward.1} parent=1 // pred_fallthru
      _
    // Predicated region
    $region30: #{encoder_rnn_forward.1} parent=1 // pred_check
      _
    $region31: #{encoder_rnn_forward.1} parent=1 // pred_check_branch
      %38 = sbr.rel (0) target = $region33
    $region32: #{encoder_rnn_forward.1} parent=1 // pred_region
      %39 = dma.done [#allocation7], 384
    $region33: #{encoder_rnn_forward.1} parent=1 // pred_fallthru
      _
    %v40 = vld [vmem:[%s0] sm:$0xff]
    %v41 = vld [vmem:[%s0 + $0x8] sm:$0xff]
    %v42 = vld [vmem:[%s0 + $0x10] sm:$0xff]
    %v43 = vld [vmem:[%s0 + $0x18] sm:$0xff]
    %v44 = vld [vmem:[%s0 + $0x20] sm:$0xff]
    %v45 = vld [vmem:[%s0 + $0x28] sm:$0xff]
    %v46 = vld [vmem:[%s0 + $0x30] sm:$0xff]
    %v47 = vld [vmem:[%s0 + $0x38] sm:$0xff]
    %v48 = vld [vmem:[#allocation6] sm:$0xff]
    %v49 = vld [vmem:[#allocation6 + $0x8] sm:$0xff]
    %v50 = vld [vmem:[#allocation6 + $0x10] sm:$0xff]
    %vm51 = vcmask 195584
    %v53 = vsel %vm51, %v40, 0
    %v56 = vsel %vm51, %v41, 0
    %v59 = vsel %vm51, %v42, 0
    %v62 = vsel %vm51, %v43, 0
    %v65 = vsel %vm51, %v44, 0
    %v68 = vsel %vm51, %v45, 0
    %v71 = vsel %vm51, %v46, 0
    %v74 = vsel %vm51, %v47, 0
    %76 = vmatprep.subr.mxu0 0.0
    %77 = vmatpush1.msra.mxu0 0.0
    %78 = vmatprep.subr.mxu0 0.0
    %79 = vmatpush1.msra.mxu0 0.0
    %80 = vmatprep.subr.mxu0 0.0
    %81 = vmatpush1.msra.mxu0 0.0
    %82 = vmatprep.subr.mxu0 0.0
    %83 = vmatpush1.msra.mxu0 0.0
    %84 = vmatprep.subr.mxu0 0.0
    %85 = vmatpush1.msra.mxu0 0.0
    %86 = vmatprep.subr.mxu0 0.0
    %87 = vmatpush1.msra.mxu0 0.0
    %88 = vmatprep.subr.mxu0 0.0
    %89 = vmatpush1.msra.mxu0 0.0
    %90 = vmatprep.subr.mxu0 0.0
    %91 = vmatpush1.msra.mxu0 0.0
    %92 = vmatprep.subr.mxu0 0.0
    %93 = vmatpush1.msra.mxu0 0.0
    %94 = vmatprep.subr.mxu0 0.0
    %95 = vmatpush1.msra.mxu0 0.0
    %96 = vmatprep.subr.mxu0 0.0
    %97 = vmatpush1.msra.mxu0 0.0
    %98 = vmatprep.subr.mxu0 0.0
    %99 = vmatpush1.msra.mxu0 0.0
    %100 = vmatprep.subr.mxu0 0.0
    %101 = vmatpush1.msra.mxu0 0.0
    %102 = vmatprep.subr.mxu0 0.0
    %103 = vmatpush1.msra.mxu0 %v50
    %104 = vmatprep.subr.mxu0 0.0
    %105 = vmatpush1.msra.mxu0 %v49
    %106 = vmatprep.subr.mxu0 0.0
    %107 = vmatpush1.msra.mxu0 %v48
    %108 = vmatprep.subr.mxu0 0.0
    %109 = vmatpush2.msra.mxu0 0.0
    %110 = vmatprep.subr.mxu0 0.0
    %111 = vmatpush2.msra.mxu0 0.0
    %112 = vmatprep.subr.mxu0 0.0
    %113 = vmatpush2.msra.mxu0 0.0
    %114 = vmatprep.subr.mxu0 0.0
    %115 = vmatpush2.msra.mxu0 0.0
    %116 = vmatprep.subr.mxu0 0.0
    %117 = vmatpush2.msra.mxu0 0.0
    %118 = vmatprep.subr.mxu0 0.0
    %119 = vmatpush2.msra.mxu0 0.0
    %120 = vmatprep.subr.mxu0 0.0
    %121 = vmatpush2.msra.mxu0 0.0
    %122 = vmatprep.subr.mxu0 0.0
    %123 = vmatpush2.msra.mxu0 0.0
    %124 = vmatprep.subr.mxu0 0.0
    %125 = vmatpush2.msra.mxu0 0.0
    %126 = vmatprep.subr.mxu0 0.0
    %127 = vmatpush2.msra.mxu0 0.0
    %128 = vmatprep.subr.mxu0 0.0
    %129 = vmatpush2.msra.mxu0 0.0
    %130 = vmatprep.subr.mxu0 0.0
    %131 = vmatpush2.msra.mxu0 0.0
    %132 = vmatprep.subr.mxu0 0.0
    %133 = vmatpush2.msra.mxu0 0.0
    %134 = vmatprep.subr.mxu0 0.0
    %135 = vmatpush2.msra.mxu0 0.0
    %136 = vmatprep.subr.mxu0 0.0
    %137 = vmatpush2.msra.mxu0 0.0
    %138 = vmatprep.subr.mxu0 0.0
    %139 = vmatpush2.msra.mxu0 0.0
    %140 = vmatprep.mubr.f32.mxu0 0.0
    %141 = vmatmul.mubr.f32.gmra.mxu0 %v53
    %v142 = vpop.f32.mrf.mxu0
    %v143 = vadd.f32 0.0, %v142
    %v144 = vpop.f32.mrf.mxu0
    %145 = vmatprep.mubr.f32.mxu0 0.0
    %146 = vmatmul.mubr.f32.gmra.mxu0 %v56
    %v147 = vpop.f32.mrf.mxu0
    %v148 = vadd.f32 0.0, %v147
    %v149 = vpop.f32.mrf.mxu0
    %150 = vmatprep.mubr.f32.mxu0 0.0
    %151 = vmatmul.mubr.f32.gmra.mxu0 %v59
    %v152 = vpop.f32.mrf.mxu0
    %v153 = vadd.f32 0.0, %v152
    %v154 = vpop.f32.mrf.mxu0
    %155 = vmatprep.mubr.f32.mxu0 0.0
    %156 = vmatmul.mubr.f32.gmra.mxu0 %v62
    %v157 = vpop.f32.mrf.mxu0
    %v158 = vadd.f32 0.0, %v157
    %v159 = vpop.f32.mrf.mxu0
    %160 = vmatprep.mubr.f32.mxu0 0.0
    %161 = vmatmul.mubr.f32.gmra.mxu0 %v65
    %v162 = vpop.f32.mrf.mxu0
    %v163 = vadd.f32 0.0, %v162
    %v164 = vpop.f32.mrf.mxu0
    %165 = vmatprep.mubr.f32.mxu0 0.0
    %166 = vmatmul.mubr.f32.gmra.mxu0 %v68
    %v167 = vpop.f32.mrf.mxu0
    %v168 = vadd.f32 0.0, %v167
    %v169 = vpop.f32.mrf.mxu0
    %170 = vmatprep.mubr.f32.mxu0 0.0
    %171 = vmatmul.mubr.f32.gmra.mxu0 %v71
    %v172 = vpop.f32.mrf.mxu0
    %v173 = vadd.f32 0.0, %v172
    %v174 = vpop.f32.mrf.mxu0
    %175 = vmatprep.mubr.f32.mxu0 0.0
    %176 = vmatmul.mubr.f32.gmra.mxu0 %v74
    %v177 = vpop.f32.mrf.mxu0
    %v178 = vadd.f32 0.0, %v177
    %v179 = vpop.f32.mrf.mxu0
    %180 = vdwg.mxu0
    %181 = vst [vmem:[#allocation3] sm:$0xff] %v143
    %182 = vst [vmem:[#allocation3 + $0x8] sm:$0xff] %v148
    %183 = vst [vmem:[#allocation3 + $0x10] sm:$0xff] %v153
    %184 = vst [vmem:[#allocation3 + $0x18] sm:$0xff] %v158
    %185 = vst [vmem:[#allocation3 + $0x20] sm:$0xff] %v163
    %186 = vst [vmem:[#allocation3 + $0x28] sm:$0xff] %v168
    %187 = vst [vmem:[#allocation3 + $0x30] sm:$0xff] %v173
    %188 = vst [vmem:[#allocation3 + $0x38] sm:$0xff] %v178
    %vm189 = vcmask 261120
    %190 = vst.msk [vmem:[#allocation4] sm:$0xff] %vm189, 0.0
    %191 = vst.msk [vmem:[#allocation5] sm:$0xff] %vm189, 0.0
    %v192 = vld [vmem:[%s3] sm:$0xff]
    %v193 = vld [vmem:[%s3 + $0x8] sm:$0xff]
    %v194 = vld [vmem:[%s3 + $0x10] sm:$0xff]
    %v195 = vld [vmem:[%s3 + $0x18] sm:$0xff]
    %v196 = vld [vmem:[%s4] sm:$0x1]
    %v197 = vld [vmem:[#allocation3] sm:$0xff]
    %v198 = vld [vmem:[#allocation4] sm:$0xff]
    %v200 = vsel %vm189, %v198, 0
    %202 = vmatprep.subr.mxu0 0.0
    %203 = vmatpush1.msra.mxu0 0.0
    %204 = vmatprep.subr.mxu0 0.0
    %205 = vmatpush1.msra.mxu0 0.0
    %206 = vmatprep.subr.mxu0 0.0
    %207 = vmatpush1.msra.mxu0 0.0
    %208 = vmatprep.subr.mxu0 0.0
    %209 = vmatpush1.msra.mxu0 0.0
    %210 = vmatprep.subr.mxu0 0.0
    %211 = vmatpush1.msra.mxu0 0.0
    %212 = vmatprep.subr.mxu0 0.0
    %213 = vmatpush1.msra.mxu0 0.0
    %214 = vmatprep.subr.mxu0 0.0
    %215 = vmatpush1.msra.mxu0 0.0
    %216 = vmatprep.subr.mxu0 0.0
    %217 = vmatpush1.msra.mxu0 0.0
    %218 = vmatprep.subr.mxu0 0.0
    %219 = vmatpush1.msra.mxu0 0.0
    %220 = vmatprep.subr.mxu0 0.0
    %221 = vmatpush1.msra.mxu0 0.0
    %222 = vmatprep.subr.mxu0 0.0
    %223 = vmatpush1.msra.mxu0 0.0
    %224 = vmatprep.subr.mxu0 0.0
    %225 = vmatpush1.msra.mxu0 0.0
    %226 = vmatprep.subr.mxu0 0.0
    %227 = vmatpush1.msra.mxu0 %v195
    %228 = vmatprep.subr.mxu0 0.0
    %229 = vmatpush1.msra.mxu0 %v194
    %230 = vmatprep.subr.mxu0 0.0
    %231 = vmatpush1.msra.mxu0 %v193
    %232 = vmatprep.subr.mxu0 0.0
    %233 = vmatpush1.msra.mxu0 %v192
    %234 = vmatprep.subr.mxu0 0.0
    %235 = vmatpush2.msra.mxu0 0.0
    %236 = vmatprep.subr.mxu0 0.0
    %237 = vmatpush2.msra.mxu0 0.0
    %238 = vmatprep.subr.mxu0 0.0
    %239 = vmatpush2.msra.mxu0 0.0
    %240 = vmatprep.subr.mxu0 0.0
    %241 = vmatpush2.msra.mxu0 0.0
    %242 = vmatprep.subr.mxu0 0.0
    %243 = vmatpush2.msra.mxu0 0.0
    %244 = vmatprep.subr.mxu0 0.0
    %245 = vmatpush2.msra.mxu0 0.0
    %246 = vmatprep.subr.mxu0 0.0
    %247 = vmatpush2.msra.mxu0 0.0
    %248 = vmatprep.subr.mxu0 0.0
    %249 = vmatpush2.msra.mxu0 0.0
    %250 = vmatprep.subr.mxu0 0.0
    %251 = vmatpush2.msra.mxu0 0.0
    %252 = vmatprep.subr.mxu0 0.0
    %253 = vmatpush2.msra.mxu0 0.0
    %254 = vmatprep.subr.mxu0 0.0
    %255 = vmatpush2.msra.mxu0 0.0
    %256 = vmatprep.subr.mxu0 0.0
    %257 = vmatpush2.msra.mxu0 0.0
    %258 = vmatprep.subr.mxu0 0.0
    %259 = vmatpush2.msra.mxu0 0.0
    %260 = vmatprep.subr.mxu0 0.0
    %261 = vmatpush2.msra.mxu0 0.0
    %262 = vmatprep.subr.mxu0 0.0
    %263 = vmatpush2.msra.mxu0 0.0
    %264 = vmatprep.subr.mxu0 0.0
    %265 = vmatpush2.msra.mxu0 0.0
    %266 = vmatprep.mubr.f32.mxu0 0.0
    %267 = vmatmul.mubr.f32.gmra.mxu0 %v200
    %v268 = vpop.f32.mrf.mxu0
    %v269 = vadd.f32 0.0, %v268
    %v270 = vpop.f32.mrf.mxu0
    %271 = vdwg.mxu0
    %v272 = vadd.f32 %v197, %v269
    %v274 = vlaneseq
    %v275 = vshrl.u32 %v274, 7
    %v276 = vsub.s32 0, %v275
    %v277 = vrot.slane %v196, %v276
    %v279 = vadd.f32 %v272, %v277
    %v280 = vxor.u32 %v279, 2147483648
    %v281 = vmul.f32 %v280, 1.442695
    %v282 = vpow.pop %v281
    %v283 = vadd.f32 %v282, 1.0
    %v284 = vrcp.pop %v283
    %v285 = vmul.f32 1.0, %v284
    %v286 = vtanh.pop %v279
    %v287 = vld [vmem:[#allocation5] sm:$0xff]
    %289 = vrot.lane.b32.xlu0 %v287, 32
    %v290 = vpop.permute.xlu0 %289
    %v292 = vmul.f32 %v285, %v290
    %294 = vrot.lane.b32.xlu0 %v286, 64
    %v295 = vpop.permute.xlu0 %294
    %v297 = vmul.f32 %v285, %v295
    %299 = vrot.lane.b32.xlu0 %v297, 32
    %v300 = vpop.permute.xlu0 %299
    %v302 = vadd.f32 %v292, %v300
    %v303 = vtanh.pop %v302
    %305 = vrot.lane.b32.xlu0 %v303, 64
    %v306 = vpop.permute.xlu0 %305
    %v308 = vmul.f32 %v285, %v306
    %310 = vrot.lane.b32.xlu0 %v308, 32
    %v311 = vpop.permute.xlu0 %310
    %313 = vst.msk [vmem:[#allocation4] sm:$0xff] %vm189, %v311
    %315 = vrot.lane.b32.xlu0 %v302, 96
    %v316 = vpop.permute.xlu0 %315
    %318 = vst.msk [vmem:[#allocation5] sm:$0xff] %vm189, %v316
    %319 = vst.msk [vmem:[#allocation2] sm:$0xff] %vm189, %v311
    %s320 = scalar_lea.vmem [#allocation3], 8
    %v321 = vld [vmem:[%s320] sm:$0xff]
    %v322 = vld [vmem:[#allocation4] sm:$0xff]
    %v324 = vsel %vm189, %v322, 0
    %326 = vmatprep.subr.mxu0 0.0
    %327 = vmatpush1.msra.mxu0 0.0
    %328 = vmatprep.subr.mxu0 0.0
    %329 = vmatpush1.msra.mxu0 0.0
    %330 = vmatprep.subr.mxu0 0.0
    %331 = vmatpush1.msra.mxu0 0.0
    %332 = vmatprep.subr.mxu0 0.0
    %333 = vmatpush1.msra.mxu0 0.0
    %334 = vmatprep.subr.mxu0 0.0
    %335 = vmatpush1.msra.mxu0 0.0
    %336 = vmatprep.subr.mxu0 0.0
    %337 = vmatpush1.msra.mxu0 0.0
    %338 = vmatprep.subr.mxu0 0.0
    %339 = vmatpush1.msra.mxu0 0.0
    %340 = vmatprep.subr.mxu0 0.0
    %341 = vmatpush1.msra.mxu0 0.0
    %342 = vmatprep.subr.mxu0 0.0
    %343 = vmatpush1.msra.mxu0 0.0
    %344 = vmatprep.subr.mxu0 0.0
    %345 = vmatpush1.msra.mxu0 0.0
    %346 = vmatprep.subr.mxu0 0.0
    %347 = vmatpush1.msra.mxu0 0.0
    %348 = vmatprep.subr.mxu0 0.0
    %349 = vmatpush1.msra.mxu0 0.0
    %350 = vmatprep.subr.mxu0 0.0
    %351 = vmatpush1.msra.mxu0 %v195
    %352 = vmatprep.subr.mxu0 0.0
    %353 = vmatpush1.msra.mxu0 %v194
    %354 = vmatprep.subr.mxu0 0.0
    %355 = vmatpush1.msra.mxu0 %v193
    %356 = vmatprep.subr.mxu0 0.0
    %357 = vmatpush1.msra.mxu0 %v192
    %358 = vmatprep.subr.mxu0 0.0
    %359 = vmatpush2.msra.mxu0 0.0
    %360 = vmatprep.subr.mxu0 0.0
    %361 = vmatpush2.msra.mxu0 0.0
    %362 = vmatprep.subr.mxu0 0.0
    %363 = vmatpush2.msra.mxu0 0.0
    %364 = vmatprep.subr.mxu0 0.0
    %365 = vmatpush2.msra.mxu0 0.0
    %366 = vmatprep.subr.mxu0 0.0
    %367 = vmatpush2.msra.mxu0 0.0
    %368 = vmatprep.subr.mxu0 0.0
    %369 = vmatpush2.msra.mxu0 0.0
    %370 = vmatprep.subr.mxu0 0.0
    %371 = vmatpush2.msra.mxu0 0.0
    %372 = vmatprep.subr.mxu0 0.0
    %373 = vmatpush2.msra.mxu0 0.0
    %374 = vmatprep.subr.mxu0 0.0
    %375 = vmatpush2.msra.mxu0 0.0
    %376 = vmatprep.subr.mxu0 0.0
    %377 = vmatpush2.msra.mxu0 0.0
    %378 = vmatprep.subr.mxu0 0.0
    %379 = vmatpush2.msra.mxu0 0.0
    %380 = vmatprep.subr.mxu0 0.0
    %381 = vmatpush2.msra.mxu0 0.0
    %382 = vmatprep.subr.mxu0 0.0
    %383 = vmatpush2.msra.mxu0 0.0
    %384 = vmatprep.subr.mxu0 0.0
    %385 = vmatpush2.msra.mxu0 0.0
    %386 = vmatprep.subr.mxu0 0.0
    %387 = vmatpush2.msra.mxu0 0.0
    %388 = vmatprep.subr.mxu0 0.0
    %389 = vmatpush2.msra.mxu0 0.0
    %390 = vmatprep.mubr.f32.mxu0 0.0
    %391 = vmatmul.mubr.f32.gmra.mxu0 %v324
    %v392 = vpop.f32.mrf.mxu0
    %v393 = vadd.f32 0.0, %v392
    %v394 = vpop.f32.mrf.mxu0
    %395 = vdwg.mxu0
    %v396 = vadd.f32 %v321, %v393
    %v397 = vadd.f32 %v396, %v277
    %v398 = vxor.u32 %v397, 2147483648
    %v399 = vmul.f32 %v398, 1.442695
    %v400 = vpow.pop %v399
    %v401 = vadd.f32 %v400, 1.0
    %v402 = vrcp.pop %v401
    %v403 = vmul.f32 1.0, %v402
    %v404 = vtanh.pop %v397
    %v405 = vld [vmem:[#allocation5] sm:$0xff]
    %407 = vrot.lane.b32.xlu0 %v405, 32
    %v408 = vpop.permute.xlu0 %407
    %v410 = vmul.f32 %v403, %v408
    %412 = vrot.lane.b32.xlu0 %v404, 64
    %v413 = vpop.permute.xlu0 %412
    %v415 = vmul.f32 %v403, %v413
    %417 = vrot.lane.b32.xlu0 %v415, 32
    %v418 = vpop.permute.xlu0 %417
    %v420 = vadd.f32 %v410, %v418
    %v421 = vtanh.pop %v420
    %423 = vrot.lane.b32.xlu0 %v421, 64
    %v424 = vpop.permute.xlu0 %423
    %v426 = vmul.f32 %v403, %v424
    %428 = vrot.lane.b32.xlu0 %v426, 32
    %v429 = vpop.permute.xlu0 %428
    %431 = vst.msk [vmem:[#allocation4] sm:$0xff] %vm189, %v429
    %433 = vrot.lane.b32.xlu0 %v420, 96
    %v434 = vpop.permute.xlu0 %433
    %436 = vst.msk [vmem:[#allocation5] sm:$0xff] %vm189, %v434
    %s437 = scalar_lea.vmem [#allocation2], 8
    %438 = vst.msk [vmem:[%s437] sm:$0xff] %vm189, %v429
    %s439 = scalar_lea.vmem [#allocation3], 16
    %v440 = vld [vmem:[%s439] sm:$0xff]
    %v441 = vld [vmem:[#allocation4] sm:$0xff]
    %v443 = vsel %vm189, %v441, 0
    %445 = vmatprep.subr.mxu0 0.0
    %446 = vmatpush1.msra.mxu0 0.0
    %447 = vmatprep.subr.mxu0 0.0
    %448 = vmatpush1.msra.mxu0 0.0
    %449 = vmatprep.subr.mxu0 0.0
    %450 = vmatpush1.msra.mxu0 0.0
    %451 = vmatprep.subr.mxu0 0.0
    %452 = vmatpush1.msra.mxu0 0.0
    %453 = vmatprep.subr.mxu0 0.0
    %454 = vmatpush1.msra.mxu0 0.0
    %455 = vmatprep.subr.mxu0 0.0
    %456 = vmatpush1.msra.mxu0 0.0
    %457 = vmatprep.subr.mxu0 0.0
    %458 = vmatpush1.msra.mxu0 0.0
    %459 = vmatprep.subr.mxu0 0.0
    %460 = vmatpush1.msra.mxu0 0.0
    %461 = vmatprep.subr.mxu0 0.0
    %462 = vmatpush1.msra.mxu0 0.0
    %463 = vmatprep.subr.mxu0 0.0
    %464 = vmatpush1.msra.mxu0 0.0
    %465 = vmatprep.subr.mxu0 0.0
    %466 = vmatpush1.msra.mxu0 0.0
    %467 = vmatprep.subr.mxu0 0.0
    %468 = vmatpush1.msra.mxu0 0.0
    %469 = vmatprep.subr.mxu0 0.0
    %470 = vmatpush1.msra.mxu0 %v195
    %471 = vmatprep.subr.mxu0 0.0
    %472 = vmatpush1.msra.mxu0 %v194
    %473 = vmatprep.subr.mxu0 0.0
    %474 = vmatpush1.msra.mxu0 %v193
    %475 = vmatprep.subr.mxu0 0.0
    %476 = vmatpush1.msra.mxu0 %v192
    %477 = vmatprep.subr.mxu0 0.0
    %478 = vmatpush2.msra.mxu0 0.0
    %479 = vmatprep.subr.mxu0 0.0
    %480 = vmatpush2.msra.mxu0 0.0
    %481 = vmatprep.subr.mxu0 0.0
    %482 = vmatpush2.msra.mxu0 0.0
    %483 = vmatprep.subr.mxu0 0.0
    %484 = vmatpush2.msra.mxu0 0.0
    %485 = vmatprep.subr.mxu0 0.0
    %486 = vmatpush2.msra.mxu0 0.0
    %487 = vmatprep.subr.mxu0 0.0
    %488 = vmatpush2.msra.mxu0 0.0
    %489 = vmatprep.subr.mxu0 0.0
    %490 = vmatpush2.msra.mxu0 0.0
    %491 = vmatprep.subr.mxu0 0.0
    %492 = vmatpush2.msra.mxu0 0.0
    %493 = vmatprep.subr.mxu0 0.0
    %494 = vmatpush2.msra.mxu0 0.0
    %495 = vmatprep.subr.mxu0 0.0
    %496 = vmatpush2.msra.mxu0 0.0
    %497 = vmatprep.subr.mxu0 0.0
    %498 = vmatpush2.msra.mxu0 0.0
    %499 = vmatprep.subr.mxu0 0.0
    %500 = vmatpush2.msra.mxu0 0.0
    %501 = vmatprep.subr.mxu0 0.0
    %502 = vmatpush2.msra.mxu0 0.0
    %503 = vmatprep.subr.mxu0 0.0
    %504 = vmatpush2.msra.mxu0 0.0
    %505 = vmatprep.subr.mxu0 0.0
    %506 = vmatpush2.msra.mxu0 0.0
    %507 = vmatprep.subr.mxu0 0.0
    %508 = vmatpush2.msra.mxu0 0.0
    %509 = vmatprep.mubr.f32.mxu0 0.0
    %510 = vmatmul.mubr.f32.gmra.mxu0 %v443
    %v511 = vpop.f32.mrf.mxu0
    %v512 = vadd.f32 0.0, %v511
    %v513 = vpop.f32.mrf.mxu0
    %514 = vdwg.mxu0
    %v515 = vadd.f32 %v440, %v512
    %v516 = vadd.f32 %v515, %v277
    %v517 = vxor.u32 %v516, 2147483648
    %v518 = vmul.f32 %v517, 1.442695
    %v519 = vpow.pop %v518
    %v520 = vadd.f32 %v519, 1.0
    %v521 = vrcp.pop %v520
    %v522 = vmul.f32 1.0, %v521
    %v523 = vtanh.pop %v516
    %v524 = vld [vmem:[#allocation5] sm:$0xff]
    %526 = vrot.lane.b32.xlu0 %v524, 32
    %v527 = vpop.permute.xlu0 %526
    %v529 = vmul.f32 %v522, %v527
    %531 = vrot.lane.b32.xlu0 %v523, 64
    %v532 = vpop.permute.xlu0 %531
    %v534 = vmul.f32 %v522, %v532
    %536 = vrot.lane.b32.xlu0 %v534, 32
    %v537 = vpop.permute.xlu0 %536
    %v539 = vadd.f32 %v529, %v537
    %v540 = vtanh.pop %v539
    %542 = vrot.lane.b32.xlu0 %v540, 64
    %v543 = vpop.permute.xlu0 %542
    %v545 = vmul.f32 %v522, %v543
    %547 = vrot.lane.b32.xlu0 %v545, 32
    %v548 = vpop.permute.xlu0 %547
    %550 = vst.msk [vmem:[#allocation4] sm:$0xff] %vm189, %v548
    %552 = vrot.lane.b32.xlu0 %v539, 96
    %v553 = vpop.permute.xlu0 %552
    %555 = vst.msk [vmem:[#allocation5] sm:$0xff] %vm189, %v553
    %s556 = scalar_lea.vmem [#allocation2], 16
    %557 = vst.msk [vmem:[%s556] sm:$0xff] %vm189, %v548
    %s558 = scalar_lea.vmem [#allocation3], 24
    %v559 = vld [vmem:[%s558] sm:$0xff]
    %v560 = vld [vmem:[#allocation4] sm:$0xff]
    %v562 = vsel %vm189, %v560, 0
    %564 = vmatprep.subr.mxu0 0.0
    %565 = vmatpush1.msra.mxu0 0.0
    %566 = vmatprep.subr.mxu0 0.0
    %567 = vmatpush1.msra.mxu0 0.0
    %568 = vmatprep.subr.mxu0 0.0
    %569 = vmatpush1.msra.mxu0 0.0
    %570 = vmatprep.subr.mxu0 0.0
    %571 = vmatpush1.msra.mxu0 0.0
    %572 = vmatprep.subr.mxu0 0.0
    %573 = vmatpush1.msra.mxu0 0.0
    %574 = vmatprep.subr.mxu0 0.0
    %575 = vmatpush1.msra.mxu0 0.0
    %576 = vmatprep.subr.mxu0 0.0
    %577 = vmatpush1.msra.mxu0 0.0
    %578 = vmatprep.subr.mxu0 0.0
    %579 = vmatpush1.msra.mxu0 0.0
    %580 = vmatprep.subr.mxu0 0.0
    %581 = vmatpush1.msra.mxu0 0.0
    %582 = vmatprep.subr.mxu0 0.0
    %583 = vmatpush1.msra.mxu0 0.0
    %584 = vmatprep.subr.mxu0 0.0
    %585 = vmatpush1.msra.mxu0 0.0
    %586 = vmatprep.subr.mxu0 0.0
    %587 = vmatpush1.msra.mxu0 0.0
    %588 = vmatprep.subr.mxu0 0.0
    %589 = vmatpush1.msra.mxu0 %v195
    %590 = vmatprep.subr.mxu0 0.0
    %591 = vmatpush1.msra.mxu0 %v194
    %592 = vmatprep.subr.mxu0 0.0
    %593 = vmatpush1.msra.mxu0 %v193
    %594 = vmatprep.subr.mxu0 0.0
    %595 = vmatpush1.msra.mxu0 %v192
    %596 = vmatprep.subr.mxu0 0.0
    %597 = vmatpush2.msra.mxu0 0.0
    %598 = vmatprep.subr.mxu0 0.0
    %599 = vmatpush2.msra.mxu0 0.0
    %600 = vmatprep.subr.mxu0 0.0
    %601 = vmatpush2.msra.mxu0 0.0
    %602 = vmatprep.subr.mxu0 0.0
    %603 = vmatpush2.msra.mxu0 0.0
    %604 = vmatprep.subr.mxu0 0.0
    %605 = vmatpush2.msra.mxu0 0.0
    %606 = vmatprep.subr.mxu0 0.0
    %607 = vmatpush2.msra.mxu0 0.0
    %608 = vmatprep.subr.mxu0 0.0
    %609 = vmatpush2.msra.mxu0 0.0
    %610 = vmatprep.subr.mxu0 0.0
    %611 = vmatpush2.msra.mxu0 0.0
    %612 = vmatprep.subr.mxu0 0.0
    %613 = vmatpush2.msra.mxu0 0.0
    %614 = vmatprep.subr.mxu0 0.0
    %615 = vmatpush2.msra.mxu0 0.0
    %616 = vmatprep.subr.mxu0 0.0
    %617 = vmatpush2.msra.mxu0 0.0
    %618 = vmatprep.subr.mxu0 0.0
    %619 = vmatpush2.msra.mxu0 0.0
    %620 = vmatprep.subr.mxu0 0.0
    %621 = vmatpush2.msra.mxu0 0.0
    %622 = vmatprep.subr.mxu0 0.0
    %623 = vmatpush2.msra.mxu0 0.0
    %624 = vmatprep.subr.mxu0 0.0
    %625 = vmatpush2.msra.mxu0 0.0
    %626 = vmatprep.subr.mxu0 0.0
    %627 = vmatpush2.msra.mxu0 0.0
    %628 = vmatprep.mubr.f32.mxu0 0.0
    %629 = vmatmul.mubr.f32.gmra.mxu0 %v562
    %v630 = vpop.f32.mrf.mxu0
    %v631 = vadd.f32 0.0, %v630
    %v632 = vpop.f32.mrf.mxu0
    %633 = vdwg.mxu0
    %v634 = vadd.f32 %v559, %v631
    %v635 = vadd.f32 %v634, %v277
    %v636 = vxor.u32 %v635, 2147483648
    %v637 = vmul.f32 %v636, 1.442695
    %v638 = vpow.pop %v637
    %v639 = vadd.f32 %v638, 1.0
    %v640 = vrcp.pop %v639
    %v641 = vmul.f32 1.0, %v640
    %v642 = vtanh.pop %v635
    %v643 = vld [vmem:[#allocation5] sm:$0xff]
    %645 = vrot.lane.b32.xlu0 %v643, 32
    %v646 = vpop.permute.xlu0 %645
    %v648 = vmul.f32 %v641, %v646
    %650 = vrot.lane.b32.xlu0 %v642, 64
    %v651 = vpop.permute.xlu0 %650
    %v653 = vmul.f32 %v641, %v651
    %655 = vrot.lane.b32.xlu0 %v653, 32
    %v656 = vpop.permute.xlu0 %655
    %v658 = vadd.f32 %v648, %v656
    %v659 = vtanh.pop %v658
    %661 = vrot.lane.b32.xlu0 %v659, 64
    %v662 = vpop.permute.xlu0 %661
    %v664 = vmul.f32 %v641, %v662
    %666 = vrot.lane.b32.xlu0 %v664, 32
    %v667 = vpop.permute.xlu0 %666
    %669 = vst.msk [vmem:[#allocation4] sm:$0xff] %vm189, %v667
    %671 = vrot.lane.b32.xlu0 %v658, 96
    %v672 = vpop.permute.xlu0 %671
    %674 = vst.msk [vmem:[#allocation5] sm:$0xff] %vm189, %v672
    %s675 = scalar_lea.vmem [#allocation2], 24
    %676 = vst.msk [vmem:[%s675] sm:$0xff] %vm189, %v667
    %s677 = scalar_lea.vmem [#allocation3], 32
    %v678 = vld [vmem:[%s677] sm:$0xff]
    %v679 = vld [vmem:[#allocation4] sm:$0xff]
    %v681 = vsel %vm189, %v679, 0
    %683 = vmatprep.subr.mxu0 0.0
    %684 = vmatpush1.msra.mxu0 0.0
    %685 = vmatprep.subr.mxu0 0.0
    %686 = vmatpush1.msra.mxu0 0.0
    %687 = vmatprep.subr.mxu0 0.0
    %688 = vmatpush1.msra.mxu0 0.0
    %689 = vmatprep.subr.mxu0 0.0
    %690 = vmatpush1.msra.mxu0 0.0
    %691 = vmatprep.subr.mxu0 0.0
    %692 = vmatpush1.msra.mxu0 0.0
    %693 = vmatprep.subr.mxu0 0.0
    %694 = vmatpush1.msra.mxu0 0.0
    %695 = vmatprep.subr.mxu0 0.0
    %696 = vmatpush1.msra.mxu0 0.0
    %697 = vmatprep.subr.mxu0 0.0
    %698 = vmatpush1.msra.mxu0 0.0
    %699 = vmatprep.subr.mxu0 0.0
    %700 = vmatpush1.msra.mxu0 0.0
    %701 = vmatprep.subr.mxu0 0.0
    %702 = vmatpush1.msra.mxu0 0.0
    %703 = vmatprep.subr.mxu0 0.0
    %704 = vmatpush1.msra.mxu0 0.0
    %705 = vmatprep.subr.mxu0 0.0
    %706 = vmatpush1.msra.mxu0 0.0
    %707 = vmatprep.subr.mxu0 0.0
    %708 = vmatpush1.msra.mxu0 %v195
    %709 = vmatprep.subr.mxu0 0.0
    %710 = vmatpush1.msra.mxu0 %v194
    %711 = vmatprep.subr.mxu0 0.0
    %712 = vmatpush1.msra.mxu0 %v193
    %713 = vmatprep.subr.mxu0 0.0
    %714 = vmatpush1.msra.mxu0 %v192
    %715 = vmatprep.subr.mxu0 0.0
    %716 = vmatpush2.msra.mxu0 0.0
    %717 = vmatprep.subr.mxu0 0.0
    %718 = vmatpush2.msra.mxu0 0.0
    %719 = vmatprep.subr.mxu0 0.0
    %720 = vmatpush2.msra.mxu0 0.0
    %721 = vmatprep.subr.mxu0 0.0
    %722 = vmatpush2.msra.mxu0 0.0
    %723 = vmatprep.subr.mxu0 0.0
    %724 = vmatpush2.msra.mxu0 0.0
    %725 = vmatprep.subr.mxu0 0.0
    %726 = vmatpush2.msra.mxu0 0.0
    %727 = vmatprep.subr.mxu0 0.0
    %728 = vmatpush2.msra.mxu0 0.0
    %729 = vmatprep.subr.mxu0 0.0
    %730 = vmatpush2.msra.mxu0 0.0
    %731 = vmatprep.subr.mxu0 0.0
    %732 = vmatpush2.msra.mxu0 0.0
    %733 = vmatprep.subr.mxu0 0.0
    %734 = vmatpush2.msra.mxu0 0.0
    %735 = vmatprep.subr.mxu0 0.0
    %736 = vmatpush2.msra.mxu0 0.0
    %737 = vmatprep.subr.mxu0 0.0
    %738 = vmatpush2.msra.mxu0 0.0
    %739 = vmatprep.subr.mxu0 0.0
    %740 = vmatpush2.msra.mxu0 0.0
    %741 = vmatprep.subr.mxu0 0.0
    %742 = vmatpush2.msra.mxu0 0.0
    %743 = vmatprep.subr.mxu0 0.0
    %744 = vmatpush2.msra.mxu0 0.0
    %745 = vmatprep.subr.mxu0 0.0
    %746 = vmatpush2.msra.mxu0 0.0
    %747 = vmatprep.mubr.f32.mxu0 0.0
    %748 = vmatmul.mubr.f32.gmra.mxu0 %v681
    %v749 = vpop.f32.mrf.mxu0
    %v750 = vadd.f32 0.0, %v749
    %v751 = vpop.f32.mrf.mxu0
    %752 = vdwg.mxu0
    %v753 = vadd.f32 %v678, %v750
    %v754 = vadd.f32 %v753, %v277
    %v755 = vxor.u32 %v754, 2147483648
    %v756 = vmul.f32 %v755, 1.442695
    %v757 = vpow.pop %v756
    %v758 = vadd.f32 %v757, 1.0
    %v759 = vrcp.pop %v758
    %v760 = vmul.f32 1.0, %v759
    %v761 = vtanh.pop %v754
    %v762 = vld [vmem:[#allocation5] sm:$0xff]
    %764 = vrot.lane.b32.xlu0 %v762, 32
    %v765 = vpop.permute.xlu0 %764
    %v767 = vmul.f32 %v760, %v765
    %769 = vrot.lane.b32.xlu0 %v761, 64
    %v770 = vpop.permute.xlu0 %769
    %v772 = vmul.f32 %v760, %v770
    %774 = vrot.lane.b32.xlu0 %v772, 32
    %v775 = vpop.permute.xlu0 %774
    %v777 = vadd.f32 %v767, %v775
    %v778 = vtanh.pop %v777
    %780 = vrot.lane.b32.xlu0 %v778, 64
    %v781 = vpop.permute.xlu0 %780
    %v783 = vmul.f32 %v760, %v781
    %785 = vrot.lane.b32.xlu0 %v783, 32
    %v786 = vpop.permute.xlu0 %785
    %788 = vst.msk [vmem:[#allocation4] sm:$0xff] %vm189, %v786
    %790 = vrot.lane.b32.xlu0 %v777, 96
    %v791 = vpop.permute.xlu0 %790
    %793 = vst.msk [vmem:[#allocation5] sm:$0xff] %vm189, %v791
    %s794 = scalar_lea.vmem [#allocation2], 32
    %795 = vst.msk [vmem:[%s794] sm:$0xff] %vm189, %v786
    %s796 = scalar_lea.vmem [#allocation3], 40
    %v797 = vld [vmem:[%s796] sm:$0xff]
    %v798 = vld [vmem:[#allocation4] sm:$0xff]
    %v800 = vsel %vm189, %v798, 0
    %802 = vmatprep.subr.mxu0 0.0
    %803 = vmatpush1.msra.mxu0 0.0
    %804 = vmatprep.subr.mxu0 0.0
    %805 = vmatpush1.msra.mxu0 0.0
    %806 = vmatprep.subr.mxu0 0.0
    %807 = vmatpush1.msra.mxu0 0.0
    %808 = vmatprep.subr.mxu0 0.0
    %809 = vmatpush1.msra.mxu0 0.0
    %810 = vmatprep.subr.mxu0 0.0
    %811 = vmatpush1.msra.mxu0 0.0
    %812 = vmatprep.subr.mxu0 0.0
    %813 = vmatpush1.msra.mxu0 0.0
    %814 = vmatprep.subr.mxu0 0.0
    %815 = vmatpush1.msra.mxu0 0.0
    %816 = vmatprep.subr.mxu0 0.0
    %817 = vmatpush1.msra.mxu0 0.0
    %818 = vmatprep.subr.mxu0 0.0
    %819 = vmatpush1.msra.mxu0 0.0
    %820 = vmatprep.subr.mxu0 0.0
    %821 = vmatpush1.msra.mxu0 0.0
    %822 = vmatprep.subr.mxu0 0.0
    %823 = vmatpush1.msra.mxu0 0.0
    %824 = vmatprep.subr.mxu0 0.0
    %825 = vmatpush1.msra.mxu0 0.0
    %826 = vmatprep.subr.mxu0 0.0
    %827 = vmatpush1.msra.mxu0 %v195
    %828 = vmatprep.subr.mxu0 0.0
    %829 = vmatpush1.msra.mxu0 %v194
    %830 = vmatprep.subr.mxu0 0.0
    %831 = vmatpush1.msra.mxu0 %v193
    %832 = vmatprep.subr.mxu0 0.0
    %833 = vmatpush1.msra.mxu0 %v192
    %834 = vmatprep.subr.mxu0 0.0
    %835 = vmatpush2.msra.mxu0 0.0
    %836 = vmatprep.subr.mxu0 0.0
    %837 = vmatpush2.msra.mxu0 0.0
    %838 = vmatprep.subr.mxu0 0.0
    %839 = vmatpush2.msra.mxu0 0.0
    %840 = vmatprep.subr.mxu0 0.0
    %841 = vmatpush2.msra.mxu0 0.0
    %842 = vmatprep.subr.mxu0 0.0
    %843 = vmatpush2.msra.mxu0 0.0
    %844 = vmatprep.subr.mxu0 0.0
    %845 = vmatpush2.msra.mxu0 0.0
    %846 = vmatprep.subr.mxu0 0.0
    %847 = vmatpush2.msra.mxu0 0.0
    %848 = vmatprep.subr.mxu0 0.0
    %849 = vmatpush2.msra.mxu0 0.0
    %850 = vmatprep.subr.mxu0 0.0
    %851 = vmatpush2.msra.mxu0 0.0
    %852 = vmatprep.subr.mxu0 0.0
    %853 = vmatpush2.msra.mxu0 0.0
    %854 = vmatprep.subr.mxu0 0.0
    %855 = vmatpush2.msra.mxu0 0.0
    %856 = vmatprep.subr.mxu0 0.0
    %857 = vmatpush2.msra.mxu0 0.0
    %858 = vmatprep.subr.mxu0 0.0
    %859 = vmatpush2.msra.mxu0 0.0
    %860 = vmatprep.subr.mxu0 0.0
    %861 = vmatpush2.msra.mxu0 0.0
    %862 = vmatprep.subr.mxu0 0.0
    %863 = vmatpush2.msra.mxu0 0.0
    %864 = vmatprep.subr.mxu0 0.0
    %865 = vmatpush2.msra.mxu0 0.0
    %866 = vmatprep.mubr.f32.mxu0 0.0
    %867 = vmatmul.mubr.f32.gmra.mxu0 %v800
    %v868 = vpop.f32.mrf.mxu0
    %v869 = vadd.f32 0.0, %v868
    %v870 = vpop.f32.mrf.mxu0
    %871 = vdwg.mxu0
    %v872 = vadd.f32 %v797, %v869
    %v873 = vadd.f32 %v872, %v277
    %v874 = vxor.u32 %v873, 2147483648
    %v875 = vmul.f32 %v874, 1.442695
    %v876 = vpow.pop %v875
    %v877 = vadd.f32 %v876, 1.0
    %v878 = vrcp.pop %v877
    %v879 = vmul.f32 1.0, %v878
    %v880 = vtanh.pop %v873
    %v881 = vld [vmem:[#allocation5] sm:$0xff]
    %883 = vrot.lane.b32.xlu0 %v881, 32
    %v884 = vpop.permute.xlu0 %883
    %v886 = vmul.f32 %v879, %v884
    %888 = vrot.lane.b32.xlu0 %v880, 64
    %v889 = vpop.permute.xlu0 %888
    %v891 = vmul.f32 %v879, %v889
    %893 = vrot.lane.b32.xlu0 %v891, 32
    %v894 = vpop.permute.xlu0 %893
    %v896 = vadd.f32 %v886, %v894
    %v897 = vtanh.pop %v896
    %899 = vrot.lane.b32.xlu0 %v897, 64
    %v900 = vpop.permute.xlu0 %899
    %v902 = vmul.f32 %v879, %v900
    %904 = vrot.lane.b32.xlu0 %v902, 32
    %v905 = vpop.permute.xlu0 %904
    %907 = vst.msk [vmem:[#allocation4] sm:$0xff] %vm189, %v905
    %909 = vrot.lane.b32.xlu0 %v896, 96
    %v910 = vpop.permute.xlu0 %909
    %912 = vst.msk [vmem:[#allocation5] sm:$0xff] %vm189, %v910
    %s913 = scalar_lea.vmem [#allocation2], 40
    %914 = vst.msk [vmem:[%s913] sm:$0xff] %vm189, %v905
    %s915 = scalar_lea.vmem [#allocation3], 48
    %v916 = vld [vmem:[%s915] sm:$0xff]
    %v917 = vld [vmem:[#allocation4] sm:$0xff]
    %v919 = vsel %vm189, %v917, 0
    %921 = vmatprep.subr.mxu0 0.0
    %922 = vmatpush1.msra.mxu0 0.0
    %923 = vmatprep.subr.mxu0 0.0
    %924 = vmatpush1.msra.mxu0 0.0
    %925 = vmatprep.subr.mxu0 0.0
    %926 = vmatpush1.msra.mxu0 0.0
    %927 = vmatprep.subr.mxu0 0.0
    %928 = vmatpush1.msra.mxu0 0.0
    %929 = vmatprep.subr.mxu0 0.0
    %930 = vmatpush1.msra.mxu0 0.0
    %931 = vmatprep.subr.mxu0 0.0
    %932 = vmatpush1.msra.mxu0 0.0
    %933 = vmatprep.subr.mxu0 0.0
    %934 = vmatpush1.msra.mxu0 0.0
    %935 = vmatprep.subr.mxu0 0.0
    %936 = vmatpush1.msra.mxu0 0.0
    %937 = vmatprep.subr.mxu0 0.0
    %938 = vmatpush1.msra.mxu0 0.0
    %939 = vmatprep.subr.mxu0 0.0
    %940 = vmatpush1.msra.mxu0 0.0
    %941 = vmatprep.subr.mxu0 0.0
    %942 = vmatpush1.msra.mxu0 0.0
    %943 = vmatprep.subr.mxu0 0.0
    %944 = vmatpush1.msra.mxu0 0.0
    %945 = vmatprep.subr.mxu0 0.0
    %946 = vmatpush1.msra.mxu0 %v195
    %947 = vmatprep.subr.mxu0 0.0
    %948 = vmatpush1.msra.mxu0 %v194
    %949 = vmatprep.subr.mxu0 0.0
    %950 = vmatpush1.msra.mxu0 %v193
    %951 = vmatprep.subr.mxu0 0.0
    %952 = vmatpush1.msra.mxu0 %v192
    %953 = vmatprep.subr.mxu0 0.0
    %954 = vmatpush2.msra.mxu0 0.0
    %955 = vmatprep.subr.mxu0 0.0
    %956 = vmatpush2.msra.mxu0 0.0
    %957 = vmatprep.subr.mxu0 0.0
    %958 = vmatpush2.msra.mxu0 0.0
    %959 = vmatprep.subr.mxu0 0.0
    %960 = vmatpush2.msra.mxu0 0.0
    %961 = vmatprep.subr.mxu0 0.0
    %962 = vmatpush2.msra.mxu0 0.0
    %963 = vmatprep.subr.mxu0 0.0
    %964 = vmatpush2.msra.mxu0 0.0
    %965 = vmatprep.subr.mxu0 0.0
    %966 = vmatpush2.msra.mxu0 0.0
    %967 = vmatprep.subr.mxu0 0.0
    %968 = vmatpush2.msra.mxu0 0.0
    %969 = vmatprep.subr.mxu0 0.0
    %970 = vmatpush2.msra.mxu0 0.0
    %971 = vmatprep.subr.mxu0 0.0
    %972 = vmatpush2.msra.mxu0 0.0
    %973 = vmatprep.subr.mxu0 0.0
    %974 = vmatpush2.msra.mxu0 0.0
    %975 = vmatprep.subr.mxu0 0.0
    %976 = vmatpush2.msra.mxu0 0.0
    %977 = vmatprep.subr.mxu0 0.0
    %978 = vmatpush2.msra.mxu0 0.0
    %979 = vmatprep.subr.mxu0 0.0
    %980 = vmatpush2.msra.mxu0 0.0
    %981 = vmatprep.subr.mxu0 0.0
    %982 = vmatpush2.msra.mxu0 0.0
    %983 = vmatprep.subr.mxu0 0.0
    %984 = vmatpush2.msra.mxu0 0.0
    %985 = vmatprep.mubr.f32.mxu0 0.0
    %986 = vmatmul.mubr.f32.gmra.mxu0 %v919
    %v987 = vpop.f32.mrf.mxu0
    %v988 = vadd.f32 0.0, %v987
    %v989 = vpop.f32.mrf.mxu0
    %990 = vdwg.mxu0
    %v991 = vadd.f32 %v916, %v988
    %v992 = vadd.f32 %v991, %v277
    %v993 = vxor.u32 %v992, 2147483648
    %v994 = vmul.f32 %v993, 1.442695
    %v995 = vpow.pop %v994
    %v996 = vadd.f32 %v995, 1.0
    %v997 = vrcp.pop %v996
    %v998 = vmul.f32 1.0, %v997
    %v999 = vtanh.pop %v992
    %v1000 = vld [vmem:[#allocation5] sm:$0xff]
    %1002 = vrot.lane.b32.xlu0 %v1000, 32
    %v1003 = vpop.permute.xlu0 %1002
    %v1005 = vmul.f32 %v998, %v1003
    %1007 = vrot.lane.b32.xlu0 %v999, 64
    %v1008 = vpop.permute.xlu0 %1007
    %v1010 = vmul.f32 %v998, %v1008
    %1012 = vrot.lane.b32.xlu0 %v1010, 32
    %v1013 = vpop.permute.xlu0 %1012
    %v1015 = vadd.f32 %v1005, %v1013
    %v1016 = vtanh.pop %v1015
    %1018 = vrot.lane.b32.xlu0 %v1016, 64
    %v1019 = vpop.permute.xlu0 %1018
    %v1021 = vmul.f32 %v998, %v1019
    %1023 = vrot.lane.b32.xlu0 %v1021, 32
    %v1024 = vpop.permute.xlu0 %1023
    %1026 = vst.msk [vmem:[#allocation4] sm:$0xff] %vm189, %v1024
    %1028 = vrot.lane.b32.xlu0 %v1015, 96
    %v1029 = vpop.permute.xlu0 %1028
    %1031 = vst.msk [vmem:[#allocation5] sm:$0xff] %vm189, %v1029
    %s1032 = scalar_lea.vmem [#allocation2], 48
    %1033 = vst.msk [vmem:[%s1032] sm:$0xff] %vm189, %v1024
    %s1034 = scalar_lea.vmem [#allocation3], 56
    %v1035 = vld [vmem:[%s1034] sm:$0xff]
    %v1036 = vld [vmem:[#allocation4] sm:$0xff]
    %v1038 = vsel %vm189, %v1036, 0
    %1040 = vmatprep.subr.mxu0 0.0
    %1041 = vmatpush1.msra.mxu0 0.0
    %1042 = vmatprep.subr.mxu0 0.0
    %1043 = vmatpush1.msra.mxu0 0.0
    %1044 = vmatprep.subr.mxu0 0.0
    %1045 = vmatpush1.msra.mxu0 0.0
    %1046 = vmatprep.subr.mxu0 0.0
    %1047 = vmatpush1.msra.mxu0 0.0
    %1048 = vmatprep.subr.mxu0 0.0
    %1049 = vmatpush1.msra.mxu0 0.0
    %1050 = vmatprep.subr.mxu0 0.0
    %1051 = vmatpush1.msra.mxu0 0.0
    %1052 = vmatprep.subr.mxu0 0.0
    %1053 = vmatpush1.msra.mxu0 0.0
    %1054 = vmatprep.subr.mxu0 0.0
    %1055 = vmatpush1.msra.mxu0 0.0
    %1056 = vmatprep.subr.mxu0 0.0
    %1057 = vmatpush1.msra.mxu0 0.0
    %1058 = vmatprep.subr.mxu0 0.0
    %1059 = vmatpush1.msra.mxu0 0.0
    %1060 = vmatprep.subr.mxu0 0.0
    %1061 = vmatpush1.msra.mxu0 0.0
    %1062 = vmatprep.subr.mxu0 0.0
    %1063 = vmatpush1.msra.mxu0 0.0
    %1064 = vmatprep.subr.mxu0 0.0
    %1065 = vmatpush1.msra.mxu0 %v195
    %1066 = vmatprep.subr.mxu0 0.0
    %1067 = vmatpush1.msra.mxu0 %v194
    %1068 = vmatprep.subr.mxu0 0.0
    %1069 = vmatpush1.msra.mxu0 %v193
    %1070 = vmatprep.subr.mxu0 0.0
    %1071 = vmatpush1.msra.mxu0 %v192
    %1072 = vmatprep.subr.mxu0 0.0
    %1073 = vmatpush2.msra.mxu0 0.0
    %1074 = vmatprep.subr.mxu0 0.0
    %1075 = vmatpush2.msra.mxu0 0.0
    %1076 = vmatprep.subr.mxu0 0.0
    %1077 = vmatpush2.msra.mxu0 0.0
    %1078 = vmatprep.subr.mxu0 0.0
    %1079 = vmatpush2.msra.mxu0 0.0
    %1080 = vmatprep.subr.mxu0 0.0
    %1081 = vmatpush2.msra.mxu0 0.0
    %1082 = vmatprep.subr.mxu0 0.0
    %1083 = vmatpush2.msra.mxu0 0.0
    %1084 = vmatprep.subr.mxu0 0.0
    %1085 = vmatpush2.msra.mxu0 0.0
    %1086 = vmatprep.subr.mxu0 0.0
    %1087 = vmatpush2.msra.mxu0 0.0
    %1088 = vmatprep.subr.mxu0 0.0
    %1089 = vmatpush2.msra.mxu0 0.0
    %1090 = vmatprep.subr.mxu0 0.0
    %1091 = vmatpush2.msra.mxu0 0.0
    %1092 = vmatprep.subr.mxu0 0.0
    %1093 = vmatpush2.msra.mxu0 0.0
    %1094 = vmatprep.subr.mxu0 0.0
    %1095 = vmatpush2.msra.mxu0 0.0
    %1096 = vmatprep.subr.mxu0 0.0
    %1097 = vmatpush2.msra.mxu0 0.0
    %1098 = vmatprep.subr.mxu0 0.0
    %1099 = vmatpush2.msra.mxu0 0.0
    %1100 = vmatprep.subr.mxu0 0.0
    %1101 = vmatpush2.msra.mxu0 0.0
    %1102 = vmatprep.subr.mxu0 0.0
    %1103 = vmatpush2.msra.mxu0 0.0
    %1104 = vmatprep.mubr.f32.mxu0 0.0
    %1105 = vmatmul.mubr.f32.gmra.mxu0 %v1038
    %v1106 = vpop.f32.mrf.mxu0
    %v1107 = vadd.f32 0.0, %v1106
    %v1108 = vpop.f32.mrf.mxu0
    %1109 = vdwg.mxu0
    %v1110 = vadd.f32 %v1035, %v1107
    %v1111 = vadd.f32 %v1110, %v277
    %v1112 = vxor.u32 %v1111, 2147483648
    %v1113 = vmul.f32 %v1112, 1.442695
    %v1114 = vpow.pop %v1113
    %v1115 = vadd.f32 %v1114, 1.0
    %v1116 = vrcp.pop %v1115
    %v1117 = vmul.f32 1.0, %v1116
    %v1118 = vtanh.pop %v1111
    %v1119 = vld [vmem:[#allocation5] sm:$0xff]
    %1121 = vrot.lane.b32.xlu0 %v1119, 32
    %v1122 = vpop.permute.xlu0 %1121
    %v1124 = vmul.f32 %v1117, %v1122
    %1126 = vrot.lane.b32.xlu0 %v1118, 64
    %v1127 = vpop.permute.xlu0 %1126
    %v1129 = vmul.f32 %v1117, %v1127
    %1131 = vrot.lane.b32.xlu0 %v1129, 32
    %v1132 = vpop.permute.xlu0 %1131
    %v1134 = vadd.f32 %v1124, %v1132
    %v1135 = vtanh.pop %v1134
    %1137 = vrot.lane.b32.xlu0 %v1135, 64
    %v1138 = vpop.permute.xlu0 %1137
    %v1140 = vmul.f32 %v1117, %v1138
    %1142 = vrot.lane.b32.xlu0 %v1140, 32
    %v1143 = vpop.permute.xlu0 %1142
    %1145 = vst.msk [vmem:[#allocation4] sm:$0xff] %vm189, %v1143
    %1147 = vrot.lane.b32.xlu0 %v1134, 96
    %v1148 = vpop.permute.xlu0 %1147
    %1150 = vst.msk [vmem:[#allocation5] sm:$0xff] %vm189, %v1148
    %s1151 = scalar_lea.vmem [#allocation2], 56
    %1152 = vst.msk [vmem:[%s1151] sm:$0xff] %vm189, %v1143
    %v1153 = vld [vmem:[#allocation2] sm:$0xff]
    %v1154 = vld [vmem:[#allocation2 + $0x8] sm:$0xff]
    %v1155 = vld [vmem:[#allocation2 + $0x10] sm:$0xff]
    %v1156 = vld [vmem:[#allocation2 + $0x18] sm:$0xff]
    %v1157 = vld [vmem:[#allocation2 + $0x20] sm:$0xff]
    %v1158 = vld [vmem:[#allocation2 + $0x28] sm:$0xff]
    %v1159 = vld [vmem:[#allocation2 + $0x30] sm:$0xff]
    %v1160 = vld [vmem:[#allocation2 + $0x38] sm:$0xff]
    %v1161 = vld [vmem:[%s2] sm:$0xff]
    %v1162 = vld [vmem:[%s2 + $0x8] sm:$0xff]
    %v1163 = vld [vmem:[%s2 + $0x10] sm:$0xff]
    %v1164 = vld [vmem:[%s2 + $0x18] sm:$0xff]
    %v1166 = vsel %vm189, %v1153, 0
    %v1169 = vsel %vm189, %v1154, 0
    %v1172 = vsel %vm189, %v1155, 0
    %v1175 = vsel %vm189, %v1156, 0
    %v1178 = vsel %vm189, %v1157, 0
    %v1181 = vsel %vm189, %v1158, 0
    %v1184 = vsel %vm189, %v1159, 0
    %v1187 = vsel %vm189, %v1160, 0
    %1189 = vmatprep.subr.mxu0 0.0
    %1190 = vmatpush1.msra.mxu0 0.0
    %1191 = vmatprep.subr.mxu0 0.0
    %1192 = vmatpush1.msra.mxu0 0.0
    %1193 = vmatprep.subr.mxu0 0.0
    %1194 = vmatpush1.msra.mxu0 0.0
    %1195 = vmatprep.subr.mxu0 0.0
    %1196 = vmatpush1.msra.mxu0 0.0
    %1197 = vmatprep.subr.mxu0 0.0
    %1198 = vmatpush1.msra.mxu0 0.0
    %1199 = vmatprep.subr.mxu0 0.0
    %1200 = vmatpush1.msra.mxu0 0.0
    %1201 = vmatprep.subr.mxu0 0.0
    %1202 = vmatpush1.msra.mxu0 0.0
    %1203 = vmatprep.subr.mxu0 0.0
    %1204 = vmatpush1.msra.mxu0 0.0
    %1205 = vmatprep.subr.mxu0 0.0
    %1206 = vmatpush1.msra.mxu0 0.0
    %1207 = vmatprep.subr.mxu0 0.0
    %1208 = vmatpush1.msra.mxu0 0.0
    %1209 = vmatprep.subr.mxu0 0.0
    %1210 = vmatpush1.msra.mxu0 0.0
    %1211 = vmatprep.subr.mxu0 0.0
    %1212 = vmatpush1.msra.mxu0 0.0
    %1213 = vmatprep.subr.mxu0 0.0
    %1214 = vmatpush1.msra.mxu0 %v1164
    %1215 = vmatprep.subr.mxu0 0.0
    %1216 = vmatpush1.msra.mxu0 %v1163
    %1217 = vmatprep.subr.mxu0 0.0
    %1218 = vmatpush1.msra.mxu0 %v1162
    %1219 = vmatprep.subr.mxu0 0.0
    %1220 = vmatpush1.msra.mxu0 %v1161
    %1221 = vmatprep.subr.mxu0 0.0
    %1222 = vmatpush2.msra.mxu0 0.0
    %1223 = vmatprep.subr.mxu0 0.0
    %1224 = vmatpush2.msra.mxu0 0.0
    %1225 = vmatprep.subr.mxu0 0.0
    %1226 = vmatpush2.msra.mxu0 0.0
    %1227 = vmatprep.subr.mxu0 0.0
    %1228 = vmatpush2.msra.mxu0 0.0
    %1229 = vmatprep.subr.mxu0 0.0
    %1230 = vmatpush2.msra.mxu0 0.0
    %1231 = vmatprep.subr.mxu0 0.0
    %1232 = vmatpush2.msra.mxu0 0.0
    %1233 = vmatprep.subr.mxu0 0.0
    %1234 = vmatpush2.msra.mxu0 0.0
    %1235 = vmatprep.subr.mxu0 0.0
    %1236 = vmatpush2.msra.mxu0 0.0
    %1237 = vmatprep.subr.mxu0 0.0
    %1238 = vmatpush2.msra.mxu0 0.0
    %1239 = vmatprep.subr.mxu0 0.0
    %1240 = vmatpush2.msra.mxu0 0.0
    %1241 = vmatprep.subr.mxu0 0.0
    %1242 = vmatpush2.msra.mxu0 0.0
    %1243 = vmatprep.subr.mxu0 0.0
    %1244 = vmatpush2.msra.mxu0 0.0
    %1245 = vmatprep.subr.mxu0 0.0
    %1246 = vmatpush2.msra.mxu0 0.0
    %1247 = vmatprep.subr.mxu0 0.0
    %1248 = vmatpush2.msra.mxu0 0.0
    %1249 = vmatprep.subr.mxu0 0.0
    %1250 = vmatpush2.msra.mxu0 0.0
    %1251 = vmatprep.subr.mxu0 0.0
    %1252 = vmatpush2.msra.mxu0 0.0
    %1253 = vmatprep.mubr.f32.mxu0 0.0
    %1254 = vmatmul.mubr.f32.gmra.mxu0 %v1166
    %v1255 = vpop.f32.mrf.mxu0
    %v1256 = vadd.f32 0.0, %v1255
    %v1257 = vpop.f32.mrf.mxu0
    %1258 = vmatprep.mubr.f32.mxu0 0.0
    %1259 = vmatmul.mubr.f32.gmra.mxu0 %v1169
    %v1260 = vpop.f32.mrf.mxu0
    %v1261 = vadd.f32 0.0, %v1260
    %v1262 = vpop.f32.mrf.mxu0
    %1263 = vmatprep.mubr.f32.mxu0 0.0
    %1264 = vmatmul.mubr.f32.gmra.mxu0 %v1172
    %v1265 = vpop.f32.mrf.mxu0
    %v1266 = vadd.f32 0.0, %v1265
    %v1267 = vpop.f32.mrf.mxu0
    %1268 = vmatprep.mubr.f32.mxu0 0.0
    %1269 = vmatmul.mubr.f32.gmra.mxu0 %v1175
    %v1270 = vpop.f32.mrf.mxu0
    %v1271 = vadd.f32 0.0, %v1270
    %v1272 = vpop.f32.mrf.mxu0
    %1273 = vmatprep.mubr.f32.mxu0 0.0
    %1274 = vmatmul.mubr.f32.gmra.mxu0 %v1178
    %v1275 = vpop.f32.mrf.mxu0
    %v1276 = vadd.f32 0.0, %v1275
    %v1277 = vpop.f32.mrf.mxu0
    %1278 = vmatprep.mubr.f32.mxu0 0.0
    %1279 = vmatmul.mubr.f32.gmra.mxu0 %v1181
    %v1280 = vpop.f32.mrf.mxu0
    %v1281 = vadd.f32 0.0, %v1280
    %v1282 = vpop.f32.mrf.mxu0
    %1283 = vmatprep.mubr.f32.mxu0 0.0
    %1284 = vmatmul.mubr.f32.gmra.mxu0 %v1184
    %v1285 = vpop.f32.mrf.mxu0
    %v1286 = vadd.f32 0.0, %v1285
    %v1287 = vpop.f32.mrf.mxu0
    %1288 = vmatprep.mubr.f32.mxu0 0.0
    %1289 = vmatmul.mubr.f32.gmra.mxu0 %v1187
    %v1290 = vpop.f32.mrf.mxu0
    %v1291 = vadd.f32 0.0, %v1290
    %v1292 = vpop.f32.mrf.mxu0
    %1293 = vdwg.mxu0
    %1294 = vst [vmem:[#allocation3] sm:$0xff] %v1256
    %1295 = vst [vmem:[#allocation3 + $0x8] sm:$0xff] %v1261
    %1296 = vst [vmem:[#allocation3 + $0x10] sm:$0xff] %v1266
    %1297 = vst [vmem:[#allocation3 + $0x18] sm:$0xff] %v1271
    %1298 = vst [vmem:[#allocation3 + $0x20] sm:$0xff] %v1276
    %1299 = vst [vmem:[#allocation3 + $0x28] sm:$0xff] %v1281
    %1300 = vst [vmem:[#allocation3 + $0x30] sm:$0xff] %v1286
    %1301 = vst [vmem:[#allocation3 + $0x38] sm:$0xff] %v1291
    %1302 = vst.msk [vmem:[#allocation4] sm:$0xff] %vm189, 0.0
    %1303 = vst.msk [vmem:[#allocation5] sm:$0xff] %vm189, 0.0
    %s1304 = scalar_lea.vmem %s3, 32
    %v1305 = vld [vmem:[%s1304] sm:$0xff]
    %v1306 = vld [vmem:[%s1304 + $0x8] sm:$0xff]
    %v1307 = vld [vmem:[%s1304 + $0x10] sm:$0xff]
    %v1308 = vld [vmem:[%s1304 + $0x18] sm:$0xff]
    %s1309 = scalar_lea.vmem %s4, 1
    %v1310 = vld [vmem:[%s1309] sm:$0x1]
    %v1311 = vld [vmem:[#allocation3] sm:$0xff]
    %v1312 = vld [vmem:[#allocation4] sm:$0xff]
    %v1314 = vsel %vm189, %v1312, 0
    %1316 = vmatprep.subr.mxu0 0.0
    %1317 = vmatpush1.msra.mxu0 0.0
    %1318 = vmatprep.subr.mxu0 0.0
    %1319 = vmatpush1.msra.mxu0 0.0
    %1320 = vmatprep.subr.mxu0 0.0
    %1321 = vmatpush1.msra.mxu0 0.0
    %1322 = vmatprep.subr.mxu0 0.0
    %1323 = vmatpush1.msra.mxu0 0.0
    %1324 = vmatprep.subr.mxu0 0.0
    %1325 = vmatpush1.msra.mxu0 0.0
    %1326 = vmatprep.subr.mxu0 0.0
    %1327 = vmatpush1.msra.mxu0 0.0
    %1328 = vmatprep.subr.mxu0 0.0
    %1329 = vmatpush1.msra.mxu0 0.0
    %1330 = vmatprep.subr.mxu0 0.0
    %1331 = vmatpush1.msra.mxu0 0.0
    %1332 = vmatprep.subr.mxu0 0.0
    %1333 = vmatpush1.msra.mxu0 0.0
    %1334 = vmatprep.subr.mxu0 0.0
    %1335 = vmatpush1.msra.mxu0 0.0
    %1336 = vmatprep.subr.mxu0 0.0
    %1337 = vmatpush1.msra.mxu0 0.0
    %1338 = vmatprep.subr.mxu0 0.0
    %1339 = vmatpush1.msra.mxu0 0.0
    %1340 = vmatprep.subr.mxu0 0.0
    %1341 = vmatpush1.msra.mxu0 %v1308
    %1342 = vmatprep.subr.mxu0 0.0
    %1343 = vmatpush1.msra.mxu0 %v1307
    %1344 = vmatprep.subr.mxu0 0.0
    %1345 = vmatpush1.msra.mxu0 %v1306
    %1346 = vmatprep.subr.mxu0 0.0
    %1347 = vmatpush1.msra.mxu0 %v1305
    %1348 = vmatprep.subr.mxu0 0.0
    %1349 = vmatpush2.msra.mxu0 0.0
    %1350 = vmatprep.subr.mxu0 0.0
    %1351 = vmatpush2.msra.mxu0 0.0
    %1352 = vmatprep.subr.mxu0 0.0
    %1353 = vmatpush2.msra.mxu0 0.0
    %1354 = vmatprep.subr.mxu0 0.0
    %1355 = vmatpush2.msra.mxu0 0.0
    %1356 = vmatprep.subr.mxu0 0.0
    %1357 = vmatpush2.msra.mxu0 0.0
    %1358 = vmatprep.subr.mxu0 0.0
    %1359 = vmatpush2.msra.mxu0 0.0
    %1360 = vmatprep.subr.mxu0 0.0
    %1361 = vmatpush2.msra.mxu0 0.0
    %1362 = vmatprep.subr.mxu0 0.0
    %1363 = vmatpush2.msra.mxu0 0.0
    %1364 = vmatprep.subr.mxu0 0.0
    %1365 = vmatpush2.msra.mxu0 0.0
    %1366 = vmatprep.subr.mxu0 0.0
    %1367 = vmatpush2.msra.mxu0 0.0
    %1368 = vmatprep.subr.mxu0 0.0
    %1369 = vmatpush2.msra.mxu0 0.0
    %1370 = vmatprep.subr.mxu0 0.0
    %1371 = vmatpush2.msra.mxu0 0.0
    %1372 = vmatprep.subr.mxu0 0.0
    %1373 = vmatpush2.msra.mxu0 0.0
    %1374 = vmatprep.subr.mxu0 0.0
    %1375 = vmatpush2.msra.mxu0 0.0
    %1376 = vmatprep.subr.mxu0 0.0
    %1377 = vmatpush2.msra.mxu0 0.0
    %1378 = vmatprep.subr.mxu0 0.0
    %1379 = vmatpush2.msra.mxu0 0.0
    %1380 = vmatprep.mubr.f32.mxu0 0.0
    %1381 = vmatmul.mubr.f32.gmra.mxu0 %v1314
    %v1382 = vpop.f32.mrf.mxu0
    %v1383 = vadd.f32 0.0, %v1382
    %v1384 = vpop.f32.mrf.mxu0
    %1385 = vdwg.mxu0
    %v1386 = vadd.f32 %v1311, %v1383
    %v1388 = vlaneseq
    %v1389 = vshrl.u32 %v1388, 7
    %v1390 = vsub.s32 0, %v1389
    %v1391 = vrot.slane %v1310, %v1390
    %v1393 = vadd.f32 %v1386, %v1391
    %v1394 = vxor.u32 %v1393, 2147483648
    %v1395 = vmul.f32 %v1394, 1.442695
    %v1396 = vpow.pop %v1395
    %v1397 = vadd.f32 %v1396, 1.0
    %v1398 = vrcp.pop %v1397
    %v1399 = vmul.f32 1.0, %v1398
    %v1400 = vtanh.pop %v1393
    %v1401 = vld [vmem:[#allocation5] sm:$0xff]
    %1403 = vrot.lane.b32.xlu0 %v1401, 32
    %v1404 = vpop.permute.xlu0 %1403
    %v1406 = vmul.f32 %v1399, %v1404
    %1408 = vrot.lane.b32.xlu0 %v1400, 64
    %v1409 = vpop.permute.xlu0 %1408
    %v1411 = vmul.f32 %v1399, %v1409
    %1413 = vrot.lane.b32.xlu0 %v1411, 32
    %v1414 = vpop.permute.xlu0 %1413
    %v1416 = vadd.f32 %v1406, %v1414
    %v1417 = vtanh.pop %v1416
    %1419 = vrot.lane.b32.xlu0 %v1417, 64
    %v1420 = vpop.permute.xlu0 %1419
    %v1422 = vmul.f32 %v1399, %v1420
    %1424 = vrot.lane.b32.xlu0 %v1422, 32
    %v1425 = vpop.permute.xlu0 %1424
    %1427 = vst.msk [vmem:[#allocation4] sm:$0xff] %vm189, %v1425
    %1429 = vrot.lane.b32.xlu0 %v1416, 96
    %v1430 = vpop.permute.xlu0 %1429
    %1432 = vst.msk [vmem:[#allocation5] sm:$0xff] %vm189, %v1430
    %1433 = vst.msk [vmem:[#allocation2] sm:$0xff] %vm189, %v1425
    %v1434 = vld [vmem:[%s320] sm:$0xff]
    %v1435 = vld [vmem:[#allocation4] sm:$0xff]
    %v1437 = vsel %vm189, %v1435, 0
    %1439 = vmatprep.subr.mxu0 0.0
    %1440 = vmatpush1.msra.mxu0 0.0
    %1441 = vmatprep.subr.mxu0 0.0
    %1442 = vmatpush1.msra.mxu0 0.0
    %1443 = vmatprep.subr.mxu0 0.0
    %1444 = vmatpush1.msra.mxu0 0.0
    %1445 = vmatprep.subr.mxu0 0.0
    %1446 = vmatpush1.msra.mxu0 0.0
    %1447 = vmatprep.subr.mxu0 0.0
    %1448 = vmatpush1.msra.mxu0 0.0
    %1449 = vmatprep.subr.mxu0 0.0
    %1450 = vmatpush1.msra.mxu0 0.0
    %1451 = vmatprep.subr.mxu0 0.0
    %1452 = vmatpush1.msra.mxu0 0.0
    %1453 = vmatprep.subr.mxu0 0.0
    %1454 = vmatpush1.msra.mxu0 0.0
    %1455 = vmatprep.subr.mxu0 0.0
    %1456 = vmatpush1.msra.mxu0 0.0
    %1457 = vmatprep.subr.mxu0 0.0
    %1458 = vmatpush1.msra.mxu0 0.0
    %1459 = vmatprep.subr.mxu0 0.0
    %1460 = vmatpush1.msra.mxu0 0.0
    %1461 = vmatprep.subr.mxu0 0.0
    %1462 = vmatpush1.msra.mxu0 0.0
    %1463 = vmatprep.subr.mxu0 0.0
    %1464 = vmatpush1.msra.mxu0 %v1308
    %1465 = vmatprep.subr.mxu0 0.0
    %1466 = vmatpush1.msra.mxu0 %v1307
    %1467 = vmatprep.subr.mxu0 0.0
    %1468 = vmatpush1.msra.mxu0 %v1306
    %1469 = vmatprep.subr.mxu0 0.0
    %1470 = vmatpush1.msra.mxu0 %v1305
    %1471 = vmatprep.subr.mxu0 0.0
    %1472 = vmatpush2.msra.mxu0 0.0
    %1473 = vmatprep.subr.mxu0 0.0
    %1474 = vmatpush2.msra.mxu0 0.0
    %1475 = vmatprep.subr.mxu0 0.0
    %1476 = vmatpush2.msra.mxu0 0.0
    %1477 = vmatprep.subr.mxu0 0.0
    %1478 = vmatpush2.msra.mxu0 0.0
    %1479 = vmatprep.subr.mxu0 0.0
    %1480 = vmatpush2.msra.mxu0 0.0
    %1481 = vmatprep.subr.mxu0 0.0
    %1482 = vmatpush2.msra.mxu0 0.0
    %1483 = vmatprep.subr.mxu0 0.0
    %1484 = vmatpush2.msra.mxu0 0.0
    %1485 = vmatprep.subr.mxu0 0.0
    %1486 = vmatpush2.msra.mxu0 0.0
    %1487 = vmatprep.subr.mxu0 0.0
    %1488 = vmatpush2.msra.mxu0 0.0
    %1489 = vmatprep.subr.mxu0 0.0
    %1490 = vmatpush2.msra.mxu0 0.0
    %1491 = vmatprep.subr.mxu0 0.0
    %1492 = vmatpush2.msra.mxu0 0.0
    %1493 = vmatprep.subr.mxu0 0.0
    %1494 = vmatpush2.msra.mxu0 0.0
    %1495 = vmatprep.subr.mxu0 0.0
    %1496 = vmatpush2.msra.mxu0 0.0
    %1497 = vmatprep.subr.mxu0 0.0
    %1498 = vmatpush2.msra.mxu0 0.0
    %1499 = vmatprep.subr.mxu0 0.0
    %1500 = vmatpush2.msra.mxu0 0.0
    %1501 = vmatprep.subr.mxu0 0.0
    %1502 = vmatpush2.msra.mxu0 0.0
    %1503 = vmatprep.mubr.f32.mxu0 0.0
    %1504 = vmatmul.mubr.f32.gmra.mxu0 %v1437
    %v1505 = vpop.f32.mrf.mxu0
    %v1506 = vadd.f32 0.0, %v1505
    %v1507 = vpop.f32.mrf.mxu0
    %1508 = vdwg.mxu0
    %v1509 = vadd.f32 %v1434, %v1506
    %v1510 = vadd.f32 %v1509, %v1391
    %v1511 = vxor.u32 %v1510, 2147483648
    %v1512 = vmul.f32 %v1511, 1.442695
    %v1513 = vpow.pop %v1512
    %v1514 = vadd.f32 %v1513, 1.0
    %v1515 = vrcp.pop %v1514
    %v1516 = vmul.f32 1.0, %v1515
    %v1517 = vtanh.pop %v1510
    %v1518 = vld [vmem:[#allocation5] sm:$0xff]
    %1520 = vrot.lane.b32.xlu0 %v1518, 32
    %v1521 = vpop.permute.xlu0 %1520
    %v1523 = vmul.f32 %v1516, %v1521
    %1525 = vrot.lane.b32.xlu0 %v1517, 64
    %v1526 = vpop.permute.xlu0 %1525
    %v1528 = vmul.f32 %v1516, %v1526
    %1530 = vrot.lane.b32.xlu0 %v1528, 32
    %v1531 = vpop.permute.xlu0 %1530
    %v1533 = vadd.f32 %v1523, %v1531
    %v1534 = vtanh.pop %v1533
    %1536 = vrot.lane.b32.xlu0 %v1534, 64
    %v1537 = vpop.permute.xlu0 %1536
    %v1539 = vmul.f32 %v1516, %v1537
    %1541 = vrot.lane.b32.xlu0 %v1539, 32
    %v1542 = vpop.permute.xlu0 %1541
    %1544 = vst.msk [vmem:[#allocation4] sm:$0xff] %vm189, %v1542
    %1546 = vrot.lane.b32.xlu0 %v1533, 96
    %v1547 = vpop.permute.xlu0 %1546
    %1549 = vst.msk [vmem:[#allocation5] sm:$0xff] %vm189, %v1547
    %1550 = vst.msk [vmem:[%s437] sm:$0xff] %vm189, %v1542
    %v1551 = vld [vmem:[%s439] sm:$0xff]
    %v1552 = vld [vmem:[#allocation4] sm:$0xff]
    %v1554 = vsel %vm189, %v1552, 0
    %1556 = vmatprep.subr.mxu0 0.0
    %1557 = vmatpush1.msra.mxu0 0.0
    %1558 = vmatprep.subr.mxu0 0.0
    %1559 = vmatpush1.msra.mxu0 0.0
    %1560 = vmatprep.subr.mxu0 0.0
    %1561 = vmatpush1.msra.mxu0 0.0
    %1562 = vmatprep.subr.mxu0 0.0
    %1563 = vmatpush1.msra.mxu0 0.0
    %1564 = vmatprep.subr.mxu0 0.0
    %1565 = vmatpush1.msra.mxu0 0.0
    %1566 = vmatprep.subr.mxu0 0.0
    %1567 = vmatpush1.msra.mxu0 0.0
    %1568 = vmatprep.subr.mxu0 0.0
    %1569 = vmatpush1.msra.mxu0 0.0
    %1570 = vmatprep.subr.mxu0 0.0
    %1571 = vmatpush1.msra.mxu0 0.0
    %1572 = vmatprep.subr.mxu0 0.0
    %1573 = vmatpush1.msra.mxu0 0.0
    %1574 = vmatprep.subr.mxu0 0.0
    %1575 = vmatpush1.msra.mxu0 0.0
    %1576 = vmatprep.subr.mxu0 0.0
    %1577 = vmatpush1.msra.mxu0 0.0
    %1578 = vmatprep.subr.mxu0 0.0
    %1579 = vmatpush1.msra.mxu0 0.0
    %1580 = vmatprep.subr.mxu0 0.0
    %1581 = vmatpush1.msra.mxu0 %v1308
    %1582 = vmatprep.subr.mxu0 0.0
    %1583 = vmatpush1.msra.mxu0 %v1307
    %1584 = vmatprep.subr.mxu0 0.0
    %1585 = vmatpush1.msra.mxu0 %v1306
    %1586 = vmatprep.subr.mxu0 0.0
    %1587 = vmatpush1.msra.mxu0 %v1305
    %1588 = vmatprep.subr.mxu0 0.0
    %1589 = vmatpush2.msra.mxu0 0.0
    %1590 = vmatprep.subr.mxu0 0.0
    %1591 = vmatpush2.msra.mxu0 0.0
    %1592 = vmatprep.subr.mxu0 0.0
    %1593 = vmatpush2.msra.mxu0 0.0
    %1594 = vmatprep.subr.mxu0 0.0
    %1595 = vmatpush2.msra.mxu0 0.0
    %1596 = vmatprep.subr.mxu0 0.0
    %1597 = vmatpush2.msra.mxu0 0.0
    %1598 = vmatprep.subr.mxu0 0.0
    %1599 = vmatpush2.msra.mxu0 0.0
    %1600 = vmatprep.subr.mxu0 0.0
    %1601 = vmatpush2.msra.mxu0 0.0
    %1602 = vmatprep.subr.mxu0 0.0
    %1603 = vmatpush2.msra.mxu0 0.0
    %1604 = vmatprep.subr.mxu0 0.0
    %1605 = vmatpush2.msra.mxu0 0.0
    %1606 = vmatprep.subr.mxu0 0.0
    %1607 = vmatpush2.msra.mxu0 0.0
    %1608 = vmatprep.subr.mxu0 0.0
    %1609 = vmatpush2.msra.mxu0 0.0
    %1610 = vmatprep.subr.mxu0 0.0
    %1611 = vmatpush2.msra.mxu0 0.0
    %1612 = vmatprep.subr.mxu0 0.0
    %1613 = vmatpush2.msra.mxu0 0.0
    %1614 = vmatprep.subr.mxu0 0.0
    %1615 = vmatpush2.msra.mxu0 0.0
    %1616 = vmatprep.subr.mxu0 0.0
    %1617 = vmatpush2.msra.mxu0 0.0
    %1618 = vmatprep.subr.mxu0 0.0
    %1619 = vmatpush2.msra.mxu0 0.0
    %1620 = vmatprep.mubr.f32.mxu0 0.0
    %1621 = vmatmul.mubr.f32.gmra.mxu0 %v1554
    %v1622 = vpop.f32.mrf.mxu0
    %v1623 = vadd.f32 0.0, %v1622
    %v1624 = vpop.f32.mrf.mxu0
    %1625 = vdwg.mxu0
    %v1626 = vadd.f32 %v1551, %v1623
    %v1627 = vadd.f32 %v1626, %v1391
    %v1628 = vxor.u32 %v1627, 2147483648
    %v1629 = vmul.f32 %v1628, 1.442695
    %v1630 = vpow.pop %v1629
    %v1631 = vadd.f32 %v1630, 1.0
    %v1632 = vrcp.pop %v1631
    %v1633 = vmul.f32 1.0, %v1632
    %v1634 = vtanh.pop %v1627
    %v1635 = vld [vmem:[#allocation5] sm:$0xff]
    %1637 = vrot.lane.b32.xlu0 %v1635, 32
    %v1638 = vpop.permute.xlu0 %1637
    %v1640 = vmul.f32 %v1633, %v1638
    %1642 = vrot.lane.b32.xlu0 %v1634, 64
    %v1643 = vpop.permute.xlu0 %1642
    %v1645 = vmul.f32 %v1633, %v1643
    %1647 = vrot.lane.b32.xlu0 %v1645, 32
    %v1648 = vpop.permute.xlu0 %1647
    %v1650 = vadd.f32 %v1640, %v1648
    %v1651 = vtanh.pop %v1650
    %1653 = vrot.lane.b32.xlu0 %v1651, 64
    %v1654 = vpop.permute.xlu0 %1653
    %v1656 = vmul.f32 %v1633, %v1654
    %1658 = vrot.lane.b32.xlu0 %v1656, 32
    %v1659 = vpop.permute.xlu0 %1658
    %1661 = vst.msk [vmem:[#allocation4] sm:$0xff] %vm189, %v1659
    %1663 = vrot.lane.b32.xlu0 %v1650, 96
    %v1664 = vpop.permute.xlu0 %1663
    %1666 = vst.msk [vmem:[#allocation5] sm:$0xff] %vm189, %v1664
    %1667 = vst.msk [vmem:[%s556] sm:$0xff] %vm189, %v1659
    %v1668 = vld [vmem:[%s558] sm:$0xff]
    %v1669 = vld [vmem:[#allocation4] sm:$0xff]
    %v1671 = vsel %vm189, %v1669, 0
    %1673 = vmatprep.subr.mxu0 0.0
    %1674 = vmatpush1.msra.mxu0 0.0
    %1675 = vmatprep.subr.mxu0 0.0
    %1676 = vmatpush1.msra.mxu0 0.0
    %1677 = vmatprep.subr.mxu0 0.0
    %1678 = vmatpush1.msra.mxu0 0.0
    %1679 = vmatprep.subr.mxu0 0.0
    %1680 = vmatpush1.msra.mxu0 0.0
    %1681 = vmatprep.subr.mxu0 0.0
    %1682 = vmatpush1.msra.mxu0 0.0
    %1683 = vmatprep.subr.mxu0 0.0
    %1684 = vmatpush1.msra.mxu0 0.0
    %1685 = vmatprep.subr.mxu0 0.0
    %1686 = vmatpush1.msra.mxu0 0.0
    %1687 = vmatprep.subr.mxu0 0.0
    %1688 = vmatpush1.msra.mxu0 0.0
    %1689 = vmatprep.subr.mxu0 0.0
    %1690 = vmatpush1.msra.mxu0 0.0
    %1691 = vmatprep.subr.mxu0 0.0
    %1692 = vmatpush1.msra.mxu0 0.0
    %1693 = vmatprep.subr.mxu0 0.0
    %1694 = vmatpush1.msra.mxu0 0.0
    %1695 = vmatprep.subr.mxu0 0.0
    %1696 = vmatpush1.msra.mxu0 0.0
    %1697 = vmatprep.subr.mxu0 0.0
    %1698 = vmatpush1.msra.mxu0 %v1308
    %1699 = vmatprep.subr.mxu0 0.0
    %1700 = vmatpush1.msra.mxu0 %v1307
    %1701 = vmatprep.subr.mxu0 0.0
    %1702 = vmatpush1.msra.mxu0 %v1306
    %1703 = vmatprep.subr.mxu0 0.0
    %1704 = vmatpush1.msra.mxu0 %v1305
    %1705 = vmatprep.subr.mxu0 0.0
    %1706 = vmatpush2.msra.mxu0 0.0
    %1707 = vmatprep.subr.mxu0 0.0
    %1708 = vmatpush2.msra.mxu0 0.0
    %1709 = vmatprep.subr.mxu0 0.0
    %1710 = vmatpush2.msra.mxu0 0.0
    %1711 = vmatprep.subr.mxu0 0.0
    %1712 = vmatpush2.msra.mxu0 0.0
    %1713 = vmatprep.subr.mxu0 0.0
    %1714 = vmatpush2.msra.mxu0 0.0
    %1715 = vmatprep.subr.mxu0 0.0
    %1716 = vmatpush2.msra.mxu0 0.0
    %1717 = vmatprep.subr.mxu0 0.0
    %1718 = vmatpush2.msra.mxu0 0.0
    %1719 = vmatprep.subr.mxu0 0.0
    %1720 = vmatpush2.msra.mxu0 0.0
    %1721 = vmatprep.subr.mxu0 0.0
    %1722 = vmatpush2.msra.mxu0 0.0
    %1723 = vmatprep.subr.mxu0 0.0
    %1724 = vmatpush2.msra.mxu0 0.0
    %1725 = vmatprep.subr.mxu0 0.0
    %1726 = vmatpush2.msra.mxu0 0.0
    %1727 = vmatprep.subr.mxu0 0.0
    %1728 = vmatpush2.msra.mxu0 0.0
    %1729 = vmatprep.subr.mxu0 0.0
    %1730 = vmatpush2.msra.mxu0 0.0
    %1731 = vmatprep.subr.mxu0 0.0
    %1732 = vmatpush2.msra.mxu0 0.0
    %1733 = vmatprep.subr.mxu0 0.0
    %1734 = vmatpush2.msra.mxu0 0.0
    %1735 = vmatprep.subr.mxu0 0.0
    %1736 = vmatpush2.msra.mxu0 0.0
    %1737 = vmatprep.mubr.f32.mxu0 0.0
    %1738 = vmatmul.mubr.f32.gmra.mxu0 %v1671
    %v1739 = vpop.f32.mrf.mxu0
    %v1740 = vadd.f32 0.0, %v1739
    %v1741 = vpop.f32.mrf.mxu0
    %1742 = vdwg.mxu0
    %v1743 = vadd.f32 %v1668, %v1740
    %v1744 = vadd.f32 %v1743, %v1391
    %v1745 = vxor.u32 %v1744, 2147483648
    %v1746 = vmul.f32 %v1745, 1.442695
    %v1747 = vpow.pop %v1746
    %v1748 = vadd.f32 %v1747, 1.0
    %v1749 = vrcp.pop %v1748
    %v1750 = vmul.f32 1.0, %v1749
    %v1751 = vtanh.pop %v1744
    %v1752 = vld [vmem:[#allocation5] sm:$0xff]
    %1754 = vrot.lane.b32.xlu0 %v1752, 32
    %v1755 = vpop.permute.xlu0 %1754
    %v1757 = vmul.f32 %v1750, %v1755
    %1759 = vrot.lane.b32.xlu0 %v1751, 64
    %v1760 = vpop.permute.xlu0 %1759
    %v1762 = vmul.f32 %v1750, %v1760
    %1764 = vrot.lane.b32.xlu0 %v1762, 32
    %v1765 = vpop.permute.xlu0 %1764
    %v1767 = vadd.f32 %v1757, %v1765
    %v1768 = vtanh.pop %v1767
    %1770 = vrot.lane.b32.xlu0 %v1768, 64
    %v1771 = vpop.permute.xlu0 %1770
    %v1773 = vmul.f32 %v1750, %v1771
    %1775 = vrot.lane.b32.xlu0 %v1773, 32
    %v1776 = vpop.permute.xlu0 %1775
    %1778 = vst.msk [vmem:[#allocation4] sm:$0xff] %vm189, %v1776
    %1780 = vrot.lane.b32.xlu0 %v1767, 96
    %v1781 = vpop.permute.xlu0 %1780
    %1783 = vst.msk [vmem:[#allocation5] sm:$0xff] %vm189, %v1781
    %1784 = vst.msk [vmem:[%s675] sm:$0xff] %vm189, %v1776
    %v1785 = vld [vmem:[%s677] sm:$0xff]
    %v1786 = vld [vmem:[#allocation4] sm:$0xff]
    %v1788 = vsel %vm189, %v1786, 0
    %1790 = vmatprep.subr.mxu0 0.0
    %1791 = vmatpush1.msra.mxu0 0.0
    %1792 = vmatprep.subr.mxu0 0.0
    %1793 = vmatpush1.msra.mxu0 0.0
    %1794 = vmatprep.subr.mxu0 0.0
    %1795 = vmatpush1.msra.mxu0 0.0
    %1796 = vmatprep.subr.mxu0 0.0
    %1797 = vmatpush1.msra.mxu0 0.0
    %1798 = vmatprep.subr.mxu0 0.0
    %1799 = vmatpush1.msra.mxu0 0.0
    %1800 = vmatprep.subr.mxu0 0.0
    %1801 = vmatpush1.msra.mxu0 0.0
    %1802 = vmatprep.subr.mxu0 0.0
    %1803 = vmatpush1.msra.mxu0 0.0
    %1804 = vmatprep.subr.mxu0 0.0
    %1805 = vmatpush1.msra.mxu0 0.0
    %1806 = vmatprep.subr.mxu0 0.0
    %1807 = vmatpush1.msra.mxu0 0.0
    %1808 = vmatprep.subr.mxu0 0.0
    %1809 = vmatpush1.msra.mxu0 0.0
    %1810 = vmatprep.subr.mxu0 0.0
    %1811 = vmatpush1.msra.mxu0 0.0
    %1812 = vmatprep.subr.mxu0 0.0
    %1813 = vmatpush1.msra.mxu0 0.0
    %1814 = vmatprep.subr.mxu0 0.0
    %1815 = vmatpush1.msra.mxu0 %v1308
    %1816 = vmatprep.subr.mxu0 0.0
    %1817 = vmatpush1.msra.mxu0 %v1307
    %1818 = vmatprep.subr.mxu0 0.0
    %1819 = vmatpush1.msra.mxu0 %v1306
    %1820 = vmatprep.subr.mxu0 0.0
    %1821 = vmatpush1.msra.mxu0 %v1305
    %1822 = vmatprep.subr.mxu0 0.0
    %1823 = vmatpush2.msra.mxu0 0.0
    %1824 = vmatprep.subr.mxu0 0.0
    %1825 = vmatpush2.msra.mxu0 0.0
    %1826 = vmatprep.subr.mxu0 0.0
    %1827 = vmatpush2.msra.mxu0 0.0
    %1828 = vmatprep.subr.mxu0 0.0
    %1829 = vmatpush2.msra.mxu0 0.0
    %1830 = vmatprep.subr.mxu0 0.0
    %1831 = vmatpush2.msra.mxu0 0.0
    %1832 = vmatprep.subr.mxu0 0.0
    %1833 = vmatpush2.msra.mxu0 0.0
    %1834 = vmatprep.subr.mxu0 0.0
    %1835 = vmatpush2.msra.mxu0 0.0
    %1836 = vmatprep.subr.mxu0 0.0
    %1837 = vmatpush2.msra.mxu0 0.0
    %1838 = vmatprep.subr.mxu0 0.0
    %1839 = vmatpush2.msra.mxu0 0.0
    %1840 = vmatprep.subr.mxu0 0.0
    %1841 = vmatpush2.msra.mxu0 0.0
    %1842 = vmatprep.subr.mxu0 0.0
    %1843 = vmatpush2.msra.mxu0 0.0
    %1844 = vmatprep.subr.mxu0 0.0
    %1845 = vmatpush2.msra.mxu0 0.0
    %1846 = vmatprep.subr.mxu0 0.0
    %1847 = vmatpush2.msra.mxu0 0.0
    %1848 = vmatprep.subr.mxu0 0.0
    %1849 = vmatpush2.msra.mxu0 0.0
    %1850 = vmatprep.subr.mxu0 0.0
    %1851 = vmatpush2.msra.mxu0 0.0
    %1852 = vmatprep.subr.mxu0 0.0
    %1853 = vmatpush2.msra.mxu0 0.0
    %1854 = vmatprep.mubr.f32.mxu0 0.0
    %1855 = vmatmul.mubr.f32.gmra.mxu0 %v1788
    %v1856 = vpop.f32.mrf.mxu0
    %v1857 = vadd.f32 0.0, %v1856
    %v1858 = vpop.f32.mrf.mxu0
    %1859 = vdwg.mxu0
    %v1860 = vadd.f32 %v1785, %v1857
    %v1861 = vadd.f32 %v1860, %v1391
    %v1862 = vxor.u32 %v1861, 2147483648
    %v1863 = vmul.f32 %v1862, 1.442695
    %v1864 = vpow.pop %v1863
    %v1865 = vadd.f32 %v1864, 1.0
    %v1866 = vrcp.pop %v1865
    %v1867 = vmul.f32 1.0, %v1866
    %v1868 = vtanh.pop %v1861
    %v1869 = vld [vmem:[#allocation5] sm:$0xff]
    %1871 = vrot.lane.b32.xlu0 %v1869, 32
    %v1872 = vpop.permute.xlu0 %1871
    %v1874 = vmul.f32 %v1867, %v1872
    %1876 = vrot.lane.b32.xlu0 %v1868, 64
    %v1877 = vpop.permute.xlu0 %1876
    %v1879 = vmul.f32 %v1867, %v1877
    %1881 = vrot.lane.b32.xlu0 %v1879, 32
    %v1882 = vpop.permute.xlu0 %1881
    %v1884 = vadd.f32 %v1874, %v1882
    %v1885 = vtanh.pop %v1884
    %1887 = vrot.lane.b32.xlu0 %v1885, 64
    %v1888 = vpop.permute.xlu0 %1887
    %v1890 = vmul.f32 %v1867, %v1888
    %1892 = vrot.lane.b32.xlu0 %v1890, 32
    %v1893 = vpop.permute.xlu0 %1892
    %1895 = vst.msk [vmem:[#allocation4] sm:$0xff] %vm189, %v1893
    %1897 = vrot.lane.b32.xlu0 %v1884, 96
    %v1898 = vpop.permute.xlu0 %1897
    %1900 = vst.msk [vmem:[#allocation5] sm:$0xff] %vm189, %v1898
    %1901 = vst.msk [vmem:[%s794] sm:$0xff] %vm189, %v1893
    %v1902 = vld [vmem:[%s796] sm:$0xff]
    %v1903 = vld [vmem:[#allocation4] sm:$0xff]
    %v1905 = vsel %vm189, %v1903, 0
    %1907 = vmatprep.subr.mxu0 0.0
    %1908 = vmatpush1.msra.mxu0 0.0
    %1909 = vmatprep.subr.mxu0 0.0
    %1910 = vmatpush1.msra.mxu0 0.0
    %1911 = vmatprep.subr.mxu0 0.0
    %1912 = vmatpush1.msra.mxu0 0.0
    %1913 = vmatprep.subr.mxu0 0.0
    %1914 = vmatpush1.msra.mxu0 0.0
    %1915 = vmatprep.subr.mxu0 0.0
    %1916 = vmatpush1.msra.mxu0 0.0
    %1917 = vmatprep.subr.mxu0 0.0
    %1918 = vmatpush1.msra.mxu0 0.0
    %1919 = vmatprep.subr.mxu0 0.0
    %1920 = vmatpush1.msra.mxu0 0.0
    %1921 = vmatprep.subr.mxu0 0.0
    %1922 = vmatpush1.msra.mxu0 0.0
    %1923 = vmatprep.subr.mxu0 0.0
    %1924 = vmatpush1.msra.mxu0 0.0
    %1925 = vmatprep.subr.mxu0 0.0
    %1926 = vmatpush1.msra.mxu0 0.0
    %1927 = vmatprep.subr.mxu0 0.0
    %1928 = vmatpush1.msra.mxu0 0.0
    %1929 = vmatprep.subr.mxu0 0.0
    %1930 = vmatpush1.msra.mxu0 0.0
    %1931 = vmatprep.subr.mxu0 0.0
    %1932 = vmatpush1.msra.mxu0 %v1308
    %1933 = vmatprep.subr.mxu0 0.0
    %1934 = vmatpush1.msra.mxu0 %v1307
    %1935 = vmatprep.subr.mxu0 0.0
    %1936 = vmatpush1.msra.mxu0 %v1306
    %1937 = vmatprep.subr.mxu0 0.0
    %1938 = vmatpush1.msra.mxu0 %v1305
    %1939 = vmatprep.subr.mxu0 0.0
    %1940 = vmatpush2.msra.mxu0 0.0
    %1941 = vmatprep.subr.mxu0 0.0
    %1942 = vmatpush2.msra.mxu0 0.0
    %1943 = vmatprep.subr.mxu0 0.0
    %1944 = vmatpush2.msra.mxu0 0.0
    %1945 = vmatprep.subr.mxu0 0.0
    %1946 = vmatpush2.msra.mxu0 0.0
    %1947 = vmatprep.subr.mxu0 0.0
    %1948 = vmatpush2.msra.mxu0 0.0
    %1949 = vmatprep.subr.mxu0 0.0
    %1950 = vmatpush2.msra.mxu0 0.0
    %1951 = vmatprep.subr.mxu0 0.0
    %1952 = vmatpush2.msra.mxu0 0.0
    %1953 = vmatprep.subr.mxu0 0.0
    %1954 = vmatpush2.msra.mxu0 0.0
    %1955 = vmatprep.subr.mxu0 0.0
    %1956 = vmatpush2.msra.mxu0 0.0
    %1957 = vmatprep.subr.mxu0 0.0
    %1958 = vmatpush2.msra.mxu0 0.0
    %1959 = vmatprep.subr.mxu0 0.0
    %1960 = vmatpush2.msra.mxu0 0.0
    %1961 = vmatprep.subr.mxu0 0.0
    %1962 = vmatpush2.msra.mxu0 0.0
    %1963 = vmatprep.subr.mxu0 0.0
    %1964 = vmatpush2.msra.mxu0 0.0
    %1965 = vmatprep.subr.mxu0 0.0
    %1966 = vmatpush2.msra.mxu0 0.0
    %1967 = vmatprep.subr.mxu0 0.0
    %1968 = vmatpush2.msra.mxu0 0.0
    %1969 = vmatprep.subr.mxu0 0.0
    %1970 = vmatpush2.msra.mxu0 0.0
    %1971 = vmatprep.mubr.f32.mxu0 0.0
    %1972 = vmatmul.mubr.f32.gmra.mxu0 %v1905
    %v1973 = vpop.f32.mrf.mxu0
    %v1974 = vadd.f32 0.0, %v1973
    %v1975 = vpop.f32.mrf.mxu0
    %1976 = vdwg.mxu0
    %v1977 = vadd.f32 %v1902, %v1974
    %v1978 = vadd.f32 %v1977, %v1391
    %v1979 = vxor.u32 %v1978, 2147483648
    %v1980 = vmul.f32 %v1979, 1.442695
    %v1981 = vpow.pop %v1980
    %v1982 = vadd.f32 %v1981, 1.0
    %v1983 = vrcp.pop %v1982
    %v1984 = vmul.f32 1.0, %v1983
    %v1985 = vtanh.pop %v1978
    %v1986 = vld [vmem:[#allocation5] sm:$0xff]
    %1988 = vrot.lane.b32.xlu0 %v1986, 32
    %v1989 = vpop.permute.xlu0 %1988
    %v1991 = vmul.f32 %v1984, %v1989
    %1993 = vrot.lane.b32.xlu0 %v1985, 64
    %v1994 = vpop.permute.xlu0 %1993
    %v1996 = vmul.f32 %v1984, %v1994
    %1998 = vrot.lane.b32.xlu0 %v1996, 32
    %v1999 = vpop.permute.xlu0 %1998
    %v2001 = vadd.f32 %v1991, %v1999
    %v2002 = vtanh.pop %v2001
    %2004 = vrot.lane.b32.xlu0 %v2002, 64
    %v2005 = vpop.permute.xlu0 %2004
    %v2007 = vmul.f32 %v1984, %v2005
    %2009 = vrot.lane.b32.xlu0 %v2007, 32
    %v2010 = vpop.permute.xlu0 %2009
    %2012 = vst.msk [vmem:[#allocation4] sm:$0xff] %vm189, %v2010
    %2014 = vrot.lane.b32.xlu0 %v2001, 96
    %v2015 = vpop.permute.xlu0 %2014
    %2017 = vst.msk [vmem:[#allocation5] sm:$0xff] %vm189, %v2015
    %2018 = vst.msk [vmem:[%s913] sm:$0xff] %vm189, %v2010
    %v2019 = vld [vmem:[%s915] sm:$0xff]
    %v2020 = vld [vmem:[#allocation4] sm:$0xff]
    %v2022 = vsel %vm189, %v2020, 0
    %2024 = vmatprep.subr.mxu0 0.0
    %2025 = vmatpush1.msra.mxu0 0.0
    %2026 = vmatprep.subr.mxu0 0.0
    %2027 = vmatpush1.msra.mxu0 0.0
    %2028 = vmatprep.subr.mxu0 0.0
    %2029 = vmatpush1.msra.mxu0 0.0
    %2030 = vmatprep.subr.mxu0 0.0
    %2031 = vmatpush1.msra.mxu0 0.0
    %2032 = vmatprep.subr.mxu0 0.0
    %2033 = vmatpush1.msra.mxu0 0.0
    %2034 = vmatprep.subr.mxu0 0.0
    %2035 = vmatpush1.msra.mxu0 0.0
    %2036 = vmatprep.subr.mxu0 0.0
    %2037 = vmatpush1.msra.mxu0 0.0
    %2038 = vmatprep.subr.mxu0 0.0
    %2039 = vmatpush1.msra.mxu0 0.0
    %2040 = vmatprep.subr.mxu0 0.0
    %2041 = vmatpush1.msra.mxu0 0.0
    %2042 = vmatprep.subr.mxu0 0.0
    %2043 = vmatpush1.msra.mxu0 0.0
    %2044 = vmatprep.subr.mxu0 0.0
    %2045 = vmatpush1.msra.mxu0 0.0
    %2046 = vmatprep.subr.mxu0 0.0
    %2047 = vmatpush1.msra.mxu0 0.0
    %2048 = vmatprep.subr.mxu0 0.0
    %2049 = vmatpush1.msra.mxu0 %v1308
    %2050 = vmatprep.subr.mxu0 0.0
    %2051 = vmatpush1.msra.mxu0 %v1307
    %2052 = vmatprep.subr.mxu0 0.0
    %2053 = vmatpush1.msra.mxu0 %v1306
    %2054 = vmatprep.subr.mxu0 0.0
    %2055 = vmatpush1.msra.mxu0 %v1305
    %2056 = vmatprep.subr.mxu0 0.0
    %2057 = vmatpush2.msra.mxu0 0.0
    %2058 = vmatprep.subr.mxu0 0.0
    %2059 = vmatpush2.msra.mxu0 0.0
    %2060 = vmatprep.subr.mxu0 0.0
    %2061 = vmatpush2.msra.mxu0 0.0
    %2062 = vmatprep.subr.mxu0 0.0
    %2063 = vmatpush2.msra.mxu0 0.0
    %2064 = vmatprep.subr.mxu0 0.0
    %2065 = vmatpush2.msra.mxu0 0.0
    %2066 = vmatprep.subr.mxu0 0.0
    %2067 = vmatpush2.msra.mxu0 0.0
    %2068 = vmatprep.subr.mxu0 0.0
    %2069 = vmatpush2.msra.mxu0 0.0
    %2070 = vmatprep.subr.mxu0 0.0
    %2071 = vmatpush2.msra.mxu0 0.0
    %2072 = vmatprep.subr.mxu0 0.0
    %2073 = vmatpush2.msra.mxu0 0.0
    %2074 = vmatprep.subr.mxu0 0.0
    %2075 = vmatpush2.msra.mxu0 0.0
    %2076 = vmatprep.subr.mxu0 0.0
    %2077 = vmatpush2.msra.mxu0 0.0
    %2078 = vmatprep.subr.mxu0 0.0
    %2079 = vmatpush2.msra.mxu0 0.0
    %2080 = vmatprep.subr.mxu0 0.0
    %2081 = vmatpush2.msra.mxu0 0.0
    %2082 = vmatprep.subr.mxu0 0.0
    %2083 = vmatpush2.msra.mxu0 0.0
    %2084 = vmatprep.subr.mxu0 0.0
    %2085 = vmatpush2.msra.mxu0 0.0
    %2086 = vmatprep.subr.mxu0 0.0
    %2087 = vmatpush2.msra.mxu0 0.0
    %2088 = vmatprep.mubr.f32.mxu0 0.0
    %2089 = vmatmul.mubr.f32.gmra.mxu0 %v2022
    %v2090 = vpop.f32.mrf.mxu0
    %v2091 = vadd.f32 0.0, %v2090
    %v2092 = vpop.f32.mrf.mxu0
    %2093 = vdwg.mxu0
    %v2094 = vadd.f32 %v2019, %v2091
    %v2095 = vadd.f32 %v2094, %v1391
    %v2096 = vxor.u32 %v2095, 2147483648
    %v2097 = vmul.f32 %v2096, 1.442695
    %v2098 = vpow.pop %v2097
    %v2099 = vadd.f32 %v2098, 1.0
    %v2100 = vrcp.pop %v2099
    %v2101 = vmul.f32 1.0, %v2100
    %v2102 = vtanh.pop %v2095
    %v2103 = vld [vmem:[#allocation5] sm:$0xff]
    %2105 = vrot.lane.b32.xlu0 %v2103, 32
    %v2106 = vpop.permute.xlu0 %2105
    %v2108 = vmul.f32 %v2101, %v2106
    %2110 = vrot.lane.b32.xlu0 %v2102, 64
    %v2111 = vpop.permute.xlu0 %2110
    %v2113 = vmul.f32 %v2101, %v2111
    %2115 = vrot.lane.b32.xlu0 %v2113, 32
    %v2116 = vpop.permute.xlu0 %2115
    %v2118 = vadd.f32 %v2108, %v2116
    %v2119 = vtanh.pop %v2118
    %2121 = vrot.lane.b32.xlu0 %v2119, 64
    %v2122 = vpop.permute.xlu0 %2121
    %v2124 = vmul.f32 %v2101, %v2122
    %2126 = vrot.lane.b32.xlu0 %v2124, 32
    %v2127 = vpop.permute.xlu0 %2126
    %2129 = vst.msk [vmem:[#allocation4] sm:$0xff] %vm189, %v2127
    %2131 = vrot.lane.b32.xlu0 %v2118, 96
    %v2132 = vpop.permute.xlu0 %2131
    %2134 = vst.msk [vmem:[#allocation5] sm:$0xff] %vm189, %v2132
    %2135 = vst.msk [vmem:[%s1032] sm:$0xff] %vm189, %v2127
    %v2136 = vld [vmem:[%s1034] sm:$0xff]
    %v2137 = vld [vmem:[#allocation4] sm:$0xff]
    %v2139 = vsel %vm189, %v2137, 0
    %2141 = vmatprep.subr.mxu0 0.0
    %2142 = vmatpush1.msra.mxu0 0.0
    %2143 = vmatprep.subr.mxu0 0.0
    %2144 = vmatpush1.msra.mxu0 0.0
    %2145 = vmatprep.subr.mxu0 0.0
    %2146 = vmatpush1.msra.mxu0 0.0
    %2147 = vmatprep.subr.mxu0 0.0
    %2148 = vmatpush1.msra.mxu0 0.0
    %2149 = vmatprep.subr.mxu0 0.0
    %2150 = vmatpush1.msra.mxu0 0.0
    %2151 = vmatprep.subr.mxu0 0.0
    %2152 = vmatpush1.msra.mxu0 0.0
    %2153 = vmatprep.subr.mxu0 0.0
    %2154 = vmatpush1.msra.mxu0 0.0
    %2155 = vmatprep.subr.mxu0 0.0
    %2156 = vmatpush1.msra.mxu0 0.0
    %2157 = vmatprep.subr.mxu0 0.0
    %2158 = vmatpush1.msra.mxu0 0.0
    %2159 = vmatprep.subr.mxu0 0.0
    %2160 = vmatpush1.msra.mxu0 0.0
    %2161 = vmatprep.subr.mxu0 0.0
    %2162 = vmatpush1.msra.mxu0 0.0
    %2163 = vmatprep.subr.mxu0 0.0
    %2164 = vmatpush1.msra.mxu0 0.0
    %2165 = vmatprep.subr.mxu0 0.0
    %2166 = vmatpush1.msra.mxu0 %v1308
    %2167 = vmatprep.subr.mxu0 0.0
    %2168 = vmatpush1.msra.mxu0 %v1307
    %2169 = vmatprep.subr.mxu0 0.0
    %2170 = vmatpush1.msra.mxu0 %v1306
    %2171 = vmatprep.subr.mxu0 0.0
    %2172 = vmatpush1.msra.mxu0 %v1305
    %2173 = vmatprep.subr.mxu0 0.0
    %2174 = vmatpush2.msra.mxu0 0.0
    %2175 = vmatprep.subr.mxu0 0.0
    %2176 = vmatpush2.msra.mxu0 0.0
    %2177 = vmatprep.subr.mxu0 0.0
    %2178 = vmatpush2.msra.mxu0 0.0
    %2179 = vmatprep.subr.mxu0 0.0
    %2180 = vmatpush2.msra.mxu0 0.0
    %2181 = vmatprep.subr.mxu0 0.0
    %2182 = vmatpush2.msra.mxu0 0.0
    %2183 = vmatprep.subr.mxu0 0.0
    %2184 = vmatpush2.msra.mxu0 0.0
    %2185 = vmatprep.subr.mxu0 0.0
    %2186 = vmatpush2.msra.mxu0 0.0
    %2187 = vmatprep.subr.mxu0 0.0
    %2188 = vmatpush2.msra.mxu0 0.0
    %2189 = vmatprep.subr.mxu0 0.0
    %2190 = vmatpush2.msra.mxu0 0.0
    %2191 = vmatprep.subr.mxu0 0.0
    %2192 = vmatpush2.msra.mxu0 0.0
    %2193 = vmatprep.subr.mxu0 0.0
    %2194 = vmatpush2.msra.mxu0 0.0
    %2195 = vmatprep.subr.mxu0 0.0
    %2196 = vmatpush2.msra.mxu0 0.0
    %2197 = vmatprep.subr.mxu0 0.0
    %2198 = vmatpush2.msra.mxu0 0.0
    %2199 = vmatprep.subr.mxu0 0.0
    %2200 = vmatpush2.msra.mxu0 0.0
    %2201 = vmatprep.subr.mxu0 0.0
    %2202 = vmatpush2.msra.mxu0 0.0
    %2203 = vmatprep.subr.mxu0 0.0
    %2204 = vmatpush2.msra.mxu0 0.0
    %2205 = vmatprep.mubr.f32.mxu0 0.0
    %2206 = vmatmul.mubr.f32.gmra.mxu0 %v2139
    %v2207 = vpop.f32.mrf.mxu0
    %v2208 = vadd.f32 0.0, %v2207
    %v2209 = vpop.f32.mrf.mxu0
    %2210 = vdwg.mxu0
    %v2211 = vadd.f32 %v2136, %v2208
    %v2212 = vadd.f32 %v2211, %v1391
    %v2213 = vxor.u32 %v2212, 2147483648
    %v2214 = vmul.f32 %v2213, 1.442695
    %v2215 = vpow.pop %v2214
    %v2216 = vadd.f32 %v2215, 1.0
    %v2217 = vrcp.pop %v2216
    %v2218 = vmul.f32 1.0, %v2217
    %v2219 = vtanh.pop %v2212
    %v2220 = vld [vmem:[#allocation5] sm:$0xff]
    %2222 = vrot.lane.b32.xlu0 %v2220, 32
    %v2223 = vpop.permute.xlu0 %2222
    %v2225 = vmul.f32 %v2218, %v2223
    %2227 = vrot.lane.b32.xlu0 %v2219, 64
    %v2228 = vpop.permute.xlu0 %2227
    %v2230 = vmul.f32 %v2218, %v2228
    %2232 = vrot.lane.b32.xlu0 %v2230, 32
    %v2233 = vpop.permute.xlu0 %2232
    %v2235 = vadd.f32 %v2225, %v2233
    %v2236 = vtanh.pop %v2235
    %2238 = vrot.lane.b32.xlu0 %v2236, 64
    %v2239 = vpop.permute.xlu0 %2238
    %v2241 = vmul.f32 %v2218, %v2239
    %2243 = vrot.lane.b32.xlu0 %v2241, 32
    %v2244 = vpop.permute.xlu0 %2243
    %2246 = vst.msk [vmem:[#allocation4] sm:$0xff] %vm189, %v2244
    %2248 = vrot.lane.b32.xlu0 %v2235, 96
    %v2249 = vpop.permute.xlu0 %2248
    %2251 = vst.msk [vmem:[#allocation5] sm:$0xff] %vm189, %v2249
    %2252 = vst.msk [vmem:[%s1151] sm:$0xff] %vm189, %v2244
    %v2253 = vld [vmem:[#allocation2] sm:$0xff]
    %v2254 = vld [vmem:[#allocation2 + $0x8] sm:$0xff]
    %v2255 = vld [vmem:[#allocation2 + $0x10] sm:$0xff]
    %v2256 = vld [vmem:[#allocation2 + $0x18] sm:$0xff]
    %v2257 = vld [vmem:[#allocation2 + $0x20] sm:$0xff]
    %v2258 = vld [vmem:[#allocation2 + $0x28] sm:$0xff]
    %v2259 = vld [vmem:[#allocation2 + $0x30] sm:$0xff]
    %v2260 = vld [vmem:[#allocation2 + $0x38] sm:$0xff]
    %s2261 = scalar_lea.vmem %s2, 32
    %v2262 = vld [vmem:[%s2261] sm:$0xff]
    %v2263 = vld [vmem:[%s2261 + $0x8] sm:$0xff]
    %v2264 = vld [vmem:[%s2261 + $0x10] sm:$0xff]
    %v2265 = vld [vmem:[%s2261 + $0x18] sm:$0xff]
    %v2267 = vsel %vm189, %v2253, 0
    %v2270 = vsel %vm189, %v2254, 0
    %v2273 = vsel %vm189, %v2255, 0
    %v2276 = vsel %vm189, %v2256, 0
    %v2279 = vsel %vm189, %v2257, 0
    %v2282 = vsel %vm189, %v2258, 0
    %v2285 = vsel %vm189, %v2259, 0
    %v2288 = vsel %vm189, %v2260, 0
    %2290 = vmatprep.subr.mxu0 0.0
    %2291 = vmatpush1.msra.mxu0 0.0
    %2292 = vmatprep.subr.mxu0 0.0
    %2293 = vmatpush1.msra.mxu0 0.0
    %2294 = vmatprep.subr.mxu0 0.0
    %2295 = vmatpush1.msra.mxu0 0.0
    %2296 = vmatprep.subr.mxu0 0.0
    %2297 = vmatpush1.msra.mxu0 0.0
    %2298 = vmatprep.subr.mxu0 0.0
    %2299 = vmatpush1.msra.mxu0 0.0
    %2300 = vmatprep.subr.mxu0 0.0
    %2301 = vmatpush1.msra.mxu0 0.0
    %2302 = vmatprep.subr.mxu0 0.0
    %2303 = vmatpush1.msra.mxu0 0.0
    %2304 = vmatprep.subr.mxu0 0.0
    %2305 = vmatpush1.msra.mxu0 0.0
    %2306 = vmatprep.subr.mxu0 0.0
    %2307 = vmatpush1.msra.mxu0 0.0
    %2308 = vmatprep.subr.mxu0 0.0
    %2309 = vmatpush1.msra.mxu0 0.0
    %2310 = vmatprep.subr.mxu0 0.0
    %2311 = vmatpush1.msra.mxu0 0.0
    %2312 = vmatprep.subr.mxu0 0.0
    %2313 = vmatpush1.msra.mxu0 0.0
    %2314 = vmatprep.subr.mxu0 0.0
    %2315 = vmatpush1.msra.mxu0 %v2265
    %2316 = vmatprep.subr.mxu0 0.0
    %2317 = vmatpush1.msra.mxu0 %v2264
    %2318 = vmatprep.subr.mxu0 0.0
    %2319 = vmatpush1.msra.mxu0 %v2263
    %2320 = vmatprep.subr.mxu0 0.0
    %2321 = vmatpush1.msra.mxu0 %v2262
    %2322 = vmatprep.subr.mxu0 0.0
    %2323 = vmatpush2.msra.mxu0 0.0
    %2324 = vmatprep.subr.mxu0 0.0
    %2325 = vmatpush2.msra.mxu0 0.0
    %2326 = vmatprep.subr.mxu0 0.0
    %2327 = vmatpush2.msra.mxu0 0.0
    %2328 = vmatprep.subr.mxu0 0.0
    %2329 = vmatpush2.msra.mxu0 0.0
    %2330 = vmatprep.subr.mxu0 0.0
    %2331 = vmatpush2.msra.mxu0 0.0
    %2332 = vmatprep.subr.mxu0 0.0
    %2333 = vmatpush2.msra.mxu0 0.0
    %2334 = vmatprep.subr.mxu0 0.0
    %2335 = vmatpush2.msra.mxu0 0.0
    %2336 = vmatprep.subr.mxu0 0.0
    %2337 = vmatpush2.msra.mxu0 0.0
    %2338 = vmatprep.subr.mxu0 0.0
    %2339 = vmatpush2.msra.mxu0 0.0
    %2340 = vmatprep.subr.mxu0 0.0
    %2341 = vmatpush2.msra.mxu0 0.0
    %2342 = vmatprep.subr.mxu0 0.0
    %2343 = vmatpush2.msra.mxu0 0.0
    %2344 = vmatprep.subr.mxu0 0.0
    %2345 = vmatpush2.msra.mxu0 0.0
    %2346 = vmatprep.subr.mxu0 0.0
    %2347 = vmatpush2.msra.mxu0 0.0
    %2348 = vmatprep.subr.mxu0 0.0
    %2349 = vmatpush2.msra.mxu0 0.0
    %2350 = vmatprep.subr.mxu0 0.0
    %2351 = vmatpush2.msra.mxu0 0.0
    %2352 = vmatprep.subr.mxu0 0.0
    %2353 = vmatpush2.msra.mxu0 0.0
    %2354 = vmatprep.mubr.f32.mxu0 0.0
    %2355 = vmatmul.mubr.f32.gmra.mxu0 %v2267
    %v2356 = vpop.f32.mrf.mxu0
    %v2357 = vadd.f32 0.0, %v2356
    %v2358 = vpop.f32.mrf.mxu0
    %2359 = vmatprep.mubr.f32.mxu0 0.0
    %2360 = vmatmul.mubr.f32.gmra.mxu0 %v2270
    %v2361 = vpop.f32.mrf.mxu0
    %v2362 = vadd.f32 0.0, %v2361
    %v2363 = vpop.f32.mrf.mxu0
    %2364 = vmatprep.mubr.f32.mxu0 0.0
    %2365 = vmatmul.mubr.f32.gmra.mxu0 %v2273
    %v2366 = vpop.f32.mrf.mxu0
    %v2367 = vadd.f32 0.0, %v2366
    %v2368 = vpop.f32.mrf.mxu0
    %2369 = vmatprep.mubr.f32.mxu0 0.0
    %2370 = vmatmul.mubr.f32.gmra.mxu0 %v2276
    %v2371 = vpop.f32.mrf.mxu0
    %v2372 = vadd.f32 0.0, %v2371
    %v2373 = vpop.f32.mrf.mxu0
    %2374 = vmatprep.mubr.f32.mxu0 0.0
    %2375 = vmatmul.mubr.f32.gmra.mxu0 %v2279
    %v2376 = vpop.f32.mrf.mxu0
    %v2377 = vadd.f32 0.0, %v2376
    %v2378 = vpop.f32.mrf.mxu0
    %2379 = vmatprep.mubr.f32.mxu0 0.0
    %2380 = vmatmul.mubr.f32.gmra.mxu0 %v2282
    %v2381 = vpop.f32.mrf.mxu0
    %v2382 = vadd.f32 0.0, %v2381
    %v2383 = vpop.f32.mrf.mxu0
    %2384 = vmatprep.mubr.f32.mxu0 0.0
    %2385 = vmatmul.mubr.f32.gmra.mxu0 %v2285
    %v2386 = vpop.f32.mrf.mxu0
    %v2387 = vadd.f32 0.0, %v2386
    %v2388 = vpop.f32.mrf.mxu0
    %2389 = vmatprep.mubr.f32.mxu0 0.0
    %2390 = vmatmul.mubr.f32.gmra.mxu0 %v2288
    %v2391 = vpop.f32.mrf.mxu0
    %v2392 = vadd.f32 0.0, %v2391
    %v2393 = vpop.f32.mrf.mxu0
    %2394 = vdwg.mxu0
    %2395 = vst [vmem:[#allocation3] sm:$0xff] %v2357
    %2396 = vst [vmem:[#allocation3 + $0x8] sm:$0xff] %v2362
    %2397 = vst [vmem:[#allocation3 + $0x10] sm:$0xff] %v2367
    %2398 = vst [vmem:[#allocation3 + $0x18] sm:$0xff] %v2372
    %2399 = vst [vmem:[#allocation3 + $0x20] sm:$0xff] %v2377
    %2400 = vst [vmem:[#allocation3 + $0x28] sm:$0xff] %v2382
    %2401 = vst [vmem:[#allocation3 + $0x30] sm:$0xff] %v2387
    %2402 = vst [vmem:[#allocation3 + $0x38] sm:$0xff] %v2392
    %2403 = vst.msk [vmem:[#allocation4] sm:$0xff] %vm189, 0.0
    %2404 = vst.msk [vmem:[#allocation5] sm:$0xff] %vm189, 0.0
    %s2405 = scalar_lea.vmem %s3, 64
    %v2406 = vld [vmem:[%s2405] sm:$0xff]
    %v2407 = vld [vmem:[%s2405 + $0x8] sm:$0xff]
    %v2408 = vld [vmem:[%s2405 + $0x10] sm:$0xff]
    %v2409 = vld [vmem:[%s2405 + $0x18] sm:$0xff]
    %s2410 = scalar_lea.vmem %s4, 2
    %v2411 = vld [vmem:[%s2410] sm:$0x1]
    %v2412 = vld [vmem:[#allocation3] sm:$0xff]
    %v2413 = vld [vmem:[#allocation4] sm:$0xff]
    %v2415 = vsel %vm189, %v2413, 0
    %2417 = vmatprep.subr.mxu0 0.0
    %2418 = vmatpush1.msra.mxu0 0.0
    %2419 = vmatprep.subr.mxu0 0.0
    %2420 = vmatpush1.msra.mxu0 0.0
    %2421 = vmatprep.subr.mxu0 0.0
    %2422 = vmatpush1.msra.mxu0 0.0
    %2423 = vmatprep.subr.mxu0 0.0
    %2424 = vmatpush1.msra.mxu0 0.0
    %2425 = vmatprep.subr.mxu0 0.0
    %2426 = vmatpush1.msra.mxu0 0.0
    %2427 = vmatprep.subr.mxu0 0.0
    %2428 = vmatpush1.msra.mxu0 0.0
    %2429 = vmatprep.subr.mxu0 0.0
    %2430 = vmatpush1.msra.mxu0 0.0
    %2431 = vmatprep.subr.mxu0 0.0
    %2432 = vmatpush1.msra.mxu0 0.0
    %2433 = vmatprep.subr.mxu0 0.0
    %2434 = vmatpush1.msra.mxu0 0.0
    %2435 = vmatprep.subr.mxu0 0.0
    %2436 = vmatpush1.msra.mxu0 0.0
    %2437 = vmatprep.subr.mxu0 0.0
    %2438 = vmatpush1.msra.mxu0 0.0
    %2439 = vmatprep.subr.mxu0 0.0
    %2440 = vmatpush1.msra.mxu0 0.0
    %2441 = vmatprep.subr.mxu0 0.0
    %2442 = vmatpush1.msra.mxu0 %v2409
    %2443 = vmatprep.subr.mxu0 0.0
    %2444 = vmatpush1.msra.mxu0 %v2408
    %2445 = vmatprep.subr.mxu0 0.0
    %2446 = vmatpush1.msra.mxu0 %v2407
    %2447 = vmatprep.subr.mxu0 0.0
    %2448 = vmatpush1.msra.mxu0 %v2406
    %2449 = vmatprep.subr.mxu0 0.0
    %2450 = vmatpush2.msra.mxu0 0.0
    %2451 = vmatprep.subr.mxu0 0.0
    %2452 = vmatpush2.msra.mxu0 0.0
    %2453 = vmatprep.subr.mxu0 0.0
    %2454 = vmatpush2.msra.mxu0 0.0
    %2455 = vmatprep.subr.mxu0 0.0
    %2456 = vmatpush2.msra.mxu0 0.0
    %2457 = vmatprep.subr.mxu0 0.0
    %2458 = vmatpush2.msra.mxu0 0.0
    %2459 = vmatprep.subr.mxu0 0.0
    %2460 = vmatpush2.msra.mxu0 0.0
    %2461 = vmatprep.subr.mxu0 0.0
    %2462 = vmatpush2.msra.mxu0 0.0
    %2463 = vmatprep.subr.mxu0 0.0
    %2464 = vmatpush2.msra.mxu0 0.0
    %2465 = vmatprep.subr.mxu0 0.0
    %2466 = vmatpush2.msra.mxu0 0.0
    %2467 = vmatprep.subr.mxu0 0.0
    %2468 = vmatpush2.msra.mxu0 0.0
    %2469 = vmatprep.subr.mxu0 0.0
    %2470 = vmatpush2.msra.mxu0 0.0
    %2471 = vmatprep.subr.mxu0 0.0
    %2472 = vmatpush2.msra.mxu0 0.0
    %2473 = vmatprep.subr.mxu0 0.0
    %2474 = vmatpush2.msra.mxu0 0.0
    %2475 = vmatprep.subr.mxu0 0.0
    %2476 = vmatpush2.msra.mxu0 0.0
    %2477 = vmatprep.subr.mxu0 0.0
    %2478 = vmatpush2.msra.mxu0 0.0
    %2479 = vmatprep.subr.mxu0 0.0
    %2480 = vmatpush2.msra.mxu0 0.0
    %2481 = vmatprep.mubr.f32.mxu0 0.0
    %2482 = vmatmul.mubr.f32.gmra.mxu0 %v2415
    %v2483 = vpop.f32.mrf.mxu0
    %v2484 = vadd.f32 0.0, %v2483
    %v2485 = vpop.f32.mrf.mxu0
    %2486 = vdwg.mxu0
    %v2487 = vadd.f32 %v2412, %v2484
    %v2489 = vlaneseq
    %v2490 = vshrl.u32 %v2489, 7
    %v2491 = vsub.s32 0, %v2490
    %v2492 = vrot.slane %v2411, %v2491
    %v2494 = vadd.f32 %v2487, %v2492
    %v2495 = vxor.u32 %v2494, 2147483648
    %v2496 = vmul.f32 %v2495, 1.442695
    %v2497 = vpow.pop %v2496
    %v2498 = vadd.f32 %v2497, 1.0
    %v2499 = vrcp.pop %v2498
    %v2500 = vmul.f32 1.0, %v2499
    %v2501 = vtanh.pop %v2494
    %v2502 = vld [vmem:[#allocation5] sm:$0xff]
    %2504 = vrot.lane.b32.xlu0 %v2502, 32
    %v2505 = vpop.permute.xlu0 %2504
    %v2507 = vmul.f32 %v2500, %v2505
    %2509 = vrot.lane.b32.xlu0 %v2501, 64
    %v2510 = vpop.permute.xlu0 %2509
    %v2512 = vmul.f32 %v2500, %v2510
    %2514 = vrot.lane.b32.xlu0 %v2512, 32
    %v2515 = vpop.permute.xlu0 %2514
    %v2517 = vadd.f32 %v2507, %v2515
    %v2518 = vtanh.pop %v2517
    %2520 = vrot.lane.b32.xlu0 %v2518, 64
    %v2521 = vpop.permute.xlu0 %2520
    %v2523 = vmul.f32 %v2500, %v2521
    %2525 = vrot.lane.b32.xlu0 %v2523, 32
    %v2526 = vpop.permute.xlu0 %2525
    %2528 = vst.msk [vmem:[#allocation4] sm:$0xff] %vm189, %v2526
    %2530 = vrot.lane.b32.xlu0 %v2517, 96
    %v2531 = vpop.permute.xlu0 %2530
    %2533 = vst.msk [vmem:[#allocation5] sm:$0xff] %vm189, %v2531
    %2534 = vst.msk [vmem:[#allocation2] sm:$0xff] %vm189, %v2526
    %v2535 = vld [vmem:[%s320] sm:$0xff]
    %v2536 = vld [vmem:[#allocation4] sm:$0xff]
    %v2538 = vsel %vm189, %v2536, 0
    %2540 = vmatprep.subr.mxu0 0.0
    %2541 = vmatpush1.msra.mxu0 0.0
    %2542 = vmatprep.subr.mxu0 0.0
    %2543 = vmatpush1.msra.mxu0 0.0
    %2544 = vmatprep.subr.mxu0 0.0
    %2545 = vmatpush1.msra.mxu0 0.0
    %2546 = vmatprep.subr.mxu0 0.0
    %2547 = vmatpush1.msra.mxu0 0.0
    %2548 = vmatprep.subr.mxu0 0.0
    %2549 = vmatpush1.msra.mxu0 0.0
    %2550 = vmatprep.subr.mxu0 0.0
    %2551 = vmatpush1.msra.mxu0 0.0
    %2552 = vmatprep.subr.mxu0 0.0
    %2553 = vmatpush1.msra.mxu0 0.0
    %2554 = vmatprep.subr.mxu0 0.0
    %2555 = vmatpush1.msra.mxu0 0.0
    %2556 = vmatprep.subr.mxu0 0.0
    %2557 = vmatpush1.msra.mxu0 0.0
    %2558 = vmatprep.subr.mxu0 0.0
    %2559 = vmatpush1.msra.mxu0 0.0
    %2560 = vmatprep.subr.mxu0 0.0
    %2561 = vmatpush1.msra.mxu0 0.0
    %2562 = vmatprep.subr.mxu0 0.0
    %2563 = vmatpush1.msra.mxu0 0.0
    %2564 = vmatprep.subr.mxu0 0.0
    %2565 = vmatpush1.msra.mxu0 %v2409
    %2566 = vmatprep.subr.mxu0 0.0
    %2567 = vmatpush1.msra.mxu0 %v2408
    %2568 = vmatprep.subr.mxu0 0.0
    %2569 = vmatpush1.msra.mxu0 %v2407
    %2570 = vmatprep.subr.mxu0 0.0
    %2571 = vmatpush1.msra.mxu0 %v2406
    %2572 = vmatprep.subr.mxu0 0.0
    %2573 = vmatpush2.msra.mxu0 0.0
    %2574 = vmatprep.subr.mxu0 0.0
    %2575 = vmatpush2.msra.mxu0 0.0
    %2576 = vmatprep.subr.mxu0 0.0
    %2577 = vmatpush2.msra.mxu0 0.0
    %2578 = vmatprep.subr.mxu0 0.0
    %2579 = vmatpush2.msra.mxu0 0.0
    %2580 = vmatprep.subr.mxu0 0.0
    %2581 = vmatpush2.msra.mxu0 0.0
    %2582 = vmatprep.subr.mxu0 0.0
    %2583 = vmatpush2.msra.mxu0 0.0
    %2584 = vmatprep.subr.mxu0 0.0
    %2585 = vmatpush2.msra.mxu0 0.0
    %2586 = vmatprep.subr.mxu0 0.0
    %2587 = vmatpush2.msra.mxu0 0.0
    %2588 = vmatprep.subr.mxu0 0.0
    %2589 = vmatpush2.msra.mxu0 0.0
    %2590 = vmatprep.subr.mxu0 0.0
    %2591 = vmatpush2.msra.mxu0 0.0
    %2592 = vmatprep.subr.mxu0 0.0
    %2593 = vmatpush2.msra.mxu0 0.0
    %2594 = vmatprep.subr.mxu0 0.0
    %2595 = vmatpush2.msra.mxu0 0.0
    %2596 = vmatprep.subr.mxu0 0.0
    %2597 = vmatpush2.msra.mxu0 0.0
    %2598 = vmatprep.subr.mxu0 0.0
    %2599 = vmatpush2.msra.mxu0 0.0
    %2600 = vmatprep.subr.mxu0 0.0
    %2601 = vmatpush2.msra.mxu0 0.0
    %2602 = vmatprep.subr.mxu0 0.0
    %2603 = vmatpush2.msra.mxu0 0.0
    %2604 = vmatprep.mubr.f32.mxu0 0.0
    %2605 = vmatmul.mubr.f32.gmra.mxu0 %v2538
    %v2606 = vpop.f32.mrf.mxu0
    %v2607 = vadd.f32 0.0, %v2606
    %v2608 = vpop.f32.mrf.mxu0
    %2609 = vdwg.mxu0
    %v2610 = vadd.f32 %v2535, %v2607
    %v2611 = vadd.f32 %v2610, %v2492
    %v2612 = vxor.u32 %v2611, 2147483648
    %v2613 = vmul.f32 %v2612, 1.442695
    %v2614 = vpow.pop %v2613
    %v2615 = vadd.f32 %v2614, 1.0
    %v2616 = vrcp.pop %v2615
    %v2617 = vmul.f32 1.0, %v2616
    %v2618 = vtanh.pop %v2611
    %v2619 = vld [vmem:[#allocation5] sm:$0xff]
    %2621 = vrot.lane.b32.xlu0 %v2619, 32
    %v2622 = vpop.permute.xlu0 %2621
    %v2624 = vmul.f32 %v2617, %v2622
    %2626 = vrot.lane.b32.xlu0 %v2618, 64
    %v2627 = vpop.permute.xlu0 %2626
    %v2629 = vmul.f32 %v2617, %v2627
    %2631 = vrot.lane.b32.xlu0 %v2629, 32
    %v2632 = vpop.permute.xlu0 %2631
    %v2634 = vadd.f32 %v2624, %v2632
    %v2635 = vtanh.pop %v2634
    %2637 = vrot.lane.b32.xlu0 %v2635, 64
    %v2638 = vpop.permute.xlu0 %2637
    %v2640 = vmul.f32 %v2617, %v2638
    %2642 = vrot.lane.b32.xlu0 %v2640, 32
    %v2643 = vpop.permute.xlu0 %2642
    %2645 = vst.msk [vmem:[#allocation4] sm:$0xff] %vm189, %v2643
    %2647 = vrot.lane.b32.xlu0 %v2634, 96
    %v2648 = vpop.permute.xlu0 %2647
    %2650 = vst.msk [vmem:[#allocation5] sm:$0xff] %vm189, %v2648
    %2651 = vst.msk [vmem:[%s437] sm:$0xff] %vm189, %v2643
    %v2652 = vld [vmem:[%s439] sm:$0xff]
    %v2653 = vld [vmem:[#allocation4] sm:$0xff]
    %v2655 = vsel %vm189, %v2653, 0
    %2657 = vmatprep.subr.mxu0 0.0
    %2658 = vmatpush1.msra.mxu0 0.0
    %2659 = vmatprep.subr.mxu0 0.0
    %2660 = vmatpush1.msra.mxu0 0.0
    %2661 = vmatprep.subr.mxu0 0.0
    %2662 = vmatpush1.msra.mxu0 0.0
    %2663 = vmatprep.subr.mxu0 0.0
    %2664 = vmatpush1.msra.mxu0 0.0
    %2665 = vmatprep.subr.mxu0 0.0
    %2666 = vmatpush1.msra.mxu0 0.0
    %2667 = vmatprep.subr.mxu0 0.0
    %2668 = vmatpush1.msra.mxu0 0.0
    %2669 = vmatprep.subr.mxu0 0.0
    %2670 = vmatpush1.msra.mxu0 0.0
    %2671 = vmatprep.subr.mxu0 0.0
    %2672 = vmatpush1.msra.mxu0 0.0
    %2673 = vmatprep.subr.mxu0 0.0
    %2674 = vmatpush1.msra.mxu0 0.0
    %2675 = vmatprep.subr.mxu0 0.0
    %2676 = vmatpush1.msra.mxu0 0.0
    %2677 = vmatprep.subr.mxu0 0.0
    %2678 = vmatpush1.msra.mxu0 0.0
    %2679 = vmatprep.subr.mxu0 0.0
    %2680 = vmatpush1.msra.mxu0 0.0
    %2681 = vmatprep.subr.mxu0 0.0
    %2682 = vmatpush1.msra.mxu0 %v2409
    %2683 = vmatprep.subr.mxu0 0.0
    %2684 = vmatpush1.msra.mxu0 %v2408
    %2685 = vmatprep.subr.mxu0 0.0
    %2686 = vmatpush1.msra.mxu0 %v2407
    %2687 = vmatprep.subr.mxu0 0.0
    %2688 = vmatpush1.msra.mxu0 %v2406
    %2689 = vmatprep.subr.mxu0 0.0
    %2690 = vmatpush2.msra.mxu0 0.0
    %2691 = vmatprep.subr.mxu0 0.0
    %2692 = vmatpush2.msra.mxu0 0.0
    %2693 = vmatprep.subr.mxu0 0.0
    %2694 = vmatpush2.msra.mxu0 0.0
    %2695 = vmatprep.subr.mxu0 0.0
    %2696 = vmatpush2.msra.mxu0 0.0
    %2697 = vmatprep.subr.mxu0 0.0
    %2698 = vmatpush2.msra.mxu0 0.0
    %2699 = vmatprep.subr.mxu0 0.0
    %2700 = vmatpush2.msra.mxu0 0.0
    %2701 = vmatprep.subr.mxu0 0.0
    %2702 = vmatpush2.msra.mxu0 0.0
    %2703 = vmatprep.subr.mxu0 0.0
    %2704 = vmatpush2.msra.mxu0 0.0
    %2705 = vmatprep.subr.mxu0 0.0
    %2706 = vmatpush2.msra.mxu0 0.0
    %2707 = vmatprep.subr.mxu0 0.0
    %2708 = vmatpush2.msra.mxu0 0.0
    %2709 = vmatprep.subr.mxu0 0.0
    %2710 = vmatpush2.msra.mxu0 0.0
    %2711 = vmatprep.subr.mxu0 0.0
    %2712 = vmatpush2.msra.mxu0 0.0
    %2713 = vmatprep.subr.mxu0 0.0
    %2714 = vmatpush2.msra.mxu0 0.0
    %2715 = vmatprep.subr.mxu0 0.0
    %2716 = vmatpush2.msra.mxu0 0.0
    %2717 = vmatprep.subr.mxu0 0.0
    %2718 = vmatpush2.msra.mxu0 0.0
    %2719 = vmatprep.subr.mxu0 0.0
    %2720 = vmatpush2.msra.mxu0 0.0
    %2721 = vmatprep.mubr.f32.mxu0 0.0
    %2722 = vmatmul.mubr.f32.gmra.mxu0 %v2655
    %v2723 = vpop.f32.mrf.mxu0
    %v2724 = vadd.f32 0.0, %v2723
    %v2725 = vpop.f32.mrf.mxu0
    %2726 = vdwg.mxu0
    %v2727 = vadd.f32 %v2652, %v2724
    %v2728 = vadd.f32 %v2727, %v2492
    %v2729 = vxor.u32 %v2728, 2147483648
    %v2730 = vmul.f32 %v2729, 1.442695
    %v2731 = vpow.pop %v2730
    %v2732 = vadd.f32 %v2731, 1.0
    %v2733 = vrcp.pop %v2732
    %v2734 = vmul.f32 1.0, %v2733
    %v2735 = vtanh.pop %v2728
    %v2736 = vld [vmem:[#allocation5] sm:$0xff]
    %2738 = vrot.lane.b32.xlu0 %v2736, 32
    %v2739 = vpop.permute.xlu0 %2738
    %v2741 = vmul.f32 %v2734, %v2739
    %2743 = vrot.lane.b32.xlu0 %v2735, 64
    %v2744 = vpop.permute.xlu0 %2743
    %v2746 = vmul.f32 %v2734, %v2744
    %2748 = vrot.lane.b32.xlu0 %v2746, 32
    %v2749 = vpop.permute.xlu0 %2748
    %v2751 = vadd.f32 %v2741, %v2749
    %v2752 = vtanh.pop %v2751
    %2754 = vrot.lane.b32.xlu0 %v2752, 64
    %v2755 = vpop.permute.xlu0 %2754
    %v2757 = vmul.f32 %v2734, %v2755
    %2759 = vrot.lane.b32.xlu0 %v2757, 32
    %v2760 = vpop.permute.xlu0 %2759
    %2762 = vst.msk [vmem:[#allocation4] sm:$0xff] %vm189, %v2760
    %2764 = vrot.lane.b32.xlu0 %v2751, 96
    %v2765 = vpop.permute.xlu0 %2764
    %2767 = vst.msk [vmem:[#allocation5] sm:$0xff] %vm189, %v2765
    %2768 = vst.msk [vmem:[%s556] sm:$0xff] %vm189, %v2760
    %v2769 = vld [vmem:[%s558] sm:$0xff]
    %v2770 = vld [vmem:[#allocation4] sm:$0xff]
    %v2772 = vsel %vm189, %v2770, 0
    %2774 = vmatprep.subr.mxu0 0.0
    %2775 = vmatpush1.msra.mxu0 0.0
    %2776 = vmatprep.subr.mxu0 0.0
    %2777 = vmatpush1.msra.mxu0 0.0
    %2778 = vmatprep.subr.mxu0 0.0
    %2779 = vmatpush1.msra.mxu0 0.0
    %2780 = vmatprep.subr.mxu0 0.0
    %2781 = vmatpush1.msra.mxu0 0.0
    %2782 = vmatprep.subr.mxu0 0.0
    %2783 = vmatpush1.msra.mxu0 0.0
    %2784 = vmatprep.subr.mxu0 0.0
    %2785 = vmatpush1.msra.mxu0 0.0
    %2786 = vmatprep.subr.mxu0 0.0
    %2787 = vmatpush1.msra.mxu0 0.0
    %2788 = vmatprep.subr.mxu0 0.0
    %2789 = vmatpush1.msra.mxu0 0.0
    %2790 = vmatprep.subr.mxu0 0.0
    %2791 = vmatpush1.msra.mxu0 0.0
    %2792 = vmatprep.subr.mxu0 0.0
    %2793 = vmatpush1.msra.mxu0 0.0
    %2794 = vmatprep.subr.mxu0 0.0
    %2795 = vmatpush1.msra.mxu0 0.0
    %2796 = vmatprep.subr.mxu0 0.0
    %2797 = vmatpush1.msra.mxu0 0.0
    %2798 = vmatprep.subr.mxu0 0.0
    %2799 = vmatpush1.msra.mxu0 %v2409
    %2800 = vmatprep.subr.mxu0 0.0
    %2801 = vmatpush1.msra.mxu0 %v2408
    %2802 = vmatprep.subr.mxu0 0.0
    %2803 = vmatpush1.msra.mxu0 %v2407
    %2804 = vmatprep.subr.mxu0 0.0
    %2805 = vmatpush1.msra.mxu0 %v2406
    %2806 = vmatprep.subr.mxu0 0.0
    %2807 = vmatpush2.msra.mxu0 0.0
    %2808 = vmatprep.subr.mxu0 0.0
    %2809 = vmatpush2.msra.mxu0 0.0
    %2810 = vmatprep.subr.mxu0 0.0
    %2811 = vmatpush2.msra.mxu0 0.0
    %2812 = vmatprep.subr.mxu0 0.0
    %2813 = vmatpush2.msra.mxu0 0.0
    %2814 = vmatprep.subr.mxu0 0.0
    %2815 = vmatpush2.msra.mxu0 0.0
    %2816 = vmatprep.subr.mxu0 0.0
    %2817 = vmatpush2.msra.mxu0 0.0
    %2818 = vmatprep.subr.mxu0 0.0
    %2819 = vmatpush2.msra.mxu0 0.0
    %2820 = vmatprep.subr.mxu0 0.0
    %2821 = vmatpush2.msra.mxu0 0.0
    %2822 = vmatprep.subr.mxu0 0.0
    %2823 = vmatpush2.msra.mxu0 0.0
    %2824 = vmatprep.subr.mxu0 0.0
    %2825 = vmatpush2.msra.mxu0 0.0
    %2826 = vmatprep.subr.mxu0 0.0
    %2827 = vmatpush2.msra.mxu0 0.0
    %2828 = vmatprep.subr.mxu0 0.0
    %2829 = vmatpush2.msra.mxu0 0.0
    %2830 = vmatprep.subr.mxu0 0.0
    %2831 = vmatpush2.msra.mxu0 0.0
    %2832 = vmatprep.subr.mxu0 0.0
    %2833 = vmatpush2.msra.mxu0 0.0
    %2834 = vmatprep.subr.mxu0 0.0
    %2835 = vmatpush2.msra.mxu0 0.0
    %2836 = vmatprep.subr.mxu0 0.0
    %2837 = vmatpush2.msra.mxu0 0.0
    %2838 = vmatprep.mubr.f32.mxu0 0.0
    %2839 = vmatmul.mubr.f32.gmra.mxu0 %v2772
    %v2840 = vpop.f32.mrf.mxu0
    %v2841 = vadd.f32 0.0, %v2840
    %v2842 = vpop.f32.mrf.mxu0
    %2843 = vdwg.mxu0
    %v2844 = vadd.f32 %v2769, %v2841
    %v2845 = vadd.f32 %v2844, %v2492
    %v2846 = vxor.u32 %v2845, 2147483648
    %v2847 = vmul.f32 %v2846, 1.442695
    %v2848 = vpow.pop %v2847
    %v2849 = vadd.f32 %v2848, 1.0
    %v2850 = vrcp.pop %v2849
    %v2851 = vmul.f32 1.0, %v2850
    %v2852 = vtanh.pop %v2845
    %v2853 = vld [vmem:[#allocation5] sm:$0xff]
    %2855 = vrot.lane.b32.xlu0 %v2853, 32
    %v2856 = vpop.permute.xlu0 %2855
    %v2858 = vmul.f32 %v2851, %v2856
    %2860 = vrot.lane.b32.xlu0 %v2852, 64
    %v2861 = vpop.permute.xlu0 %2860
    %v2863 = vmul.f32 %v2851, %v2861
    %2865 = vrot.lane.b32.xlu0 %v2863, 32
    %v2866 = vpop.permute.xlu0 %2865
    %v2868 = vadd.f32 %v2858, %v2866
    %v2869 = vtanh.pop %v2868
    %2871 = vrot.lane.b32.xlu0 %v2869, 64
    %v2872 = vpop.permute.xlu0 %2871
    %v2874 = vmul.f32 %v2851, %v2872
    %2876 = vrot.lane.b32.xlu0 %v2874, 32
    %v2877 = vpop.permute.xlu0 %2876
    %2879 = vst.msk [vmem:[#allocation4] sm:$0xff] %vm189, %v2877
    %2881 = vrot.lane.b32.xlu0 %v2868, 96
    %v2882 = vpop.permute.xlu0 %2881
    %2884 = vst.msk [vmem:[#allocation5] sm:$0xff] %vm189, %v2882
    %2885 = vst.msk [vmem:[%s675] sm:$0xff] %vm189, %v2877
    %v2886 = vld [vmem:[%s677] sm:$0xff]
    %v2887 = vld [vmem:[#allocation4] sm:$0xff]
    %v2889 = vsel %vm189, %v2887, 0
    %2891 = vmatprep.subr.mxu0 0.0
    %2892 = vmatpush1.msra.mxu0 0.0
    %2893 = vmatprep.subr.mxu0 0.0
    %2894 = vmatpush1.msra.mxu0 0.0
    %2895 = vmatprep.subr.mxu0 0.0
    %2896 = vmatpush1.msra.mxu0 0.0
    %2897 = vmatprep.subr.mxu0 0.0
    %2898 = vmatpush1.msra.mxu0 0.0
    %2899 = vmatprep.subr.mxu0 0.0
    %2900 = vmatpush1.msra.mxu0 0.0
    %2901 = vmatprep.subr.mxu0 0.0
    %2902 = vmatpush1.msra.mxu0 0.0
    %2903 = vmatprep.subr.mxu0 0.0
    %2904 = vmatpush1.msra.mxu0 0.0
    %2905 = vmatprep.subr.mxu0 0.0
    %2906 = vmatpush1.msra.mxu0 0.0
    %2907 = vmatprep.subr.mxu0 0.0
    %2908 = vmatpush1.msra.mxu0 0.0
    %2909 = vmatprep.subr.mxu0 0.0
    %2910 = vmatpush1.msra.mxu0 0.0
    %2911 = vmatprep.subr.mxu0 0.0
    %2912 = vmatpush1.msra.mxu0 0.0
    %2913 = vmatprep.subr.mxu0 0.0
    %2914 = vmatpush1.msra.mxu0 0.0
    %2915 = vmatprep.subr.mxu0 0.0
    %2916 = vmatpush1.msra.mxu0 %v2409
    %2917 = vmatprep.subr.mxu0 0.0
    %2918 = vmatpush1.msra.mxu0 %v2408
    %2919 = vmatprep.subr.mxu0 0.0
    %2920 = vmatpush1.msra.mxu0 %v2407
    %2921 = vmatprep.subr.mxu0 0.0
    %2922 = vmatpush1.msra.mxu0 %v2406
    %2923 = vmatprep.subr.mxu0 0.0
    %2924 = vmatpush2.msra.mxu0 0.0
    %2925 = vmatprep.subr.mxu0 0.0
    %2926 = vmatpush2.msra.mxu0 0.0
    %2927 = vmatprep.subr.mxu0 0.0
    %2928 = vmatpush2.msra.mxu0 0.0
    %2929 = vmatprep.subr.mxu0 0.0
    %2930 = vmatpush2.msra.mxu0 0.0
    %2931 = vmatprep.subr.mxu0 0.0
    %2932 = vmatpush2.msra.mxu0 0.0
    %2933 = vmatprep.subr.mxu0 0.0
    %2934 = vmatpush2.msra.mxu0 0.0
    %2935 = vmatprep.subr.mxu0 0.0
    %2936 = vmatpush2.msra.mxu0 0.0
    %2937 = vmatprep.subr.mxu0 0.0
    %2938 = vmatpush2.msra.mxu0 0.0
    %2939 = vmatprep.subr.mxu0 0.0
    %2940 = vmatpush2.msra.mxu0 0.0
    %2941 = vmatprep.subr.mxu0 0.0
    %2942 = vmatpush2.msra.mxu0 0.0
    %2943 = vmatprep.subr.mxu0 0.0
    %2944 = vmatpush2.msra.mxu0 0.0
    %2945 = vmatprep.subr.mxu0 0.0
    %2946 = vmatpush2.msra.mxu0 0.0
    %2947 = vmatprep.subr.mxu0 0.0
    %2948 = vmatpush2.msra.mxu0 0.0
    %2949 = vmatprep.subr.mxu0 0.0
    %2950 = vmatpush2.msra.mxu0 0.0
    %2951 = vmatprep.subr.mxu0 0.0
    %2952 = vmatpush2.msra.mxu0 0.0
    %2953 = vmatprep.subr.mxu0 0.0
    %2954 = vmatpush2.msra.mxu0 0.0
    %2955 = vmatprep.mubr.f32.mxu0 0.0
    %2956 = vmatmul.mubr.f32.gmra.mxu0 %v2889
    %v2957 = vpop.f32.mrf.mxu0
    %v2958 = vadd.f32 0.0, %v2957
    %v2959 = vpop.f32.mrf.mxu0
    %2960 = vdwg.mxu0
    %v2961 = vadd.f32 %v2886, %v2958
    %v2962 = vadd.f32 %v2961, %v2492
    %v2963 = vxor.u32 %v2962, 2147483648
    %v2964 = vmul.f32 %v2963, 1.442695
    %v2965 = vpow.pop %v2964
    %v2966 = vadd.f32 %v2965, 1.0
    %v2967 = vrcp.pop %v2966
    %v2968 = vmul.f32 1.0, %v2967
    %v2969 = vtanh.pop %v2962
    %v2970 = vld [vmem:[#allocation5] sm:$0xff]
    %2972 = vrot.lane.b32.xlu0 %v2970, 32
    %v2973 = vpop.permute.xlu0 %2972
    %v2975 = vmul.f32 %v2968, %v2973
    %2977 = vrot.lane.b32.xlu0 %v2969, 64
    %v2978 = vpop.permute.xlu0 %2977
    %v2980 = vmul.f32 %v2968, %v2978
    %2982 = vrot.lane.b32.xlu0 %v2980, 32
    %v2983 = vpop.permute.xlu0 %2982
    %v2985 = vadd.f32 %v2975, %v2983
    %v2986 = vtanh.pop %v2985
    %2988 = vrot.lane.b32.xlu0 %v2986, 64
    %v2989 = vpop.permute.xlu0 %2988
    %v2991 = vmul.f32 %v2968, %v2989
    %2993 = vrot.lane.b32.xlu0 %v2991, 32
    %v2994 = vpop.permute.xlu0 %2993
    %2996 = vst.msk [vmem:[#allocation4] sm:$0xff] %vm189, %v2994
    %2998 = vrot.lane.b32.xlu0 %v2985, 96
    %v2999 = vpop.permute.xlu0 %2998
    %3001 = vst.msk [vmem:[#allocation5] sm:$0xff] %vm189, %v2999
    %3002 = vst.msk [vmem:[%s794] sm:$0xff] %vm189, %v2994
    %v3003 = vld [vmem:[%s796] sm:$0xff]
    %v3004 = vld [vmem:[#allocation4] sm:$0xff]
    %v3006 = vsel %vm189, %v3004, 0
    %3008 = vmatprep.subr.mxu0 0.0
    %3009 = vmatpush1.msra.mxu0 0.0
    %3010 = vmatprep.subr.mxu0 0.0
    %3011 = vmatpush1.msra.mxu0 0.0
    %3012 = vmatprep.subr.mxu0 0.0
    %3013 = vmatpush1.msra.mxu0 0.0
    %3014 = vmatprep.subr.mxu0 0.0
    %3015 = vmatpush1.msra.mxu0 0.0
    %3016 = vmatprep.subr.mxu0 0.0
    %3017 = vmatpush1.msra.mxu0 0.0
    %3018 = vmatprep.subr.mxu0 0.0
    %3019 = vmatpush1.msra.mxu0 0.0
    %3020 = vmatprep.subr.mxu0 0.0
    %3021 = vmatpush1.msra.mxu0 0.0
    %3022 = vmatprep.subr.mxu0 0.0
    %3023 = vmatpush1.msra.mxu0 0.0
    %3024 = vmatprep.subr.mxu0 0.0
    %3025 = vmatpush1.msra.mxu0 0.0
    %3026 = vmatprep.subr.mxu0 0.0
    %3027 = vmatpush1.msra.mxu0 0.0
    %3028 = vmatprep.subr.mxu0 0.0
    %3029 = vmatpush1.msra.mxu0 0.0
    %3030 = vmatprep.subr.mxu0 0.0
    %3031 = vmatpush1.msra.mxu0 0.0
    %3032 = vmatprep.subr.mxu0 0.0
    %3033 = vmatpush1.msra.mxu0 %v2409
    %3034 = vmatprep.subr.mxu0 0.0
    %3035 = vmatpush1.msra.mxu0 %v2408
    %3036 = vmatprep.subr.mxu0 0.0
    %3037 = vmatpush1.msra.mxu0 %v2407
    %3038 = vmatprep.subr.mxu0 0.0
    %3039 = vmatpush1.msra.mxu0 %v2406
    %3040 = vmatprep.subr.mxu0 0.0
    %3041 = vmatpush2.msra.mxu0 0.0
    %3042 = vmatprep.subr.mxu0 0.0
    %3043 = vmatpush2.msra.mxu0 0.0
    %3044 = vmatprep.subr.mxu0 0.0
    %3045 = vmatpush2.msra.mxu0 0.0
    %3046 = vmatprep.subr.mxu0 0.0
    %3047 = vmatpush2.msra.mxu0 0.0
    %3048 = vmatprep.subr.mxu0 0.0
    %3049 = vmatpush2.msra.mxu0 0.0
    %3050 = vmatprep.subr.mxu0 0.0
    %3051 = vmatpush2.msra.mxu0 0.0
    %3052 = vmatprep.subr.mxu0 0.0
    %3053 = vmatpush2.msra.mxu0 0.0
    %3054 = vmatprep.subr.mxu0 0.0
    %3055 = vmatpush2.msra.mxu0 0.0
    %3056 = vmatprep.subr.mxu0 0.0
    %3057 = vmatpush2.msra.mxu0 0.0
    %3058 = vmatprep.subr.mxu0 0.0
    %3059 = vmatpush2.msra.mxu0 0.0
    %3060 = vmatprep.subr.mxu0 0.0
    %3061 = vmatpush2.msra.mxu0 0.0
    %3062 = vmatprep.subr.mxu0 0.0
    %3063 = vmatpush2.msra.mxu0 0.0
    %3064 = vmatprep.subr.mxu0 0.0
    %3065 = vmatpush2.msra.mxu0 0.0
    %3066 = vmatprep.subr.mxu0 0.0
    %3067 = vmatpush2.msra.mxu0 0.0
    %3068 = vmatprep.subr.mxu0 0.0
    %3069 = vmatpush2.msra.mxu0 0.0
    %3070 = vmatprep.subr.mxu0 0.0
    %3071 = vmatpush2.msra.mxu0 0.0
    %3072 = vmatprep.mubr.f32.mxu0 0.0
    %3073 = vmatmul.mubr.f32.gmra.mxu0 %v3006
    %v3074 = vpop.f32.mrf.mxu0
    %v3075 = vadd.f32 0.0, %v3074
    %v3076 = vpop.f32.mrf.mxu0
    %3077 = vdwg.mxu0
    %v3078 = vadd.f32 %v3003, %v3075
    %v3079 = vadd.f32 %v3078, %v2492
    %v3080 = vxor.u32 %v3079, 2147483648
    %v3081 = vmul.f32 %v3080, 1.442695
    %v3082 = vpow.pop %v3081
    %v3083 = vadd.f32 %v3082, 1.0
    %v3084 = vrcp.pop %v3083
    %v3085 = vmul.f32 1.0, %v3084
    %v3086 = vtanh.pop %v3079
    %v3087 = vld [vmem:[#allocation5] sm:$0xff]
    %3089 = vrot.lane.b32.xlu0 %v3087, 32
    %v3090 = vpop.permute.xlu0 %3089
    %v3092 = vmul.f32 %v3085, %v3090
    %3094 = vrot.lane.b32.xlu0 %v3086, 64
    %v3095 = vpop.permute.xlu0 %3094
    %v3097 = vmul.f32 %v3085, %v3095
    %3099 = vrot.lane.b32.xlu0 %v3097, 32
    %v3100 = vpop.permute.xlu0 %3099
    %v3102 = vadd.f32 %v3092, %v3100
    %v3103 = vtanh.pop %v3102
    %3105 = vrot.lane.b32.xlu0 %v3103, 64
    %v3106 = vpop.permute.xlu0 %3105
    %v3108 = vmul.f32 %v3085, %v3106
    %3110 = vrot.lane.b32.xlu0 %v3108, 32
    %v3111 = vpop.permute.xlu0 %3110
    %3113 = vst.msk [vmem:[#allocation4] sm:$0xff] %vm189, %v3111
    %3115 = vrot.lane.b32.xlu0 %v3102, 96
    %v3116 = vpop.permute.xlu0 %3115
    %3118 = vst.msk [vmem:[#allocation5] sm:$0xff] %vm189, %v3116
    %3119 = vst.msk [vmem:[%s913] sm:$0xff] %vm189, %v3111
    %v3120 = vld [vmem:[%s915] sm:$0xff]
    %v3121 = vld [vmem:[#allocation4] sm:$0xff]
    %v3123 = vsel %vm189, %v3121, 0
    %3125 = vmatprep.subr.mxu0 0.0
    %3126 = vmatpush1.msra.mxu0 0.0
    %3127 = vmatprep.subr.mxu0 0.0
    %3128 = vmatpush1.msra.mxu0 0.0
    %3129 = vmatprep.subr.mxu0 0.0
    %3130 = vmatpush1.msra.mxu0 0.0
    %3131 = vmatprep.subr.mxu0 0.0
    %3132 = vmatpush1.msra.mxu0 0.0
    %3133 = vmatprep.subr.mxu0 0.0
    %3134 = vmatpush1.msra.mxu0 0.0
    %3135 = vmatprep.subr.mxu0 0.0
    %3136 = vmatpush1.msra.mxu0 0.0
    %3137 = vmatprep.subr.mxu0 0.0
    %3138 = vmatpush1.msra.mxu0 0.0
    %3139 = vmatprep.subr.mxu0 0.0
    %3140 = vmatpush1.msra.mxu0 0.0
    %3141 = vmatprep.subr.mxu0 0.0
    %3142 = vmatpush1.msra.mxu0 0.0
    %3143 = vmatprep.subr.mxu0 0.0
    %3144 = vmatpush1.msra.mxu0 0.0
    %3145 = vmatprep.subr.mxu0 0.0
    %3146 = vmatpush1.msra.mxu0 0.0
    %3147 = vmatprep.subr.mxu0 0.0
    %3148 = vmatpush1.msra.mxu0 0.0
    %3149 = vmatprep.subr.mxu0 0.0
    %3150 = vmatpush1.msra.mxu0 %v2409
    %3151 = vmatprep.subr.mxu0 0.0
    %3152 = vmatpush1.msra.mxu0 %v2408
    %3153 = vmatprep.subr.mxu0 0.0
    %3154 = vmatpush1.msra.mxu0 %v2407
    %3155 = vmatprep.subr.mxu0 0.0
    %3156 = vmatpush1.msra.mxu0 %v2406
    %3157 = vmatprep.subr.mxu0 0.0
    %3158 = vmatpush2.msra.mxu0 0.0
    %3159 = vmatprep.subr.mxu0 0.0
    %3160 = vmatpush2.msra.mxu0 0.0
    %3161 = vmatprep.subr.mxu0 0.0
    %3162 = vmatpush2.msra.mxu0 0.0
    %3163 = vmatprep.subr.mxu0 0.0
    %3164 = vmatpush2.msra.mxu0 0.0
    %3165 = vmatprep.subr.mxu0 0.0
    %3166 = vmatpush2.msra.mxu0 0.0
    %3167 = vmatprep.subr.mxu0 0.0
    %3168 = vmatpush2.msra.mxu0 0.0
    %3169 = vmatprep.subr.mxu0 0.0
    %3170 = vmatpush2.msra.mxu0 0.0
    %3171 = vmatprep.subr.mxu0 0.0
    %3172 = vmatpush2.msra.mxu0 0.0
    %3173 = vmatprep.subr.mxu0 0.0
    %3174 = vmatpush2.msra.mxu0 0.0
    %3175 = vmatprep.subr.mxu0 0.0
    %3176 = vmatpush2.msra.mxu0 0.0
    %3177 = vmatprep.subr.mxu0 0.0
    %3178 = vmatpush2.msra.mxu0 0.0
    %3179 = vmatprep.subr.mxu0 0.0
    %3180 = vmatpush2.msra.mxu0 0.0
    %3181 = vmatprep.subr.mxu0 0.0
    %3182 = vmatpush2.msra.mxu0 0.0
    %3183 = vmatprep.subr.mxu0 0.0
    %3184 = vmatpush2.msra.mxu0 0.0
    %3185 = vmatprep.subr.mxu0 0.0
    %3186 = vmatpush2.msra.mxu0 0.0
    %3187 = vmatprep.subr.mxu0 0.0
    %3188 = vmatpush2.msra.mxu0 0.0
    %3189 = vmatprep.mubr.f32.mxu0 0.0
    %3190 = vmatmul.mubr.f32.gmra.mxu0 %v3123
    %v3191 = vpop.f32.mrf.mxu0
    %v3192 = vadd.f32 0.0, %v3191
    %v3193 = vpop.f32.mrf.mxu0
    %3194 = vdwg.mxu0
    %v3195 = vadd.f32 %v3120, %v3192
    %v3196 = vadd.f32 %v3195, %v2492
    %v3197 = vxor.u32 %v3196, 2147483648
    %v3198 = vmul.f32 %v3197, 1.442695
    %v3199 = vpow.pop %v3198
    %v3200 = vadd.f32 %v3199, 1.0
    %v3201 = vrcp.pop %v3200
    %v3202 = vmul.f32 1.0, %v3201
    %v3203 = vtanh.pop %v3196
    %v3204 = vld [vmem:[#allocation5] sm:$0xff]
    %3206 = vrot.lane.b32.xlu0 %v3204, 32
    %v3207 = vpop.permute.xlu0 %3206
    %v3209 = vmul.f32 %v3202, %v3207
    %3211 = vrot.lane.b32.xlu0 %v3203, 64
    %v3212 = vpop.permute.xlu0 %3211
    %v3214 = vmul.f32 %v3202, %v3212
    %3216 = vrot.lane.b32.xlu0 %v3214, 32
    %v3217 = vpop.permute.xlu0 %3216
    %v3219 = vadd.f32 %v3209, %v3217
    %v3220 = vtanh.pop %v3219
    %3222 = vrot.lane.b32.xlu0 %v3220, 64
    %v3223 = vpop.permute.xlu0 %3222
    %v3225 = vmul.f32 %v3202, %v3223
    %3227 = vrot.lane.b32.xlu0 %v3225, 32
    %v3228 = vpop.permute.xlu0 %3227
    %3230 = vst.msk [vmem:[#allocation4] sm:$0xff] %vm189, %v3228
    %3232 = vrot.lane.b32.xlu0 %v3219, 96
    %v3233 = vpop.permute.xlu0 %3232
    %3235 = vst.msk [vmem:[#allocation5] sm:$0xff] %vm189, %v3233
    %3236 = vst.msk [vmem:[%s1032] sm:$0xff] %vm189, %v3228
    %v3237 = vld [vmem:[%s1034] sm:$0xff]
    %v3238 = vld [vmem:[#allocation4] sm:$0xff]
    %v3240 = vsel %vm189, %v3238, 0
    %3242 = vmatprep.subr.mxu0 0.0
    %3243 = vmatpush1.msra.mxu0 0.0
    %3244 = vmatprep.subr.mxu0 0.0
    %3245 = vmatpush1.msra.mxu0 0.0
    %3246 = vmatprep.subr.mxu0 0.0
    %3247 = vmatpush1.msra.mxu0 0.0
    %3248 = vmatprep.subr.mxu0 0.0
    %3249 = vmatpush1.msra.mxu0 0.0
    %3250 = vmatprep.subr.mxu0 0.0
    %3251 = vmatpush1.msra.mxu0 0.0
    %3252 = vmatprep.subr.mxu0 0.0
    %3253 = vmatpush1.msra.mxu0 0.0
    %3254 = vmatprep.subr.mxu0 0.0
    %3255 = vmatpush1.msra.mxu0 0.0
    %3256 = vmatprep.subr.mxu0 0.0
    %3257 = vmatpush1.msra.mxu0 0.0
    %3258 = vmatprep.subr.mxu0 0.0
    %3259 = vmatpush1.msra.mxu0 0.0
    %3260 = vmatprep.subr.mxu0 0.0
    %3261 = vmatpush1.msra.mxu0 0.0
    %3262 = vmatprep.subr.mxu0 0.0
    %3263 = vmatpush1.msra.mxu0 0.0
    %3264 = vmatprep.subr.mxu0 0.0
    %3265 = vmatpush1.msra.mxu0 0.0
    %3266 = vmatprep.subr.mxu0 0.0
    %3267 = vmatpush1.msra.mxu0 %v2409
    %3268 = vmatprep.subr.mxu0 0.0
    %3269 = vmatpush1.msra.mxu0 %v2408
    %3270 = vmatprep.subr.mxu0 0.0
    %3271 = vmatpush1.msra.mxu0 %v2407
    %3272 = vmatprep.subr.mxu0 0.0
    %3273 = vmatpush1.msra.mxu0 %v2406
    %3274 = vmatprep.subr.mxu0 0.0
    %3275 = vmatpush2.msra.mxu0 0.0
    %3276 = vmatprep.subr.mxu0 0.0
    %3277 = vmatpush2.msra.mxu0 0.0
    %3278 = vmatprep.subr.mxu0 0.0
    %3279 = vmatpush2.msra.mxu0 0.0
    %3280 = vmatprep.subr.mxu0 0.0
    %3281 = vmatpush2.msra.mxu0 0.0
    %3282 = vmatprep.subr.mxu0 0.0
    %3283 = vmatpush2.msra.mxu0 0.0
    %3284 = vmatprep.subr.mxu0 0.0
    %3285 = vmatpush2.msra.mxu0 0.0
    %3286 = vmatprep.subr.mxu0 0.0
    %3287 = vmatpush2.msra.mxu0 0.0
    %3288 = vmatprep.subr.mxu0 0.0
    %3289 = vmatpush2.msra.mxu0 0.0
    %3290 = vmatprep.subr.mxu0 0.0
    %3291 = vmatpush2.msra.mxu0 0.0
    %3292 = vmatprep.subr.mxu0 0.0
    %3293 = vmatpush2.msra.mxu0 0.0
    %3294 = vmatprep.subr.mxu0 0.0
    %3295 = vmatpush2.msra.mxu0 0.0
    %3296 = vmatprep.subr.mxu0 0.0
    %3297 = vmatpush2.msra.mxu0 0.0
    %3298 = vmatprep.subr.mxu0 0.0
    %3299 = vmatpush2.msra.mxu0 0.0
    %3300 = vmatprep.subr.mxu0 0.0
    %3301 = vmatpush2.msra.mxu0 0.0
    %3302 = vmatprep.subr.mxu0 0.0
    %3303 = vmatpush2.msra.mxu0 0.0
    %3304 = vmatprep.subr.mxu0 0.0
    %3305 = vmatpush2.msra.mxu0 0.0
    %3306 = vmatprep.mubr.f32.mxu0 0.0
    %3307 = vmatmul.mubr.f32.gmra.mxu0 %v3240
    %v3308 = vpop.f32.mrf.mxu0
    %v3309 = vadd.f32 0.0, %v3308
    %v3310 = vpop.f32.mrf.mxu0
    %3311 = vdwg.mxu0
    %v3312 = vadd.f32 %v3237, %v3309
    %v3313 = vadd.f32 %v3312, %v2492
    %v3314 = vxor.u32 %v3313, 2147483648
    %v3315 = vmul.f32 %v3314, 1.442695
    %v3316 = vpow.pop %v3315
    %v3317 = vadd.f32 %v3316, 1.0
    %v3318 = vrcp.pop %v3317
    %v3319 = vmul.f32 1.0, %v3318
    %v3320 = vtanh.pop %v3313
    %v3321 = vld [vmem:[#allocation5] sm:$0xff]
    %3323 = vrot.lane.b32.xlu0 %v3321, 32
    %v3324 = vpop.permute.xlu0 %3323
    %v3326 = vmul.f32 %v3319, %v3324
    %3328 = vrot.lane.b32.xlu0 %v3320, 64
    %v3329 = vpop.permute.xlu0 %3328
    %v3331 = vmul.f32 %v3319, %v3329
    %3333 = vrot.lane.b32.xlu0 %v3331, 32
    %v3334 = vpop.permute.xlu0 %3333
    %v3336 = vadd.f32 %v3326, %v3334
    %v3337 = vtanh.pop %v3336
    %3339 = vrot.lane.b32.xlu0 %v3337, 64
    %v3340 = vpop.permute.xlu0 %3339
    %v3342 = vmul.f32 %v3319, %v3340
    %3344 = vrot.lane.b32.xlu0 %v3342, 32
    %v3345 = vpop.permute.xlu0 %3344
    %3347 = vst.msk [vmem:[#allocation4] sm:$0xff] %vm189, %v3345
    %3349 = vrot.lane.b32.xlu0 %v3336, 96
    %v3350 = vpop.permute.xlu0 %3349
    %3352 = vst.msk [vmem:[#allocation5] sm:$0xff] %vm189, %v3350
    %3353 = vst.msk [vmem:[%s1151] sm:$0xff] %vm189, %v3345
    %v3354 = vld [vmem:[#allocation4] sm:$0xff]
    %v3355 = vld [vmem:[%s5] sm:$0xff]
    %v3356 = vld [vmem:[%s5 + $0x8] sm:$0xff]
    %v3357 = vld [vmem:[%s5 + $0x10] sm:$0xff]
    %v3358 = vld [vmem:[%s5 + $0x18] sm:$0xff]
    %v3359 = vld [vmem:[%s6] sm:$0x1]
    %v3361 = vlaneseq
    %v3362 = vshrl.u32 %v3361, 7
    %v3363 = vsub.s32 0, %v3362
    %v3364 = vrot.slane %v3359, %v3363
    %v3367 = vsel %vm189, %v3354, 0
    %3369 = vmatprep.subr.mxu0 0.0
    %3370 = vmatpush1.msra.mxu0 0.0
    %3371 = vmatprep.subr.mxu0 0.0
    %3372 = vmatpush1.msra.mxu0 0.0
    %3373 = vmatprep.subr.mxu0 0.0
    %3374 = vmatpush1.msra.mxu0 0.0
    %3375 = vmatprep.subr.mxu0 0.0
    %3376 = vmatpush1.msra.mxu0 0.0
    %3377 = vmatprep.subr.mxu0 0.0
    %3378 = vmatpush1.msra.mxu0 0.0
    %3379 = vmatprep.subr.mxu0 0.0
    %3380 = vmatpush1.msra.mxu0 0.0
    %3381 = vmatprep.subr.mxu0 0.0
    %3382 = vmatpush1.msra.mxu0 0.0
    %3383 = vmatprep.subr.mxu0 0.0
    %3384 = vmatpush1.msra.mxu0 0.0
    %3385 = vmatprep.subr.mxu0 0.0
    %3386 = vmatpush1.msra.mxu0 0.0
    %3387 = vmatprep.subr.mxu0 0.0
    %3388 = vmatpush1.msra.mxu0 0.0
    %3389 = vmatprep.subr.mxu0 0.0
    %3390 = vmatpush1.msra.mxu0 0.0
    %3391 = vmatprep.subr.mxu0 0.0
    %3392 = vmatpush1.msra.mxu0 0.0
    %3393 = vmatprep.subr.mxu0 0.0
    %3394 = vmatpush1.msra.mxu0 %v3358
    %3395 = vmatprep.subr.mxu0 0.0
    %3396 = vmatpush1.msra.mxu0 %v3357
    %3397 = vmatprep.subr.mxu0 0.0
    %3398 = vmatpush1.msra.mxu0 %v3356
    %3399 = vmatprep.subr.mxu0 0.0
    %3400 = vmatpush1.msra.mxu0 %v3355
    %3401 = vmatprep.subr.mxu0 0.0
    %3402 = vmatpush2.msra.mxu0 0.0
    %3403 = vmatprep.subr.mxu0 0.0
    %3404 = vmatpush2.msra.mxu0 0.0
    %3405 = vmatprep.subr.mxu0 0.0
    %3406 = vmatpush2.msra.mxu0 0.0
    %3407 = vmatprep.subr.mxu0 0.0
    %3408 = vmatpush2.msra.mxu0 0.0
    %3409 = vmatprep.subr.mxu0 0.0
    %3410 = vmatpush2.msra.mxu0 0.0
    %3411 = vmatprep.subr.mxu0 0.0
    %3412 = vmatpush2.msra.mxu0 0.0
    %3413 = vmatprep.subr.mxu0 0.0
    %3414 = vmatpush2.msra.mxu0 0.0
    %3415 = vmatprep.subr.mxu0 0.0
    %3416 = vmatpush2.msra.mxu0 0.0
    %3417 = vmatprep.subr.mxu0 0.0
    %3418 = vmatpush2.msra.mxu0 0.0
    %3419 = vmatprep.subr.mxu0 0.0
    %3420 = vmatpush2.msra.mxu0 0.0
    %3421 = vmatprep.subr.mxu0 0.0
    %3422 = vmatpush2.msra.mxu0 0.0
    %3423 = vmatprep.subr.mxu0 0.0
    %3424 = vmatpush2.msra.mxu0 0.0
    %3425 = vmatprep.subr.mxu0 0.0
    %3426 = vmatpush2.msra.mxu0 0.0
    %3427 = vmatprep.subr.mxu0 0.0
    %3428 = vmatpush2.msra.mxu0 0.0
    %3429 = vmatprep.subr.mxu0 0.0
    %3430 = vmatpush2.msra.mxu0 0.0
    %3431 = vmatprep.subr.mxu0 0.0
    %3432 = vmatpush2.msra.mxu0 0.0
    %3433 = vmatprep.mubr.f32.mxu0 0.0
    %3434 = vmatmul.mubr.f32.gmra.mxu0 %v3367
    %v3435 = vpop.f32.mrf.mxu0
    %v3436 = vadd.f32 %v3364, %v3435
    %v3437 = vpop.f32.mrf.mxu0
    %3438 = vdwg.mxu0
    %vm3439 = vcmask 130048
    %3440 = vst.msk [vmem:[%s7] sm:$0xff] %vm3439, %v3436
    // Predicated region
    $region34: #{encoder_rnn_forward.1} parent=1 // pred_check
      _
    $region35: #{encoder_rnn_forward.1} parent=1 // pred_check_branch
      %3442 = sbr.rel (0) target = $region37
    $region36: #{encoder_rnn_forward.1} parent=1 // pred_region
      _
    $region37: #{encoder_rnn_forward.1} parent=1 // pred_fallthru
      _
    // Predicated region
    $region38: #{encoder_rnn_forward.1} parent=1 // pred_check
      _
    $region39: #{encoder_rnn_forward.1} parent=1 // pred_check_branch
      %3444 = sbr.rel (0) target = $region41
    $region40: #{encoder_rnn_forward.1} parent=1 // pred_region
      _
    $region41: #{encoder_rnn_forward.1} parent=1 // pred_fallthru
      _
    %3445 = vsyncpa [#allocation7], 1

</llo_original>
